<compile_context>
chip_gen: v6e
topology: v6e:2x2x1
jax: 0.10.0
libtpu: 0.0.40
codegen_flags: <defaults>
</compile_context>

<pallas_src>
import math
from functools import partial

import jax
import jax.numpy as jnp
from jax.experimental import pallas as pl
from jax.experimental.pallas import tpu as pltpu


# -----------------------------------------------------------------------------
# Pallas kernel: full IPA forward for one batch element (all heads + to_out)
# -----------------------------------------------------------------------------
def _ipa_fused_kernel(pw_ref, x_ref, rot_ref, trn_ref, w_all_ref, w_out_ref,
                      b_out_ref, o_ref, *, heads, dh, pd, scalar_scale, eps):
    x_t = x_ref[0]          # (n, dim)
    rot = rot_ref[0]        # (n, 9)   [i, c*3+r] = R_i[c, r]
    trn = trn_ref[0]        # (n, 3)   [i, c]     = t_i[c]

    cols = 3 * dh + 9 * pd
    p3 = 3 * pd

    # One fused projection matmul for all heads and all six projections.
    proj = jnp.dot(x_t, w_all_ref[...], preferred_element_type=jnp.float32)  # (n, h*cols)

    def to_global(p):
        # p: (n, 3*pd) local coords, columns [r*pd + d]
        outs = []
        for c in range(3):
            acc = trn[:, c:c + 1]
            for r in range(3):
                acc = acc + rot[:, c * 3 + r:c * 3 + r + 1] * p[:, r * pd:(r + 1) * pd]
            outs.append(acc)
        return jnp.concatenate(outs, axis=-1)       # (n, 3*pd), columns [c*pd + d]

    neg_half = jnp.full_like(trn[:, :1], -0.5)      # (n, 1) constant column

    feat_parts = []
    for hh in range(heads):
        base = hh * cols
        q_s = proj[:, base:base + dh]
        k_s = proj[:, base + dh:base + 2 * dh]
        v_s = proj[:, base + 2 * dh:base + 3 * dh]
        off = base + 3 * dh
        q_p = proj[:, off:off + p3]
        k_p = proj[:, off + p3:off + 2 * p3]
        v_p = proj[:, off + 2 * p3:off + 3 * p3]

        # per-head sqrt(point_scale * softplus(point_weight)) scalar from SMEM
        g = pw_ref[hh]
        qg = to_global(q_p) * g                     # (n, 3*pd) scaled global points
        kg = to_global(k_p) * g
        vg = to_global(v_p)

        # Fused scalar + point logits via the Gram identity in ONE MXU matmul:
        #   logits = scale*qs.ks + qg.kg - 0.5*|kg|^2   (the -0.5*|qg|^2 per-row
        #   constant is dropped: softmax-invariant).  The -0.5*|kg|^2 term rides
        #   along as an extra (constant, |kg|^2) column pair.
        k_sqn = jnp.sum(kg * kg, axis=-1, keepdims=True)                       # (n, 1)
        qcat = jnp.concatenate([q_s * scalar_scale, qg, neg_half], axis=-1)    # (n, dh+3pd+1)
        kcat = jnp.concatenate([k_s, kg, k_sqn], axis=-1)                      # (n, dh+3pd+1)
        logits = jax.lax.dot_general(qcat, kcat, (((1,), (1,)), ((), ())),
                                     preferred_element_type=jnp.float32)       # (n, n)

        # Numerically-stable softmax; normalization deferred past the V matmul
        # so the divide never touches the (n, n) tile.
        m = jnp.max(logits, axis=-1, keepdims=True)
        e = jnp.exp(logits - m)
        inv = 1.0 / jnp.sum(e, axis=-1, keepdims=True)                         # (n, 1)

        vcat = jnp.concatenate([v_s, vg], axis=-1)                             # (n, dh+3pd)
        o_h = jnp.dot(e, vcat, preferred_element_type=jnp.float32) * inv       # (n, dh+3pd)

        rs = o_h[:, :dh]
        # back to local frame with R^T, then the point norms
        shifted = [o_h[:, dh + c * pd:dh + (c + 1) * pd] - trn[:, c:c + 1]
                   for c in range(3)]
        local = []
        for c in range(3):
            acc = rot[:, c:c + 1] * shifted[0]                  # r=0 -> col 0*3+c
            acc = acc + rot[:, 3 + c:4 + c] * shifted[1]        # r=1 -> col 1*3+c
            acc = acc + rot[:, 6 + c:7 + c] * shifted[2]        # r=2 -> col 2*3+c
            local.append(acc)
        norm = jnp.sqrt(local[0] ** 2 + local[1] ** 2 + local[2] ** 2 + eps)

        feat_parts.extend([rs, local[0], local[1], local[2], norm])

    # (n, h*(dh+4*pd)) — lane-dense (128 columns for the test config)
    feat = jnp.concatenate(feat_parts, axis=-1)

    # fused to_out linear (weight rows pre-permuted in the wrapper)
    out = (jnp.dot(feat, w_out_ref[...], preferred_element_type=jnp.float32)
           + b_out_ref[...])
    o_ref[0] = out.astype(o_ref.dtype)


# -----------------------------------------------------------------------------
# Wrapper
# -----------------------------------------------------------------------------
def invariant_point_attention(x, rotations, translations, params,
                              heads, dim_head, point_dim, eps=1e-8):
    b, n, dim = x.shape
    h, dh, pd = heads, dim_head, point_dim
    scalar_scale = (2 * dh) ** (-0.5)
    point_scale = (2 * pd * (9.0 / 2.0)) ** (-0.5)
    cols = 3 * dh + 9 * pd
    f_dim = h * (dh + 4 * pd)

    # --- pack all six projections into one (dim, h*cols) weight ---------------
    def per_head_scalar(w):                 # (dim, h*dh) -> (h, dim, dh)
        return w.reshape(dim, h, dh).transpose(1, 0, 2)

    def per_head_point(w):                  # (dim, h, pd, 3) -> (h, dim, 3*pd), cols [r*pd+d]
        return w.transpose(1, 0, 3, 2).reshape(h, dim, 3 * pd)

    w_all = jnp.concatenate([
        per_head_scalar(params['w_scalar_q']),
        per_head_scalar(params['w_scalar_k']),
        per_head_scalar(params['w_scalar_v']),
        per_head_point(params['w_point_q']),
        per_head_point(params['w_point_k']),
        per_head_point(params['w_point_v']),
    ], axis=-1)                                            # (h, dim, cols)
    w_all_k = w_all.transpose(1, 0, 2).reshape(dim, h * cols)

    # --- permute to_out rows so the kernel's head-major feature layout matches
    #     torch's (h d) / (h d c) / (h d) concatenation ordering ---------------
    perm = []
    for hh in range(h):
        for d in range(dh):                        # scalar block
            perm.append(hh * dh + d)
        for c in range(3):                         # point block (kernel is c-major)
            for d in range(pd):
                perm.append(h * dh + hh * 3 * pd + d * 3 + c)
        for d in range(pd):                        # norm block
            perm.append(h * dh + h * 3 * pd + hh * pd + d)
    w_out_k = jnp.take(params['w_out'], jnp.array(perm, dtype=jnp.int32), axis=0)
    b_out_k = params['b_out'].reshape(1, dim)

    # per-head sqrt(point_scale * softplus(point_weight))  (lives in SMEM)
    pw_s = jnp.sqrt(point_scale
                    * jax.nn.softplus(params['point_weights_raw'])).astype(jnp.float32)

    # rotations: pure reshape, no transpose; translations passed as-is
    rot_k = rotations.reshape(b, n, 9)
    trn_k = translations

    kernel = partial(_ipa_fused_kernel, heads=h, dh=dh, pd=pd,
                     scalar_scale=scalar_scale, eps=eps)

    flops = b * (2 * n * dim * (h * cols)            # fused projection
                 + h * 4 * n * n * (dh + 3 * pd)     # logits + attn@V
                 + 2 * n * f_dim * dim)              # to_out
    cost = pl.CostEstimate(
        flops=int(flops),
        transcendentals=int(b * h * n * n),
        bytes_accessed=int(4 * (2 * b * n * dim + b * n * 12
                                + dim * h * cols + f_dim * dim + dim + h)))

    out = pl.pallas_call(
        kernel,
        out_shape=jax.ShapeDtypeStruct((b, n, dim), jnp.float32),
        grid=(b,),
        in_specs=[
            pl.BlockSpec(memory_space=pltpu.MemorySpace.SMEM),      # pw_s (h,)
            pl.BlockSpec((1, n, dim), lambda bi: (bi, 0, 0)),       # x
            pl.BlockSpec((1, n, 9), lambda bi: (bi, 0, 0)),         # rotations
            pl.BlockSpec((1, n, 3), lambda bi: (bi, 0, 0)),         # translations
            pl.BlockSpec((dim, h * cols), lambda bi: (0, 0)),       # fused proj weight
            pl.BlockSpec((f_dim, dim), lambda bi: (0, 0)),          # permuted w_out
            pl.BlockSpec((1, dim), lambda bi: (0, 0)),              # b_out
        ],
        out_specs=pl.BlockSpec((1, n, dim), lambda bi: (bi, 0, 0)),
        compiler_params=pltpu.CompilerParams(
            dimension_semantics=("parallel",),
            vmem_limit_bytes=32 * 1024 * 1024),
        cost_estimate=cost,
    )(pw_s, x, rot_k, trn_k, w_all_k, w_out_k, b_out_k)
    return out


# -----------------------------------------------------------------------------
# Pure-JAX reference (mirrors the PyTorch forward exactly) for validation
# -----------------------------------------------------------------------------
def ipa_reference(x, rotations, translations, params, heads, dim_head, point_dim, eps):
    b, n, dim = x.shape
    h, dh, pd = heads, dim_head, point_dim
    scalar_scale = (2 * dh) ** (-0.5)
    point_scale = (2 * pd * (9.0 / 2.0)) ** (-0.5)

    def scal(w):
        return (x @ w).reshape(b, n, h, dh).transpose(0, 2, 1, 3)        # (b,h,n,dh)

    def pts(w):
        return jnp.einsum('bnd,dhqc->bhnqc', x, w)                       # (b,h,n,pd,3)

    qs, ks_, vs = scal(params['w_scalar_q']), scal(params['w_scalar_k']), scal(params['w_scalar_v'])
    qp, kp, vp = pts(params['w_point_q']), pts(params['w_point_k']), pts(params['w_point_v'])

    def glob(p):
        return (jnp.einsum('bicr,bhidr->bhidc', rotations, p)
                + translations[:, None, :, None, :])

    qg, kg, vg = glob(qp), glob(kp), glob(vp)

    logits = jnp.einsum('bhid,bhjd->bhij', qs, ks_) * scalar_scale
    diff = qg[:, :, :, None] - kg[:, :, None]
    dist = jnp.sum(diff ** 2, axis=(-1, -2))
    pw = jax.nn.softplus(params['point_weights_raw'])
    logits = logits - 0.5 * dist * pw[None, :, None, None] * point_scale
    attn = jax.nn.softmax(logits, axis=-1)

    rs = jnp.einsum('bhij,bhjd->bhid', attn, vs)
    rpg = jnp.einsum('bhij,bhjdc->bhidc', attn, vg)
    rpl = jnp.einsum('birc,bhidr->bhidc', rotations,
                     rpg - translations[:, None, :, None, :])
    rn = jnp.sqrt(jnp.sum(rpl ** 2, axis=-1) + eps)

    rs_f = rs.transpose(0, 2, 1, 3).reshape(b, n, h * dh)
    rp_f = rpl.transpose(0, 2, 1, 3, 4).reshape(b, n, h * pd * 3)
    rn_f = rn.transpose(0, 2, 1, 3).reshape(b, n, h * pd)
    feat = jnp.concatenate([rs_f, rp_f, rn_f], axis=-1)
    return feat @ params['w_out'] + params['b_out']


# -----------------------------------------------------------------------------
# Main
# -----------------------------------------------------------------------------
if __name__ == "__main__":
    B, N, DIM = 2, 8, 32
    HEADS, DIM_HEAD, POINT_DIM = 4, 16, 4
    EPS = 1e-8
    F_IN = HEADS * (DIM_HEAD + 4 * POINT_DIM)

    key = jax.random.PRNGKey(0)
    ks = jax.random.split(key, 12)

    def unif(k, shape, fan_in):
        bound = 1.0 / math.sqrt(fan_in)
        return jax.random.uniform(k, shape, jnp.float32, -bound, bound)

    params = {
        'w_scalar_q': unif(ks[0], (DIM, HEADS * DIM_HEAD), DIM),
        'w_scalar_k': unif(ks[1], (DIM, HEADS * DIM_HEAD), DIM),
        'w_scalar_v': unif(ks[2], (DIM, HEADS * DIM_HEAD), DIM),
        'w_point_q': unif(ks[3], (DIM, HEADS, POINT_DIM, 3), DIM),
        'w_point_k': unif(ks[4], (DIM, HEADS, POINT_DIM, 3), DIM),
        'w_point_v': unif(ks[5], (DIM, HEADS, POINT_DIM, 3), DIM),
        'point_weights_raw': jnp.full((HEADS,), math.log(math.expm1(1.0)), jnp.float32),
        'w_out': unif(ks[6], (F_IN, DIM), F_IN),
        'b_out': unif(ks[7], (DIM,), F_IN),
    }

    x = jax.random.normal(ks[8], (B, N, DIM), jnp.float32)
    rot_raw = jax.random.normal(ks[9], (B, N, 3, 3), jnp.float32)
    rotations, _ = jnp.linalg.qr(rot_raw)                      # (B, N, 3, 3) orthonormal
    translations = jax.random.normal(ks[10], (B, N, 3), jnp.float32)

    out = invariant_point_attention(x, rotations, translations, params,
                                    HEADS, DIM_HEAD, POINT_DIM, EPS)
    out = jax.block_until_ready(out)
    assert out.shape == (B, N, DIM)

    with jax.default_matmul_precision("highest"):
        ref = ipa_reference(x, rotations, translations, params,
                            HEADS, DIM_HEAD, POINT_DIM, EPS)
    ref = jax.block_until_ready(ref)

    max_err = float(jnp.max(jnp.abs(out - ref)))
    assert jnp.allclose(out, ref, atol=3e-4, rtol=2e-3), f"max abs err = {max_err}"
    print("KERNEL_OK")
</pallas_src>

<mosaic_0001>
module attributes {stable_mosaic.version = 11 : i64} {
  func.func @_ipa_fused_kernel(%arg0: i32, %arg1: memref<4xf32, #tpu.memory_space<smem>>, %arg2: memref<1x8x32xf32, #tpu.memory_space<vmem>>, %arg3: memref<1x8x9xf32, #tpu.memory_space<vmem>>, %arg4: memref<1x8x3xf32, #tpu.memory_space<vmem>>, %arg5: memref<32x336xf32, #tpu.memory_space<vmem>>, %arg6: memref<128x32xf32, #tpu.memory_space<vmem>>, %arg7: memref<1x32xf32, #tpu.memory_space<vmem>>, %arg8: memref<1x8x32xf32, #tpu.memory_space<vmem>>) attributes {dimension_semantics = [#tpu.dimension_semantics<parallel>], iteration_bounds = array<i64: 2>, scalar_prefetch = 0 : i64, scratch_operands = 0 : i64, tpu.core_type = #tpu.core_type<tc>, window_params = [{transform_indices = @transform_0, window_bounds = array<i64: 4>}, {transform_indices = @transform_1, window_bounds = array<i64: 1, 8, 32>}, {transform_indices = @transform_2, window_bounds = array<i64: 1, 8, 9>}, {transform_indices = @transform_3, window_bounds = array<i64: 1, 8, 3>}, {pipeline_mode = #tpu.pipeline_mode<synchronous>, transform_indices = @transform_4, window_bounds = array<i64: 32, 336>}, {pipeline_mode = #tpu.pipeline_mode<synchronous>, transform_indices = @transform_5, window_bounds = array<i64: 128, 32>}, {pipeline_mode = #tpu.pipeline_mode<synchronous>, transform_indices = @transform_6, window_bounds = array<i64: 1, 32>}, {transform_indices = @transform_7, window_bounds = array<i64: 1, 8, 32>}]} {
    %c0 = arith.constant 0 : index
    %c0_0 = arith.constant 0 : index
    %c0_1 = arith.constant 0 : index
    %0 = vector.load %arg2[%c0, %c0_0, %c0_1] : memref<1x8x32xf32, #tpu.memory_space<vmem>>, vector<1x8x32xf32>
    %1 = vector.shape_cast %0 : vector<1x8x32xf32> to vector<8x32xf32>
    %c0_2 = arith.constant 0 : index
    %c0_3 = arith.constant 0 : index
    %c0_4 = arith.constant 0 : index
    %2 = vector.load %arg3[%c0_2, %c0_3, %c0_4] : memref<1x8x9xf32, #tpu.memory_space<vmem>>, vector<1x8x9xf32>
    %3 = vector.shape_cast %2 : vector<1x8x9xf32> to vector<8x9xf32>
    %c0_5 = arith.constant 0 : index
    %c0_6 = arith.constant 0 : index
    %c0_7 = arith.constant 0 : index
    %4 = vector.load %arg4[%c0_5, %c0_6, %c0_7] : memref<1x8x3xf32, #tpu.memory_space<vmem>>, vector<1x8x3xf32>
    %5 = vector.shape_cast %4 : vector<1x8x3xf32> to vector<8x3xf32>
    %c0_8 = arith.constant 0 : index
    %c0_9 = arith.constant 0 : index
    %6 = vector.load %arg5[%c0_8, %c0_9] : memref<32x336xf32, #tpu.memory_space<vmem>>, vector<32x336xf32>
    %cst = arith.constant dense<0.000000e+00> : vector<8x336xf32>
    %7 = tpu.matmul %1, %6, %cst {dimension_numbers = #tpu.dot_dimension_numbers<[1], [0], [0], [1], [0, 0, 1, 1], [], []>} : vector<8x32xf32>, vector<32x336xf32>, vector<8x336xf32> -> vector<8x336xf32>
    %cst_10 = arith.constant -5.000000e-01 : f32
    %8 = vector.broadcast %cst_10 : f32 to vector<8x1xf32>
    %9 = vector.extract_strided_slice %7 {offsets = [0, 0], sizes = [8, 16], strides = [1, 1]} : vector<8x336xf32> to vector<8x16xf32>
    %10 = vector.extract_strided_slice %7 {offsets = [0, 16], sizes = [8, 16], strides = [1, 1]} : vector<8x336xf32> to vector<8x16xf32>
    %11 = vector.extract_strided_slice %7 {offsets = [0, 32], sizes = [8, 16], strides = [1, 1]} : vector<8x336xf32> to vector<8x16xf32>
    %12 = vector.extract_strided_slice %7 {offsets = [0, 48], sizes = [8, 12], strides = [1, 1]} : vector<8x336xf32> to vector<8x12xf32>
    %13 = vector.extract_strided_slice %7 {offsets = [0, 60], sizes = [8, 12], strides = [1, 1]} : vector<8x336xf32> to vector<8x12xf32>
    %14 = vector.extract_strided_slice %7 {offsets = [0, 72], sizes = [8, 12], strides = [1, 1]} : vector<8x336xf32> to vector<8x12xf32>
    %c0_11 = arith.constant 0 : index
    %15 = memref.load %arg1[%c0_11] : memref<4xf32, #tpu.memory_space<smem>>
    %16 = vector.extract_strided_slice %5 {offsets = [0, 0], sizes = [8, 1], strides = [1, 1]} : vector<8x3xf32> to vector<8x1xf32>
    %17 = vector.extract_strided_slice %3 {offsets = [0, 0], sizes = [8, 1], strides = [1, 1]} : vector<8x9xf32> to vector<8x1xf32>
    %18 = vector.extract_strided_slice %12 {offsets = [0, 0], sizes = [8, 4], strides = [1, 1]} : vector<8x12xf32> to vector<8x4xf32>
    %19 = vector.broadcast %17 : vector<8x1xf32> to vector<8x4xf32>
    %20 = arith.mulf %19, %18 : vector<8x4xf32>
    %21 = vector.broadcast %16 : vector<8x1xf32> to vector<8x4xf32>
    %22 = arith.addf %21, %20 : vector<8x4xf32>
    %23 = vector.extract_strided_slice %3 {offsets = [0, 1], sizes = [8, 1], strides = [1, 1]} : vector<8x9xf32> to vector<8x1xf32>
    %24 = vector.extract_strided_slice %12 {offsets = [0, 4], sizes = [8, 4], strides = [1, 1]} : vector<8x12xf32> to vector<8x4xf32>
    %25 = vector.broadcast %23 : vector<8x1xf32> to vector<8x4xf32>
    %26 = arith.mulf %25, %24 : vector<8x4xf32>
    %27 = arith.addf %22, %26 : vector<8x4xf32>
    %28 = vector.extract_strided_slice %3 {offsets = [0, 2], sizes = [8, 1], strides = [1, 1]} : vector<8x9xf32> to vector<8x1xf32>
    %29 = vector.extract_strided_slice %12 {offsets = [0, 8], sizes = [8, 4], strides = [1, 1]} : vector<8x12xf32> to vector<8x4xf32>
    %30 = vector.broadcast %28 : vector<8x1xf32> to vector<8x4xf32>
    %31 = arith.mulf %30, %29 : vector<8x4xf32>
    %32 = arith.addf %27, %31 : vector<8x4xf32>
    %33 = vector.extract_strided_slice %5 {offsets = [0, 1], sizes = [8, 1], strides = [1, 1]} : vector<8x3xf32> to vector<8x1xf32>
    %34 = vector.extract_strided_slice %3 {offsets = [0, 3], sizes = [8, 1], strides = [1, 1]} : vector<8x9xf32> to vector<8x1xf32>
    %35 = vector.extract_strided_slice %12 {offsets = [0, 0], sizes = [8, 4], strides = [1, 1]} : vector<8x12xf32> to vector<8x4xf32>
    %36 = vector.broadcast %34 : vector<8x1xf32> to vector<8x4xf32>
    %37 = arith.mulf %36, %35 : vector<8x4xf32>
    %38 = vector.broadcast %33 : vector<8x1xf32> to vector<8x4xf32>
    %39 = arith.addf %38, %37 : vector<8x4xf32>
    %40 = vector.extract_strided_slice %3 {offsets = [0, 4], sizes = [8, 1], strides = [1, 1]} : vector<8x9xf32> to vector<8x1xf32>
    %41 = vector.extract_strided_slice %12 {offsets = [0, 4], sizes = [8, 4], strides = [1, 1]} : vector<8x12xf32> to vector<8x4xf32>
    %42 = vector.broadcast %40 : vector<8x1xf32> to vector<8x4xf32>
    %43 = arith.mulf %42, %41 : vector<8x4xf32>
    %44 = arith.addf %39, %43 : vector<8x4xf32>
    %45 = vector.extract_strided_slice %3 {offsets = [0, 5], sizes = [8, 1], strides = [1, 1]} : vector<8x9xf32> to vector<8x1xf32>
    %46 = vector.extract_strided_slice %12 {offsets = [0, 8], sizes = [8, 4], strides = [1, 1]} : vector<8x12xf32> to vector<8x4xf32>
    %47 = vector.broadcast %45 : vector<8x1xf32> to vector<8x4xf32>
    %48 = arith.mulf %47, %46 : vector<8x4xf32>
    %49 = arith.addf %44, %48 : vector<8x4xf32>
    %50 = vector.extract_strided_slice %5 {offsets = [0, 2], sizes = [8, 1], strides = [1, 1]} : vector<8x3xf32> to vector<8x1xf32>
    %51 = vector.extract_strided_slice %3 {offsets = [0, 6], sizes = [8, 1], strides = [1, 1]} : vector<8x9xf32> to vector<8x1xf32>
    %52 = vector.extract_strided_slice %12 {offsets = [0, 0], sizes = [8, 4], strides = [1, 1]} : vector<8x12xf32> to vector<8x4xf32>
    %53 = vector.broadcast %51 : vector<8x1xf32> to vector<8x4xf32>
    %54 = arith.mulf %53, %52 : vector<8x4xf32>
    %55 = vector.broadcast %50 : vector<8x1xf32> to vector<8x4xf32>
    %56 = arith.addf %55, %54 : vector<8x4xf32>
    %57 = vector.extract_strided_slice %3 {offsets = [0, 7], sizes = [8, 1], strides = [1, 1]} : vector<8x9xf32> to vector<8x1xf32>
    %58 = vector.extract_strided_slice %12 {offsets = [0, 4], sizes = [8, 4], strides = [1, 1]} : vector<8x12xf32> to vector<8x4xf32>
    %59 = vector.broadcast %57 : vector<8x1xf32> to vector<8x4xf32>
    %60 = arith.mulf %59, %58 : vector<8x4xf32>
    %61 = arith.addf %56, %60 : vector<8x4xf32>
    %62 = vector.extract_strided_slice %3 {offsets = [0, 8], sizes = [8, 1], strides = [1, 1]} : vector<8x9xf32> to vector<8x1xf32>
    %63 = vector.extract_strided_slice %12 {offsets = [0, 8], sizes = [8, 4], strides = [1, 1]} : vector<8x12xf32> to vector<8x4xf32>
    %64 = vector.broadcast %62 : vector<8x1xf32> to vector<8x4xf32>
    %65 = arith.mulf %64, %63 : vector<8x4xf32>
    %66 = arith.addf %61, %65 : vector<8x4xf32>
    %67 = tpu.concatenate %32, %49, %66 in 1 : vector<8x4xf32>, vector<8x4xf32>, vector<8x4xf32> -> vector<8x12xf32>
    %68 = vector.broadcast %15 : f32 to vector<8x12xf32>
    %69 = arith.mulf %67, %68 : vector<8x12xf32>
    %70 = vector.extract_strided_slice %5 {offsets = [0, 0], sizes = [8, 1], strides = [1, 1]} : vector<8x3xf32> to vector<8x1xf32>
    %71 = vector.extract_strided_slice %3 {offsets = [0, 0], sizes = [8, 1], strides = [1, 1]} : vector<8x9xf32> to vector<8x1xf32>
    %72 = vector.extract_strided_slice %13 {offsets = [0, 0], sizes = [8, 4], strides = [1, 1]} : vector<8x12xf32> to vector<8x4xf32>
    %73 = vector.broadcast %71 : vector<8x1xf32> to vector<8x4xf32>
    %74 = arith.mulf %73, %72 : vector<8x4xf32>
    %75 = vector.broadcast %70 : vector<8x1xf32> to vector<8x4xf32>
    %76 = arith.addf %75, %74 : vector<8x4xf32>
    %77 = vector.extract_strided_slice %3 {offsets = [0, 1], sizes = [8, 1], strides = [1, 1]} : vector<8x9xf32> to vector<8x1xf32>
    %78 = vector.extract_strided_slice %13 {offsets = [0, 4], sizes = [8, 4], strides = [1, 1]} : vector<8x12xf32> to vector<8x4xf32>
    %79 = vector.broadcast %77 : vector<8x1xf32> to vector<8x4xf32>
    %80 = arith.mulf %79, %78 : vector<8x4xf32>
    %81 = arith.addf %76, %80 : vector<8x4xf32>
    %82 = vector.extract_strided_slice %3 {offsets = [0, 2], sizes = [8, 1], strides = [1, 1]} : vector<8x9xf32> to vector<8x1xf32>
    %83 = vector.extract_strided_slice %13 {offsets = [0, 8], sizes = [8, 4], strides = [1, 1]} : vector<8x12xf32> to vector<8x4xf32>
    %84 = vector.broadcast %82 : vector<8x1xf32> to vector<8x4xf32>
    %85 = arith.mulf %84, %83 : vector<8x4xf32>
    %86 = arith.addf %81, %85 : vector<8x4xf32>
    %87 = vector.extract_strided_slice %5 {offsets = [0, 1], sizes = [8, 1], strides = [1, 1]} : vector<8x3xf32> to vector<8x1xf32>
    %88 = vector.extract_strided_slice %3 {offsets = [0, 3], sizes = [8, 1], strides = [1, 1]} : vector<8x9xf32> to vector<8x1xf32>
    %89 = vector.extract_strided_slice %13 {offsets = [0, 0], sizes = [8, 4], strides = [1, 1]} : vector<8x12xf32> to vector<8x4xf32>
    %90 = vector.broadcast %88 : vector<8x1xf32> to vector<8x4xf32>
    %91 = arith.mulf %90, %89 : vector<8x4xf32>
    %92 = vector.broadcast %87 : vector<8x1xf32> to vector<8x4xf32>
    %93 = arith.addf %92, %91 : vector<8x4xf32>
    %94 = vector.extract_strided_slice %3 {offsets = [0, 4], sizes = [8, 1], strides = [1, 1]} : vector<8x9xf32> to vector<8x1xf32>
    %95 = vector.extract_strided_slice %13 {offsets = [0, 4], sizes = [8, 4], strides = [1, 1]} : vector<8x12xf32> to vector<8x4xf32>
    %96 = vector.broadcast %94 : vector<8x1xf32> to vector<8x4xf32>
    %97 = arith.mulf %96, %95 : vector<8x4xf32>
    %98 = arith.addf %93, %97 : vector<8x4xf32>
    %99 = vector.extract_strided_slice %3 {offsets = [0, 5], sizes = [8, 1], strides = [1, 1]} : vector<8x9xf32> to vector<8x1xf32>
    %100 = vector.extract_strided_slice %13 {offsets = [0, 8], sizes = [8, 4], strides = [1, 1]} : vector<8x12xf32> to vector<8x4xf32>
    %101 = vector.broadcast %99 : vector<8x1xf32> to vector<8x4xf32>
    %102 = arith.mulf %101, %100 : vector<8x4xf32>
    %103 = arith.addf %98, %102 : vector<8x4xf32>
    %104 = vector.extract_strided_slice %5 {offsets = [0, 2], sizes = [8, 1], strides = [1, 1]} : vector<8x3xf32> to vector<8x1xf32>
    %105 = vector.extract_strided_slice %3 {offsets = [0, 6], sizes = [8, 1], strides = [1, 1]} : vector<8x9xf32> to vector<8x1xf32>
    %106 = vector.extract_strided_slice %13 {offsets = [0, 0], sizes = [8, 4], strides = [1, 1]} : vector<8x12xf32> to vector<8x4xf32>
    %107 = vector.broadcast %105 : vector<8x1xf32> to vector<8x4xf32>
    %108 = arith.mulf %107, %106 : vector<8x4xf32>
    %109 = vector.broadcast %104 : vector<8x1xf32> to vector<8x4xf32>
    %110 = arith.addf %109, %108 : vector<8x4xf32>
    %111 = vector.extract_strided_slice %3 {offsets = [0, 7], sizes = [8, 1], strides = [1, 1]} : vector<8x9xf32> to vector<8x1xf32>
    %112 = vector.extract_strided_slice %13 {offsets = [0, 4], sizes = [8, 4], strides = [1, 1]} : vector<8x12xf32> to vector<8x4xf32>
    %113 = vector.broadcast %111 : vector<8x1xf32> to vector<8x4xf32>
    %114 = arith.mulf %113, %112 : vector<8x4xf32>
    %115 = arith.addf %110, %114 : vector<8x4xf32>
    %116 = vector.extract_strided_slice %3 {offsets = [0, 8], sizes = [8, 1], strides = [1, 1]} : vector<8x9xf32> to vector<8x1xf32>
    %117 = vector.extract_strided_slice %13 {offsets = [0, 8], sizes = [8, 4], strides = [1, 1]} : vector<8x12xf32> to vector<8x4xf32>
    %118 = vector.broadcast %116 : vector<8x1xf32> to vector<8x4xf32>
    %119 = arith.mulf %118, %117 : vector<8x4xf32>
    %120 = arith.addf %115, %119 : vector<8x4xf32>
    %121 = tpu.concatenate %86, %103, %120 in 1 : vector<8x4xf32>, vector<8x4xf32>, vector<8x4xf32> -> vector<8x12xf32>
    %122 = vector.broadcast %15 : f32 to vector<8x12xf32>
    %123 = arith.mulf %121, %122 : vector<8x12xf32>
    %124 = vector.extract_strided_slice %5 {offsets = [0, 0], sizes = [8, 1], strides = [1, 1]} : vector<8x3xf32> to vector<8x1xf32>
    %125 = vector.extract_strided_slice %3 {offsets = [0, 0], sizes = [8, 1], strides = [1, 1]} : vector<8x9xf32> to vector<8x1xf32>
    %126 = vector.extract_strided_slice %14 {offsets = [0, 0], sizes = [8, 4], strides = [1, 1]} : vector<8x12xf32> to vector<8x4xf32>
    %127 = vector.broadcast %125 : vector<8x1xf32> to vector<8x4xf32>
    %128 = arith.mulf %127, %126 : vector<8x4xf32>
    %129 = vector.broadcast %124 : vector<8x1xf32> to vector<8x4xf32>
    %130 = arith.addf %129, %128 : vector<8x4xf32>
    %131 = vector.extract_strided_slice %3 {offsets = [0, 1], sizes = [8, 1], strides = [1, 1]} : vector<8x9xf32> to vector<8x1xf32>
    %132 = vector.extract_strided_slice %14 {offsets = [0, 4], sizes = [8, 4], strides = [1, 1]} : vector<8x12xf32> to vector<8x4xf32>
    %133 = vector.broadcast %131 : vector<8x1xf32> to vector<8x4xf32>
    %134 = arith.mulf %133, %132 : vector<8x4xf32>
    %135 = arith.addf %130, %134 : vector<8x4xf32>
    %136 = vector.extract_strided_slice %3 {offsets = [0, 2], sizes = [8, 1], strides = [1, 1]} : vector<8x9xf32> to vector<8x1xf32>
    %137 = vector.extract_strided_slice %14 {offsets = [0, 8], sizes = [8, 4], strides = [1, 1]} : vector<8x12xf32> to vector<8x4xf32>
    %138 = vector.broadcast %136 : vector<8x1xf32> to vector<8x4xf32>
    %139 = arith.mulf %138, %137 : vector<8x4xf32>
    %140 = arith.addf %135, %139 : vector<8x4xf32>
    %141 = vector.extract_strided_slice %5 {offsets = [0, 1], sizes = [8, 1], strides = [1, 1]} : vector<8x3xf32> to vector<8x1xf32>
    %142 = vector.extract_strided_slice %3 {offsets = [0, 3], sizes = [8, 1], strides = [1, 1]} : vector<8x9xf32> to vector<8x1xf32>
    %143 = vector.extract_strided_slice %14 {offsets = [0, 0], sizes = [8, 4], strides = [1, 1]} : vector<8x12xf32> to vector<8x4xf32>
    %144 = vector.broadcast %142 : vector<8x1xf32> to vector<8x4xf32>
    %145 = arith.mulf %144, %143 : vector<8x4xf32>
    %146 = vector.broadcast %141 : vector<8x1xf32> to vector<8x4xf32>
    %147 = arith.addf %146, %145 : vector<8x4xf32>
    %148 = vector.extract_strided_slice %3 {offsets = [0, 4], sizes = [8, 1], strides = [1, 1]} : vector<8x9xf32> to vector<8x1xf32>
    %149 = vector.extract_strided_slice %14 {offsets = [0, 4], sizes = [8, 4], strides = [1, 1]} : vector<8x12xf32> to vector<8x4xf32>
    %150 = vector.broadcast %148 : vector<8x1xf32> to vector<8x4xf32>
    %151 = arith.mulf %150, %149 : vector<8x4xf32>
    %152 = arith.addf %147, %151 : vector<8x4xf32>
    %153 = vector.extract_strided_slice %3 {offsets = [0, 5], sizes = [8, 1], strides = [1, 1]} : vector<8x9xf32> to vector<8x1xf32>
    %154 = vector.extract_strided_slice %14 {offsets = [0, 8], sizes = [8, 4], strides = [1, 1]} : vector<8x12xf32> to vector<8x4xf32>
    %155 = vector.broadcast %153 : vector<8x1xf32> to vector<8x4xf32>
    %156 = arith.mulf %155, %154 : vector<8x4xf32>
    %157 = arith.addf %152, %156 : vector<8x4xf32>
    %158 = vector.extract_strided_slice %5 {offsets = [0, 2], sizes = [8, 1], strides = [1, 1]} : vector<8x3xf32> to vector<8x1xf32>
    %159 = vector.extract_strided_slice %3 {offsets = [0, 6], sizes = [8, 1], strides = [1, 1]} : vector<8x9xf32> to vector<8x1xf32>
    %160 = vector.extract_strided_slice %14 {offsets = [0, 0], sizes = [8, 4], strides = [1, 1]} : vector<8x12xf32> to vector<8x4xf32>
    %161 = vector.broadcast %159 : vector<8x1xf32> to vector<8x4xf32>
    %162 = arith.mulf %161, %160 : vector<8x4xf32>
    %163 = vector.broadcast %158 : vector<8x1xf32> to vector<8x4xf32>
    %164 = arith.addf %163, %162 : vector<8x4xf32>
    %165 = vector.extract_strided_slice %3 {offsets = [0, 7], sizes = [8, 1], strides = [1, 1]} : vector<8x9xf32> to vector<8x1xf32>
    %166 = vector.extract_strided_slice %14 {offsets = [0, 4], sizes = [8, 4], strides = [1, 1]} : vector<8x12xf32> to vector<8x4xf32>
    %167 = vector.broadcast %165 : vector<8x1xf32> to vector<8x4xf32>
    %168 = arith.mulf %167, %166 : vector<8x4xf32>
    %169 = arith.addf %164, %168 : vector<8x4xf32>
    %170 = vector.extract_strided_slice %3 {offsets = [0, 8], sizes = [8, 1], strides = [1, 1]} : vector<8x9xf32> to vector<8x1xf32>
    %171 = vector.extract_strided_slice %14 {offsets = [0, 8], sizes = [8, 4], strides = [1, 1]} : vector<8x12xf32> to vector<8x4xf32>
    %172 = vector.broadcast %170 : vector<8x1xf32> to vector<8x4xf32>
    %173 = arith.mulf %172, %171 : vector<8x4xf32>
    %174 = arith.addf %169, %173 : vector<8x4xf32>
    %175 = tpu.concatenate %140, %157, %174 in 1 : vector<8x4xf32>, vector<8x4xf32>, vector<8x4xf32> -> vector<8x12xf32>
    %176 = arith.mulf %123, %123 : vector<8x12xf32>
    %cst_12 = arith.constant dense<0.000000e+00> : vector<8xf32>
    %177 = vector.multi_reduction <add>, %176, %cst_12 [1] : vector<8x12xf32> to vector<8xf32>
    %178 = vector.shape_cast %177 : vector<8xf32> to vector<8x1xf32>
    %cst_13 = arith.constant 0.176776692 : f32
    %179 = vector.broadcast %cst_13 : f32 to vector<8x16xf32>
    %180 = arith.mulf %9, %179 : vector<8x16xf32>
    %181 = tpu.concatenate %180, %69, %8 in 1 : vector<8x16xf32>, vector<8x12xf32>, vector<8x1xf32> -> vector<8x29xf32>
    %182 = tpu.concatenate %10, %123, %178 in 1 : vector<8x16xf32>, vector<8x12xf32>, vector<8x1xf32> -> vector<8x29xf32>
    %cst_14 = arith.constant dense<0.000000e+00> : vector<8x8xf32>
    %183 = tpu.matmul %181, %182, %cst_14 {dimension_numbers = #tpu.dot_dimension_numbers<[1], [1], [0], [0], [0, 0, 1, 0], [], []>} : vector<8x29xf32>, vector<8x29xf32>, vector<8x8xf32> -> vector<8x8xf32>
    %cst_15 = arith.constant dense<0xFF800000> : vector<8xf32>
    %184 = vector.multi_reduction <maximumf>, %183, %cst_15 [1] : vector<8x8xf32> to vector<8xf32>
    %185 = vector.shape_cast %184 : vector<8xf32> to vector<8x1xf32>
    %186 = vector.broadcast %185 : vector<8x1xf32> to vector<8x8xf32>
    %187 = arith.subf %183, %186 : vector<8x8xf32>
    %188 = math.exp %187 : vector<8x8xf32>
    %cst_16 = arith.constant dense<0.000000e+00> : vector<8xf32>
    %189 = vector.multi_reduction <add>, %188, %cst_16 [1] : vector<8x8xf32> to vector<8xf32>
    %190 = vector.shape_cast %189 : vector<8xf32> to vector<8x1xf32>
    %cst_17 = arith.constant 1.000000e+00 : f32
    %191 = vector.broadcast %cst_17 : f32 to vector<8x1xf32>
    %192 = arith.divf %191, %190 : vector<8x1xf32>
    %193 = tpu.concatenate %11, %175 in 1 : vector<8x16xf32>, vector<8x12xf32> -> vector<8x28xf32>
    %cst_18 = arith.constant dense<0.000000e+00> : vector<8x28xf32>
    %194 = tpu.matmul %188, %193, %cst_18 {dimension_numbers = #tpu.dot_dimension_numbers<[1], [0], [0], [1], [0, 0, 1, 1], [], []>} : vector<8x8xf32>, vector<8x28xf32>, vector<8x28xf32> -> vector<8x28xf32>
    %195 = vector.broadcast %192 : vector<8x1xf32> to vector<8x28xf32>
    %196 = arith.mulf %194, %195 : vector<8x28xf32>
    %197 = vector.extract_strided_slice %196 {offsets = [0, 0], sizes = [8, 16], strides = [1, 1]} : vector<8x28xf32> to vector<8x16xf32>
    %198 = vector.extract_strided_slice %196 {offsets = [0, 16], sizes = [8, 4], strides = [1, 1]} : vector<8x28xf32> to vector<8x4xf32>
    %199 = vector.extract_strided_slice %5 {offsets = [0, 0], sizes = [8, 1], strides = [1, 1]} : vector<8x3xf32> to vector<8x1xf32>
    %200 = vector.broadcast %199 : vector<8x1xf32> to vector<8x4xf32>
    %201 = arith.subf %198, %200 : vector<8x4xf32>
    %202 = vector.extract_strided_slice %196 {offsets = [0, 20], sizes = [8, 4], strides = [1, 1]} : vector<8x28xf32> to vector<8x4xf32>
    %203 = vector.extract_strided_slice %5 {offsets = [0, 1], sizes = [8, 1], strides = [1, 1]} : vector<8x3xf32> to vector<8x1xf32>
    %204 = vector.broadcast %203 : vector<8x1xf32> to vector<8x4xf32>
    %205 = arith.subf %202, %204 : vector<8x4xf32>
    %206 = vector.extract_strided_slice %196 {offsets = [0, 24], sizes = [8, 4], strides = [1, 1]} : vector<8x28xf32> to vector<8x4xf32>
    %207 = vector.extract_strided_slice %5 {offsets = [0, 2], sizes = [8, 1], strides = [1, 1]} : vector<8x3xf32> to vector<8x1xf32>
    %208 = vector.broadcast %207 : vector<8x1xf32> to vector<8x4xf32>
    %209 = arith.subf %206, %208 : vector<8x4xf32>
    %210 = vector.extract_strided_slice %3 {offsets = [0, 0], sizes = [8, 1], strides = [1, 1]} : vector<8x9xf32> to vector<8x1xf32>
    %211 = vector.broadcast %210 : vector<8x1xf32> to vector<8x4xf32>
    %212 = arith.mulf %211, %201 : vector<8x4xf32>
    %213 = vector.extract_strided_slice %3 {offsets = [0, 3], sizes = [8, 1], strides = [1, 1]} : vector<8x9xf32> to vector<8x1xf32>
    %214 = vector.broadcast %213 : vector<8x1xf32> to vector<8x4xf32>
    %215 = arith.mulf %214, %205 : vector<8x4xf32>
    %216 = arith.addf %212, %215 : vector<8x4xf32>
    %217 = vector.extract_strided_slice %3 {offsets = [0, 6], sizes = [8, 1], strides = [1, 1]} : vector<8x9xf32> to vector<8x1xf32>
    %218 = vector.broadcast %217 : vector<8x1xf32> to vector<8x4xf32>
    %219 = arith.mulf %218, %209 : vector<8x4xf32>
    %220 = arith.addf %216, %219 : vector<8x4xf32>
    %221 = vector.extract_strided_slice %3 {offsets = [0, 1], sizes = [8, 1], strides = [1, 1]} : vector<8x9xf32> to vector<8x1xf32>
    %222 = vector.broadcast %221 : vector<8x1xf32> to vector<8x4xf32>
    %223 = arith.mulf %222, %201 : vector<8x4xf32>
    %224 = vector.extract_strided_slice %3 {offsets = [0, 4], sizes = [8, 1], strides = [1, 1]} : vector<8x9xf32> to vector<8x1xf32>
    %225 = vector.broadcast %224 : vector<8x1xf32> to vector<8x4xf32>
    %226 = arith.mulf %225, %205 : vector<8x4xf32>
    %227 = arith.addf %223, %226 : vector<8x4xf32>
    %228 = vector.extract_strided_slice %3 {offsets = [0, 7], sizes = [8, 1], strides = [1, 1]} : vector<8x9xf32> to vector<8x1xf32>
    %229 = vector.broadcast %228 : vector<8x1xf32> to vector<8x4xf32>
    %230 = arith.mulf %229, %209 : vector<8x4xf32>
    %231 = arith.addf %227, %230 : vector<8x4xf32>
    %232 = vector.extract_strided_slice %3 {offsets = [0, 2], sizes = [8, 1], strides = [1, 1]} : vector<8x9xf32> to vector<8x1xf32>
    %233 = vector.broadcast %232 : vector<8x1xf32> to vector<8x4xf32>
    %234 = arith.mulf %233, %201 : vector<8x4xf32>
    %235 = vector.extract_strided_slice %3 {offsets = [0, 5], sizes = [8, 1], strides = [1, 1]} : vector<8x9xf32> to vector<8x1xf32>
    %236 = vector.broadcast %235 : vector<8x1xf32> to vector<8x4xf32>
    %237 = arith.mulf %236, %205 : vector<8x4xf32>
    %238 = arith.addf %234, %237 : vector<8x4xf32>
    %239 = vector.extract_strided_slice %3 {offsets = [0, 8], sizes = [8, 1], strides = [1, 1]} : vector<8x9xf32> to vector<8x1xf32>
    %240 = vector.broadcast %239 : vector<8x1xf32> to vector<8x4xf32>
    %241 = arith.mulf %240, %209 : vector<8x4xf32>
    %242 = arith.addf %238, %241 : vector<8x4xf32>
    %243 = arith.mulf %220, %220 : vector<8x4xf32>
    %244 = arith.mulf %231, %231 : vector<8x4xf32>
    %245 = arith.addf %243, %244 : vector<8x4xf32>
    %246 = arith.mulf %242, %242 : vector<8x4xf32>
    %247 = arith.addf %245, %246 : vector<8x4xf32>
    %cst_19 = arith.constant 9.99999993E-9 : f32
    %248 = vector.broadcast %cst_19 : f32 to vector<8x4xf32>
    %249 = arith.addf %247, %248 : vector<8x4xf32>
    %250 = math.sqrt %249 : vector<8x4xf32>
    %251 = vector.extract_strided_slice %7 {offsets = [0, 84], sizes = [8, 16], strides = [1, 1]} : vector<8x336xf32> to vector<8x16xf32>
    %252 = vector.extract_strided_slice %7 {offsets = [0, 100], sizes = [8, 16], strides = [1, 1]} : vector<8x336xf32> to vector<8x16xf32>
    %253 = vector.extract_strided_slice %7 {offsets = [0, 116], sizes = [8, 16], strides = [1, 1]} : vector<8x336xf32> to vector<8x16xf32>
    %254 = vector.extract_strided_slice %7 {offsets = [0, 132], sizes = [8, 12], strides = [1, 1]} : vector<8x336xf32> to vector<8x12xf32>
    %255 = vector.extract_strided_slice %7 {offsets = [0, 144], sizes = [8, 12], strides = [1, 1]} : vector<8x336xf32> to vector<8x12xf32>
    %256 = vector.extract_strided_slice %7 {offsets = [0, 156], sizes = [8, 12], strides = [1, 1]} : vector<8x336xf32> to vector<8x12xf32>
    %c1 = arith.constant 1 : index
    %257 = memref.load %arg1[%c1] : memref<4xf32, #tpu.memory_space<smem>>
    %258 = vector.extract_strided_slice %5 {offsets = [0, 0], sizes = [8, 1], strides = [1, 1]} : vector<8x3xf32> to vector<8x1xf32>
    %259 = vector.extract_strided_slice %3 {offsets = [0, 0], sizes = [8, 1], strides = [1, 1]} : vector<8x9xf32> to vector<8x1xf32>
    %260 = vector.extract_strided_slice %254 {offsets = [0, 0], sizes = [8, 4], strides = [1, 1]} : vector<8x12xf32> to vector<8x4xf32>
    %261 = vector.broadcast %259 : vector<8x1xf32> to vector<8x4xf32>
    %262 = arith.mulf %261, %260 : vector<8x4xf32>
    %263 = vector.broadcast %258 : vector<8x1xf32> to vector<8x4xf32>
    %264 = arith.addf %263, %262 : vector<8x4xf32>
    %265 = vector.extract_strided_slice %3 {offsets = [0, 1], sizes = [8, 1], strides = [1, 1]} : vector<8x9xf32> to vector<8x1xf32>
    %266 = vector.extract_strided_slice %254 {offsets = [0, 4], sizes = [8, 4], strides = [1, 1]} : vector<8x12xf32> to vector<8x4xf32>
    %267 = vector.broadcast %265 : vector<8x1xf32> to vector<8x4xf32>
    %268 = arith.mulf %267, %266 : vector<8x4xf32>
    %269 = arith.addf %264, %268 : vector<8x4xf32>
    %270 = vector.extract_strided_slice %3 {offsets = [0, 2], sizes = [8, 1], strides = [1, 1]} : vector<8x9xf32> to vector<8x1xf32>
    %271 = vector.extract_strided_slice %254 {offsets = [0, 8], sizes = [8, 4], strides = [1, 1]} : vector<8x12xf32> to vector<8x4xf32>
    %272 = vector.broadcast %270 : vector<8x1xf32> to vector<8x4xf32>
    %273 = arith.mulf %272, %271 : vector<8x4xf32>
    %274 = arith.addf %269, %273 : vector<8x4xf32>
    %275 = vector.extract_strided_slice %5 {offsets = [0, 1], sizes = [8, 1], strides = [1, 1]} : vector<8x3xf32> to vector<8x1xf32>
    %276 = vector.extract_strided_slice %3 {offsets = [0, 3], sizes = [8, 1], strides = [1, 1]} : vector<8x9xf32> to vector<8x1xf32>
    %277 = vector.extract_strided_slice %254 {offsets = [0, 0], sizes = [8, 4], strides = [1, 1]} : vector<8x12xf32> to vector<8x4xf32>
    %278 = vector.broadcast %276 : vector<8x1xf32> to vector<8x4xf32>
    %279 = arith.mulf %278, %277 : vector<8x4xf32>
    %280 = vector.broadcast %275 : vector<8x1xf32> to vector<8x4xf32>
    %281 = arith.addf %280, %279 : vector<8x4xf32>
    %282 = vector.extract_strided_slice %3 {offsets = [0, 4], sizes = [8, 1], strides = [1, 1]} : vector<8x9xf32> to vector<8x1xf32>
    %283 = vector.extract_strided_slice %254 {offsets = [0, 4], sizes = [8, 4], strides = [1, 1]} : vector<8x12xf32> to vector<8x4xf32>
    %284 = vector.broadcast %282 : vector<8x1xf32> to vector<8x4xf32>
    %285 = arith.mulf %284, %283 : vector<8x4xf32>
    %286 = arith.addf %281, %285 : vector<8x4xf32>
    %287 = vector.extract_strided_slice %3 {offsets = [0, 5], sizes = [8, 1], strides = [1, 1]} : vector<8x9xf32> to vector<8x1xf32>
    %288 = vector.extract_strided_slice %254 {offsets = [0, 8], sizes = [8, 4], strides = [1, 1]} : vector<8x12xf32> to vector<8x4xf32>
    %289 = vector.broadcast %287 : vector<8x1xf32> to vector<8x4xf32>
    %290 = arith.mulf %289, %288 : vector<8x4xf32>
    %291 = arith.addf %286, %290 : vector<8x4xf32>
    %292 = vector.extract_strided_slice %5 {offsets = [0, 2], sizes = [8, 1], strides = [1, 1]} : vector<8x3xf32> to vector<8x1xf32>
    %293 = vector.extract_strided_slice %3 {offsets = [0, 6], sizes = [8, 1], strides = [1, 1]} : vector<8x9xf32> to vector<8x1xf32>
    %294 = vector.extract_strided_slice %254 {offsets = [0, 0], sizes = [8, 4], strides = [1, 1]} : vector<8x12xf32> to vector<8x4xf32>
    %295 = vector.broadcast %293 : vector<8x1xf32> to vector<8x4xf32>
    %296 = arith.mulf %295, %294 : vector<8x4xf32>
    %297 = vector.broadcast %292 : vector<8x1xf32> to vector<8x4xf32>
    %298 = arith.addf %297, %296 : vector<8x4xf32>
    %299 = vector.extract_strided_slice %3 {offsets = [0, 7], sizes = [8, 1], strides = [1, 1]} : vector<8x9xf32> to vector<8x1xf32>
    %300 = vector.extract_strided_slice %254 {offsets = [0, 4], sizes = [8, 4], strides = [1, 1]} : vector<8x12xf32> to vector<8x4xf32>
    %301 = vector.broadcast %299 : vector<8x1xf32> to vector<8x4xf32>
    %302 = arith.mulf %301, %300 : vector<8x4xf32>
    %303 = arith.addf %298, %302 : vector<8x4xf32>
    %304 = vector.extract_strided_slice %3 {offsets = [0, 8], sizes = [8, 1], strides = [1, 1]} : vector<8x9xf32> to vector<8x1xf32>
    %305 = vector.extract_strided_slice %254 {offsets = [0, 8], sizes = [8, 4], strides = [1, 1]} : vector<8x12xf32> to vector<8x4xf32>
    %306 = vector.broadcast %304 : vector<8x1xf32> to vector<8x4xf32>
    %307 = arith.mulf %306, %305 : vector<8x4xf32>
    %308 = arith.addf %303, %307 : vector<8x4xf32>
    %309 = tpu.concatenate %274, %291, %308 in 1 : vector<8x4xf32>, vector<8x4xf32>, vector<8x4xf32> -> vector<8x12xf32>
    %310 = vector.broadcast %257 : f32 to vector<8x12xf32>
    %311 = arith.mulf %309, %310 : vector<8x12xf32>
    %312 = vector.extract_strided_slice %5 {offsets = [0, 0], sizes = [8, 1], strides = [1, 1]} : vector<8x3xf32> to vector<8x1xf32>
    %313 = vector.extract_strided_slice %3 {offsets = [0, 0], sizes = [8, 1], strides = [1, 1]} : vector<8x9xf32> to vector<8x1xf32>
    %314 = vector.extract_strided_slice %255 {offsets = [0, 0], sizes = [8, 4], strides = [1, 1]} : vector<8x12xf32> to vector<8x4xf32>
    %315 = vector.broadcast %313 : vector<8x1xf32> to vector<8x4xf32>
    %316 = arith.mulf %315, %314 : vector<8x4xf32>
    %317 = vector.broadcast %312 : vector<8x1xf32> to vector<8x4xf32>
    %318 = arith.addf %317, %316 : vector<8x4xf32>
    %319 = vector.extract_strided_slice %3 {offsets = [0, 1], sizes = [8, 1], strides = [1, 1]} : vector<8x9xf32> to vector<8x1xf32>
    %320 = vector.extract_strided_slice %255 {offsets = [0, 4], sizes = [8, 4], strides = [1, 1]} : vector<8x12xf32> to vector<8x4xf32>
    %321 = vector.broadcast %319 : vector<8x1xf32> to vector<8x4xf32>
    %322 = arith.mulf %321, %320 : vector<8x4xf32>
    %323 = arith.addf %318, %322 : vector<8x4xf32>
    %324 = vector.extract_strided_slice %3 {offsets = [0, 2], sizes = [8, 1], strides = [1, 1]} : vector<8x9xf32> to vector<8x1xf32>
    %325 = vector.extract_strided_slice %255 {offsets = [0, 8], sizes = [8, 4], strides = [1, 1]} : vector<8x12xf32> to vector<8x4xf32>
    %326 = vector.broadcast %324 : vector<8x1xf32> to vector<8x4xf32>
    %327 = arith.mulf %326, %325 : vector<8x4xf32>
    %328 = arith.addf %323, %327 : vector<8x4xf32>
    %329 = vector.extract_strided_slice %5 {offsets = [0, 1], sizes = [8, 1], strides = [1, 1]} : vector<8x3xf32> to vector<8x1xf32>
    %330 = vector.extract_strided_slice %3 {offsets = [0, 3], sizes = [8, 1], strides = [1, 1]} : vector<8x9xf32> to vector<8x1xf32>
    %331 = vector.extract_strided_slice %255 {offsets = [0, 0], sizes = [8, 4], strides = [1, 1]} : vector<8x12xf32> to vector<8x4xf32>
    %332 = vector.broadcast %330 : vector<8x1xf32> to vector<8x4xf32>
    %333 = arith.mulf %332, %331 : vector<8x4xf32>
    %334 = vector.broadcast %329 : vector<8x1xf32> to vector<8x4xf32>
    %335 = arith.addf %334, %333 : vector<8x4xf32>
    %336 = vector.extract_strided_slice %3 {offsets = [0, 4], sizes = [8, 1], strides = [1, 1]} : vector<8x9xf32> to vector<8x1xf32>
    %337 = vector.extract_strided_slice %255 {offsets = [0, 4], sizes = [8, 4], strides = [1, 1]} : vector<8x12xf32> to vector<8x4xf32>
    %338 = vector.broadcast %336 : vector<8x1xf32> to vector<8x4xf32>
    %339 = arith.mulf %338, %337 : vector<8x4xf32>
    %340 = arith.addf %335, %339 : vector<8x4xf32>
    %341 = vector.extract_strided_slice %3 {offsets = [0, 5], sizes = [8, 1], strides = [1, 1]} : vector<8x9xf32> to vector<8x1xf32>
    %342 = vector.extract_strided_slice %255 {offsets = [0, 8], sizes = [8, 4], strides = [1, 1]} : vector<8x12xf32> to vector<8x4xf32>
    %343 = vector.broadcast %341 : vector<8x1xf32> to vector<8x4xf32>
    %344 = arith.mulf %343, %342 : vector<8x4xf32>
    %345 = arith.addf %340, %344 : vector<8x4xf32>
    %346 = vector.extract_strided_slice %5 {offsets = [0, 2], sizes = [8, 1], strides = [1, 1]} : vector<8x3xf32> to vector<8x1xf32>
    %347 = vector.extract_strided_slice %3 {offsets = [0, 6], sizes = [8, 1], strides = [1, 1]} : vector<8x9xf32> to vector<8x1xf32>
    %348 = vector.extract_strided_slice %255 {offsets = [0, 0], sizes = [8, 4], strides = [1, 1]} : vector<8x12xf32> to vector<8x4xf32>
    %349 = vector.broadcast %347 : vector<8x1xf32> to vector<8x4xf32>
    %350 = arith.mulf %349, %348 : vector<8x4xf32>
    %351 = vector.broadcast %346 : vector<8x1xf32> to vector<8x4xf32>
    %352 = arith.addf %351, %350 : vector<8x4xf32>
    %353 = vector.extract_strided_slice %3 {offsets = [0, 7], sizes = [8, 1], strides = [1, 1]} : vector<8x9xf32> to vector<8x1xf32>
    %354 = vector.extract_strided_slice %255 {offsets = [0, 4], sizes = [8, 4], strides = [1, 1]} : vector<8x12xf32> to vector<8x4xf32>
    %355 = vector.broadcast %353 : vector<8x1xf32> to vector<8x4xf32>
    %356 = arith.mulf %355, %354 : vector<8x4xf32>
    %357 = arith.addf %352, %356 : vector<8x4xf32>
    %358 = vector.extract_strided_slice %3 {offsets = [0, 8], sizes = [8, 1], strides = [1, 1]} : vector<8x9xf32> to vector<8x1xf32>
    %359 = vector.extract_strided_slice %255 {offsets = [0, 8], sizes = [8, 4], strides = [1, 1]} : vector<8x12xf32> to vector<8x4xf32>
    %360 = vector.broadcast %358 : vector<8x1xf32> to vector<8x4xf32>
    %361 = arith.mulf %360, %359 : vector<8x4xf32>
    %362 = arith.addf %357, %361 : vector<8x4xf32>
    %363 = tpu.concatenate %328, %345, %362 in 1 : vector<8x4xf32>, vector<8x4xf32>, vector<8x4xf32> -> vector<8x12xf32>
    %364 = vector.broadcast %257 : f32 to vector<8x12xf32>
    %365 = arith.mulf %363, %364 : vector<8x12xf32>
    %366 = vector.extract_strided_slice %5 {offsets = [0, 0], sizes = [8, 1], strides = [1, 1]} : vector<8x3xf32> to vector<8x1xf32>
    %367 = vector.extract_strided_slice %3 {offsets = [0, 0], sizes = [8, 1], strides = [1, 1]} : vector<8x9xf32> to vector<8x1xf32>
    %368 = vector.extract_strided_slice %256 {offsets = [0, 0], sizes = [8, 4], strides = [1, 1]} : vector<8x12xf32> to vector<8x4xf32>
    %369 = vector.broadcast %367 : vector<8x1xf32> to vector<8x4xf32>
    %370 = arith.mulf %369, %368 : vector<8x4xf32>
    %371 = vector.broadcast %366 : vector<8x1xf32> to vector<8x4xf32>
    %372 = arith.addf %371, %370 : vector<8x4xf32>
    %373 = vector.extract_strided_slice %3 {offsets = [0, 1], sizes = [8, 1], strides = [1, 1]} : vector<8x9xf32> to vector<8x1xf32>
    %374 = vector.extract_strided_slice %256 {offsets = [0, 4], sizes = [8, 4], strides = [1, 1]} : vector<8x12xf32> to vector<8x4xf32>
    %375 = vector.broadcast %373 : vector<8x1xf32> to vector<8x4xf32>
    %376 = arith.mulf %375, %374 : vector<8x4xf32>
    %377 = arith.addf %372, %376 : vector<8x4xf32>
    %378 = vector.extract_strided_slice %3 {offsets = [0, 2], sizes = [8, 1], strides = [1, 1]} : vector<8x9xf32> to vector<8x1xf32>
    %379 = vector.extract_strided_slice %256 {offsets = [0, 8], sizes = [8, 4], strides = [1, 1]} : vector<8x12xf32> to vector<8x4xf32>
    %380 = vector.broadcast %378 : vector<8x1xf32> to vector<8x4xf32>
    %381 = arith.mulf %380, %379 : vector<8x4xf32>
    %382 = arith.addf %377, %381 : vector<8x4xf32>
    %383 = vector.extract_strided_slice %5 {offsets = [0, 1], sizes = [8, 1], strides = [1, 1]} : vector<8x3xf32> to vector<8x1xf32>
    %384 = vector.extract_strided_slice %3 {offsets = [0, 3], sizes = [8, 1], strides = [1, 1]} : vector<8x9xf32> to vector<8x1xf32>
    %385 = vector.extract_strided_slice %256 {offsets = [0, 0], sizes = [8, 4], strides = [1, 1]} : vector<8x12xf32> to vector<8x4xf32>
    %386 = vector.broadcast %384 : vector<8x1xf32> to vector<8x4xf32>
    %387 = arith.mulf %386, %385 : vector<8x4xf32>
    %388 = vector.broadcast %383 : vector<8x1xf32> to vector<8x4xf32>
    %389 = arith.addf %388, %387 : vector<8x4xf32>
    %390 = vector.extract_strided_slice %3 {offsets = [0, 4], sizes = [8, 1], strides = [1, 1]} : vector<8x9xf32> to vector<8x1xf32>
    %391 = vector.extract_strided_slice %256 {offsets = [0, 4], sizes = [8, 4], strides = [1, 1]} : vector<8x12xf32> to vector<8x4xf32>
    %392 = vector.broadcast %390 : vector<8x1xf32> to vector<8x4xf32>
    %393 = arith.mulf %392, %391 : vector<8x4xf32>
    %394 = arith.addf %389, %393 : vector<8x4xf32>
    %395 = vector.extract_strided_slice %3 {offsets = [0, 5], sizes = [8, 1], strides = [1, 1]} : vector<8x9xf32> to vector<8x1xf32>
    %396 = vector.extract_strided_slice %256 {offsets = [0, 8], sizes = [8, 4], strides = [1, 1]} : vector<8x12xf32> to vector<8x4xf32>
    %397 = vector.broadcast %395 : vector<8x1xf32> to vector<8x4xf32>
    %398 = arith.mulf %397, %396 : vector<8x4xf32>
    %399 = arith.addf %394, %398 : vector<8x4xf32>
    %400 = vector.extract_strided_slice %5 {offsets = [0, 2], sizes = [8, 1], strides = [1, 1]} : vector<8x3xf32> to vector<8x1xf32>
    %401 = vector.extract_strided_slice %3 {offsets = [0, 6], sizes = [8, 1], strides = [1, 1]} : vector<8x9xf32> to vector<8x1xf32>
    %402 = vector.extract_strided_slice %256 {offsets = [0, 0], sizes = [8, 4], strides = [1, 1]} : vector<8x12xf32> to vector<8x4xf32>
    %403 = vector.broadcast %401 : vector<8x1xf32> to vector<8x4xf32>
    %404 = arith.mulf %403, %402 : vector<8x4xf32>
    %405 = vector.broadcast %400 : vector<8x1xf32> to vector<8x4xf32>
    %406 = arith.addf %405, %404 : vector<8x4xf32>
    %407 = vector.extract_strided_slice %3 {offsets = [0, 7], sizes = [8, 1], strides = [1, 1]} : vector<8x9xf32> to vector<8x1xf32>
    %408 = vector.extract_strided_slice %256 {offsets = [0, 4], sizes = [8, 4], strides = [1, 1]} : vector<8x12xf32> to vector<8x4xf32>
    %409 = vector.broadcast %407 : vector<8x1xf32> to vector<8x4xf32>
    %410 = arith.mulf %409, %408 : vector<8x4xf32>
    %411 = arith.addf %406, %410 : vector<8x4xf32>
    %412 = vector.extract_strided_slice %3 {offsets = [0, 8], sizes = [8, 1], strides = [1, 1]} : vector<8x9xf32> to vector<8x1xf32>
    %413 = vector.extract_strided_slice %256 {offsets = [0, 8], sizes = [8, 4], strides = [1, 1]} : vector<8x12xf32> to vector<8x4xf32>
    %414 = vector.broadcast %412 : vector<8x1xf32> to vector<8x4xf32>
    %415 = arith.mulf %414, %413 : vector<8x4xf32>
    %416 = arith.addf %411, %415 : vector<8x4xf32>
    %417 = tpu.concatenate %382, %399, %416 in 1 : vector<8x4xf32>, vector<8x4xf32>, vector<8x4xf32> -> vector<8x12xf32>
    %418 = arith.mulf %365, %365 : vector<8x12xf32>
    %cst_20 = arith.constant dense<0.000000e+00> : vector<8xf32>
    %419 = vector.multi_reduction <add>, %418, %cst_20 [1] : vector<8x12xf32> to vector<8xf32>
    %420 = vector.shape_cast %419 : vector<8xf32> to vector<8x1xf32>
    %cst_21 = arith.constant 0.176776692 : f32
    %421 = vector.broadcast %cst_21 : f32 to vector<8x16xf32>
    %422 = arith.mulf %251, %421 : vector<8x16xf32>
    %423 = tpu.concatenate %422, %311, %8 in 1 : vector<8x16xf32>, vector<8x12xf32>, vector<8x1xf32> -> vector<8x29xf32>
    %424 = tpu.concatenate %252, %365, %420 in 1 : vector<8x16xf32>, vector<8x12xf32>, vector<8x1xf32> -> vector<8x29xf32>
    %cst_22 = arith.constant dense<0.000000e+00> : vector<8x8xf32>
    %425 = tpu.matmul %423, %424, %cst_22 {dimension_numbers = #tpu.dot_dimension_numbers<[1], [1], [0], [0], [0, 0, 1, 0], [], []>} : vector<8x29xf32>, vector<8x29xf32>, vector<8x8xf32> -> vector<8x8xf32>
    %cst_23 = arith.constant dense<0xFF800000> : vector<8xf32>
    %426 = vector.multi_reduction <maximumf>, %425, %cst_23 [1] : vector<8x8xf32> to vector<8xf32>
    %427 = vector.shape_cast %426 : vector<8xf32> to vector<8x1xf32>
    %428 = vector.broadcast %427 : vector<8x1xf32> to vector<8x8xf32>
    %429 = arith.subf %425, %428 : vector<8x8xf32>
    %430 = math.exp %429 : vector<8x8xf32>
    %cst_24 = arith.constant dense<0.000000e+00> : vector<8xf32>
    %431 = vector.multi_reduction <add>, %430, %cst_24 [1] : vector<8x8xf32> to vector<8xf32>
    %432 = vector.shape_cast %431 : vector<8xf32> to vector<8x1xf32>
    %cst_25 = arith.constant 1.000000e+00 : f32
    %433 = vector.broadcast %cst_25 : f32 to vector<8x1xf32>
    %434 = arith.divf %433, %432 : vector<8x1xf32>
    %435 = tpu.concatenate %253, %417 in 1 : vector<8x16xf32>, vector<8x12xf32> -> vector<8x28xf32>
    %cst_26 = arith.constant dense<0.000000e+00> : vector<8x28xf32>
    %436 = tpu.matmul %430, %435, %cst_26 {dimension_numbers = #tpu.dot_dimension_numbers<[1], [0], [0], [1], [0, 0, 1, 1], [], []>} : vector<8x8xf32>, vector<8x28xf32>, vector<8x28xf32> -> vector<8x28xf32>
    %437 = vector.broadcast %434 : vector<8x1xf32> to vector<8x28xf32>
    %438 = arith.mulf %436, %437 : vector<8x28xf32>
    %439 = vector.extract_strided_slice %438 {offsets = [0, 0], sizes = [8, 16], strides = [1, 1]} : vector<8x28xf32> to vector<8x16xf32>
    %440 = vector.extract_strided_slice %438 {offsets = [0, 16], sizes = [8, 4], strides = [1, 1]} : vector<8x28xf32> to vector<8x4xf32>
    %441 = vector.extract_strided_slice %5 {offsets = [0, 0], sizes = [8, 1], strides = [1, 1]} : vector<8x3xf32> to vector<8x1xf32>
    %442 = vector.broadcast %441 : vector<8x1xf32> to vector<8x4xf32>
    %443 = arith.subf %440, %442 : vector<8x4xf32>
    %444 = vector.extract_strided_slice %438 {offsets = [0, 20], sizes = [8, 4], strides = [1, 1]} : vector<8x28xf32> to vector<8x4xf32>
    %445 = vector.extract_strided_slice %5 {offsets = [0, 1], sizes = [8, 1], strides = [1, 1]} : vector<8x3xf32> to vector<8x1xf32>
    %446 = vector.broadcast %445 : vector<8x1xf32> to vector<8x4xf32>
    %447 = arith.subf %444, %446 : vector<8x4xf32>
    %448 = vector.extract_strided_slice %438 {offsets = [0, 24], sizes = [8, 4], strides = [1, 1]} : vector<8x28xf32> to vector<8x4xf32>
    %449 = vector.extract_strided_slice %5 {offsets = [0, 2], sizes = [8, 1], strides = [1, 1]} : vector<8x3xf32> to vector<8x1xf32>
    %450 = vector.broadcast %449 : vector<8x1xf32> to vector<8x4xf32>
    %451 = arith.subf %448, %450 : vector<8x4xf32>
    %452 = vector.extract_strided_slice %3 {offsets = [0, 0], sizes = [8, 1], strides = [1, 1]} : vector<8x9xf32> to vector<8x1xf32>
    %453 = vector.broadcast %452 : vector<8x1xf32> to vector<8x4xf32>
    %454 = arith.mulf %453, %443 : vector<8x4xf32>
    %455 = vector.extract_strided_slice %3 {offsets = [0, 3], sizes = [8, 1], strides = [1, 1]} : vector<8x9xf32> to vector<8x1xf32>
    %456 = vector.broadcast %455 : vector<8x1xf32> to vector<8x4xf32>
    %457 = arith.mulf %456, %447 : vector<8x4xf32>
    %458 = arith.addf %454, %457 : vector<8x4xf32>
    %459 = vector.extract_strided_slice %3 {offsets = [0, 6], sizes = [8, 1], strides = [1, 1]} : vector<8x9xf32> to vector<8x1xf32>
    %460 = vector.broadcast %459 : vector<8x1xf32> to vector<8x4xf32>
    %461 = arith.mulf %460, %451 : vector<8x4xf32>
    %462 = arith.addf %458, %461 : vector<8x4xf32>
    %463 = vector.extract_strided_slice %3 {offsets = [0, 1], sizes = [8, 1], strides = [1, 1]} : vector<8x9xf32> to vector<8x1xf32>
    %464 = vector.broadcast %463 : vector<8x1xf32> to vector<8x4xf32>
    %465 = arith.mulf %464, %443 : vector<8x4xf32>
    %466 = vector.extract_strided_slice %3 {offsets = [0, 4], sizes = [8, 1], strides = [1, 1]} : vector<8x9xf32> to vector<8x1xf32>
    %467 = vector.broadcast %466 : vector<8x1xf32> to vector<8x4xf32>
    %468 = arith.mulf %467, %447 : vector<8x4xf32>
    %469 = arith.addf %465, %468 : vector<8x4xf32>
    %470 = vector.extract_strided_slice %3 {offsets = [0, 7], sizes = [8, 1], strides = [1, 1]} : vector<8x9xf32> to vector<8x1xf32>
    %471 = vector.broadcast %470 : vector<8x1xf32> to vector<8x4xf32>
    %472 = arith.mulf %471, %451 : vector<8x4xf32>
    %473 = arith.addf %469, %472 : vector<8x4xf32>
    %474 = vector.extract_strided_slice %3 {offsets = [0, 2], sizes = [8, 1], strides = [1, 1]} : vector<8x9xf32> to vector<8x1xf32>
    %475 = vector.broadcast %474 : vector<8x1xf32> to vector<8x4xf32>
    %476 = arith.mulf %475, %443 : vector<8x4xf32>
    %477 = vector.extract_strided_slice %3 {offsets = [0, 5], sizes = [8, 1], strides = [1, 1]} : vector<8x9xf32> to vector<8x1xf32>
    %478 = vector.broadcast %477 : vector<8x1xf32> to vector<8x4xf32>
    %479 = arith.mulf %478, %447 : vector<8x4xf32>
    %480 = arith.addf %476, %479 : vector<8x4xf32>
    %481 = vector.extract_strided_slice %3 {offsets = [0, 8], sizes = [8, 1], strides = [1, 1]} : vector<8x9xf32> to vector<8x1xf32>
    %482 = vector.broadcast %481 : vector<8x1xf32> to vector<8x4xf32>
    %483 = arith.mulf %482, %451 : vector<8x4xf32>
    %484 = arith.addf %480, %483 : vector<8x4xf32>
    %485 = arith.mulf %462, %462 : vector<8x4xf32>
    %486 = arith.mulf %473, %473 : vector<8x4xf32>
    %487 = arith.addf %485, %486 : vector<8x4xf32>
    %488 = arith.mulf %484, %484 : vector<8x4xf32>
    %489 = arith.addf %487, %488 : vector<8x4xf32>
    %cst_27 = arith.constant 9.99999993E-9 : f32
    %490 = vector.broadcast %cst_27 : f32 to vector<8x4xf32>
    %491 = arith.addf %489, %490 : vector<8x4xf32>
    %492 = math.sqrt %491 : vector<8x4xf32>
    %493 = vector.extract_strided_slice %7 {offsets = [0, 168], sizes = [8, 16], strides = [1, 1]} : vector<8x336xf32> to vector<8x16xf32>
    %494 = vector.extract_strided_slice %7 {offsets = [0, 184], sizes = [8, 16], strides = [1, 1]} : vector<8x336xf32> to vector<8x16xf32>
    %495 = vector.extract_strided_slice %7 {offsets = [0, 200], sizes = [8, 16], strides = [1, 1]} : vector<8x336xf32> to vector<8x16xf32>
    %496 = vector.extract_strided_slice %7 {offsets = [0, 216], sizes = [8, 12], strides = [1, 1]} : vector<8x336xf32> to vector<8x12xf32>
    %497 = vector.extract_strided_slice %7 {offsets = [0, 228], sizes = [8, 12], strides = [1, 1]} : vector<8x336xf32> to vector<8x12xf32>
    %498 = vector.extract_strided_slice %7 {offsets = [0, 240], sizes = [8, 12], strides = [1, 1]} : vector<8x336xf32> to vector<8x12xf32>
    %c2 = arith.constant 2 : index
    %499 = memref.load %arg1[%c2] : memref<4xf32, #tpu.memory_space<smem>>
    %500 = vector.extract_strided_slice %5 {offsets = [0, 0], sizes = [8, 1], strides = [1, 1]} : vector<8x3xf32> to vector<8x1xf32>
    %501 = vector.extract_strided_slice %3 {offsets = [0, 0], sizes = [8, 1], strides = [1, 1]} : vector<8x9xf32> to vector<8x1xf32>
    %502 = vector.extract_strided_slice %496 {offsets = [0, 0], sizes = [8, 4], strides = [1, 1]} : vector<8x12xf32> to vector<8x4xf32>
    %503 = vector.broadcast %501 : vector<8x1xf32> to vector<8x4xf32>
    %504 = arith.mulf %503, %502 : vector<8x4xf32>
    %505 = vector.broadcast %500 : vector<8x1xf32> to vector<8x4xf32>
    %506 = arith.addf %505, %504 : vector<8x4xf32>
    %507 = vector.extract_strided_slice %3 {offsets = [0, 1], sizes = [8, 1], strides = [1, 1]} : vector<8x9xf32> to vector<8x1xf32>
    %508 = vector.extract_strided_slice %496 {offsets = [0, 4], sizes = [8, 4], strides = [1, 1]} : vector<8x12xf32> to vector<8x4xf32>
    %509 = vector.broadcast %507 : vector<8x1xf32> to vector<8x4xf32>
    %510 = arith.mulf %509, %508 : vector<8x4xf32>
    %511 = arith.addf %506, %510 : vector<8x4xf32>
    %512 = vector.extract_strided_slice %3 {offsets = [0, 2], sizes = [8, 1], strides = [1, 1]} : vector<8x9xf32> to vector<8x1xf32>
    %513 = vector.extract_strided_slice %496 {offsets = [0, 8], sizes = [8, 4], strides = [1, 1]} : vector<8x12xf32> to vector<8x4xf32>
    %514 = vector.broadcast %512 : vector<8x1xf32> to vector<8x4xf32>
    %515 = arith.mulf %514, %513 : vector<8x4xf32>
    %516 = arith.addf %511, %515 : vector<8x4xf32>
    %517 = vector.extract_strided_slice %5 {offsets = [0, 1], sizes = [8, 1], strides = [1, 1]} : vector<8x3xf32> to vector<8x1xf32>
    %518 = vector.extract_strided_slice %3 {offsets = [0, 3], sizes = [8, 1], strides = [1, 1]} : vector<8x9xf32> to vector<8x1xf32>
    %519 = vector.extract_strided_slice %496 {offsets = [0, 0], sizes = [8, 4], strides = [1, 1]} : vector<8x12xf32> to vector<8x4xf32>
    %520 = vector.broadcast %518 : vector<8x1xf32> to vector<8x4xf32>
    %521 = arith.mulf %520, %519 : vector<8x4xf32>
    %522 = vector.broadcast %517 : vector<8x1xf32> to vector<8x4xf32>
    %523 = arith.addf %522, %521 : vector<8x4xf32>
    %524 = vector.extract_strided_slice %3 {offsets = [0, 4], sizes = [8, 1], strides = [1, 1]} : vector<8x9xf32> to vector<8x1xf32>
    %525 = vector.extract_strided_slice %496 {offsets = [0, 4], sizes = [8, 4], strides = [1, 1]} : vector<8x12xf32> to vector<8x4xf32>
    %526 = vector.broadcast %524 : vector<8x1xf32> to vector<8x4xf32>
    %527 = arith.mulf %526, %525 : vector<8x4xf32>
    %528 = arith.addf %523, %527 : vector<8x4xf32>
    %529 = vector.extract_strided_slice %3 {offsets = [0, 5], sizes = [8, 1], strides = [1, 1]} : vector<8x9xf32> to vector<8x1xf32>
    %530 = vector.extract_strided_slice %496 {offsets = [0, 8], sizes = [8, 4], strides = [1, 1]} : vector<8x12xf32> to vector<8x4xf32>
    %531 = vector.broadcast %529 : vector<8x1xf32> to vector<8x4xf32>
    %532 = arith.mulf %531, %530 : vector<8x4xf32>
    %533 = arith.addf %528, %532 : vector<8x4xf32>
    %534 = vector.extract_strided_slice %5 {offsets = [0, 2], sizes = [8, 1], strides = [1, 1]} : vector<8x3xf32> to vector<8x1xf32>
    %535 = vector.extract_strided_slice %3 {offsets = [0, 6], sizes = [8, 1], strides = [1, 1]} : vector<8x9xf32> to vector<8x1xf32>
    %536 = vector.extract_strided_slice %496 {offsets = [0, 0], sizes = [8, 4], strides = [1, 1]} : vector<8x12xf32> to vector<8x4xf32>
    %537 = vector.broadcast %535 : vector<8x1xf32> to vector<8x4xf32>
    %538 = arith.mulf %537, %536 : vector<8x4xf32>
    %539 = vector.broadcast %534 : vector<8x1xf32> to vector<8x4xf32>
    %540 = arith.addf %539, %538 : vector<8x4xf32>
    %541 = vector.extract_strided_slice %3 {offsets = [0, 7], sizes = [8, 1], strides = [1, 1]} : vector<8x9xf32> to vector<8x1xf32>
    %542 = vector.extract_strided_slice %496 {offsets = [0, 4], sizes = [8, 4], strides = [1, 1]} : vector<8x12xf32> to vector<8x4xf32>
    %543 = vector.broadcast %541 : vector<8x1xf32> to vector<8x4xf32>
    %544 = arith.mulf %543, %542 : vector<8x4xf32>
    %545 = arith.addf %540, %544 : vector<8x4xf32>
    %546 = vector.extract_strided_slice %3 {offsets = [0, 8], sizes = [8, 1], strides = [1, 1]} : vector<8x9xf32> to vector<8x1xf32>
    %547 = vector.extract_strided_slice %496 {offsets = [0, 8], sizes = [8, 4], strides = [1, 1]} : vector<8x12xf32> to vector<8x4xf32>
    %548 = vector.broadcast %546 : vector<8x1xf32> to vector<8x4xf32>
    %549 = arith.mulf %548, %547 : vector<8x4xf32>
    %550 = arith.addf %545, %549 : vector<8x4xf32>
    %551 = tpu.concatenate %516, %533, %550 in 1 : vector<8x4xf32>, vector<8x4xf32>, vector<8x4xf32> -> vector<8x12xf32>
    %552 = vector.broadcast %499 : f32 to vector<8x12xf32>
    %553 = arith.mulf %551, %552 : vector<8x12xf32>
    %554 = vector.extract_strided_slice %5 {offsets = [0, 0], sizes = [8, 1], strides = [1, 1]} : vector<8x3xf32> to vector<8x1xf32>
    %555 = vector.extract_strided_slice %3 {offsets = [0, 0], sizes = [8, 1], strides = [1, 1]} : vector<8x9xf32> to vector<8x1xf32>
    %556 = vector.extract_strided_slice %497 {offsets = [0, 0], sizes = [8, 4], strides = [1, 1]} : vector<8x12xf32> to vector<8x4xf32>
    %557 = vector.broadcast %555 : vector<8x1xf32> to vector<8x4xf32>
    %558 = arith.mulf %557, %556 : vector<8x4xf32>
    %559 = vector.broadcast %554 : vector<8x1xf32> to vector<8x4xf32>
    %560 = arith.addf %559, %558 : vector<8x4xf32>
    %561 = vector.extract_strided_slice %3 {offsets = [0, 1], sizes = [8, 1], strides = [1, 1]} : vector<8x9xf32> to vector<8x1xf32>
    %562 = vector.extract_strided_slice %497 {offsets = [0, 4], sizes = [8, 4], strides = [1, 1]} : vector<8x12xf32> to vector<8x4xf32>
    %563 = vector.broadcast %561 : vector<8x1xf32> to vector<8x4xf32>
    %564 = arith.mulf %563, %562 : vector<8x4xf32>
    %565 = arith.addf %560, %564 : vector<8x4xf32>
    %566 = vector.extract_strided_slice %3 {offsets = [0, 2], sizes = [8, 1], strides = [1, 1]} : vector<8x9xf32> to vector<8x1xf32>
    %567 = vector.extract_strided_slice %497 {offsets = [0, 8], sizes = [8, 4], strides = [1, 1]} : vector<8x12xf32> to vector<8x4xf32>
    %568 = vector.broadcast %566 : vector<8x1xf32> to vector<8x4xf32>
    %569 = arith.mulf %568, %567 : vector<8x4xf32>
    %570 = arith.addf %565, %569 : vector<8x4xf32>
    %571 = vector.extract_strided_slice %5 {offsets = [0, 1], sizes = [8, 1], strides = [1, 1]} : vector<8x3xf32> to vector<8x1xf32>
    %572 = vector.extract_strided_slice %3 {offsets = [0, 3], sizes = [8, 1], strides = [1, 1]} : vector<8x9xf32> to vector<8x1xf32>
    %573 = vector.extract_strided_slice %497 {offsets = [0, 0], sizes = [8, 4], strides = [1, 1]} : vector<8x12xf32> to vector<8x4xf32>
    %574 = vector.broadcast %572 : vector<8x1xf32> to vector<8x4xf32>
    %575 = arith.mulf %574, %573 : vector<8x4xf32>
    %576 = vector.broadcast %571 : vector<8x1xf32> to vector<8x4xf32>
    %577 = arith.addf %576, %575 : vector<8x4xf32>
    %578 = vector.extract_strided_slice %3 {offsets = [0, 4], sizes = [8, 1], strides = [1, 1]} : vector<8x9xf32> to vector<8x1xf32>
    %579 = vector.extract_strided_slice %497 {offsets = [0, 4], sizes = [8, 4], strides = [1, 1]} : vector<8x12xf32> to vector<8x4xf32>
    %580 = vector.broadcast %578 : vector<8x1xf32> to vector<8x4xf32>
    %581 = arith.mulf %580, %579 : vector<8x4xf32>
    %582 = arith.addf %577, %581 : vector<8x4xf32>
    %583 = vector.extract_strided_slice %3 {offsets = [0, 5], sizes = [8, 1], strides = [1, 1]} : vector<8x9xf32> to vector<8x1xf32>
    %584 = vector.extract_strided_slice %497 {offsets = [0, 8], sizes = [8, 4], strides = [1, 1]} : vector<8x12xf32> to vector<8x4xf32>
    %585 = vector.broadcast %583 : vector<8x1xf32> to vector<8x4xf32>
    %586 = arith.mulf %585, %584 : vector<8x4xf32>
    %587 = arith.addf %582, %586 : vector<8x4xf32>
    %588 = vector.extract_strided_slice %5 {offsets = [0, 2], sizes = [8, 1], strides = [1, 1]} : vector<8x3xf32> to vector<8x1xf32>
    %589 = vector.extract_strided_slice %3 {offsets = [0, 6], sizes = [8, 1], strides = [1, 1]} : vector<8x9xf32> to vector<8x1xf32>
    %590 = vector.extract_strided_slice %497 {offsets = [0, 0], sizes = [8, 4], strides = [1, 1]} : vector<8x12xf32> to vector<8x4xf32>
    %591 = vector.broadcast %589 : vector<8x1xf32> to vector<8x4xf32>
    %592 = arith.mulf %591, %590 : vector<8x4xf32>
    %593 = vector.broadcast %588 : vector<8x1xf32> to vector<8x4xf32>
    %594 = arith.addf %593, %592 : vector<8x4xf32>
    %595 = vector.extract_strided_slice %3 {offsets = [0, 7], sizes = [8, 1], strides = [1, 1]} : vector<8x9xf32> to vector<8x1xf32>
    %596 = vector.extract_strided_slice %497 {offsets = [0, 4], sizes = [8, 4], strides = [1, 1]} : vector<8x12xf32> to vector<8x4xf32>
    %597 = vector.broadcast %595 : vector<8x1xf32> to vector<8x4xf32>
    %598 = arith.mulf %597, %596 : vector<8x4xf32>
    %599 = arith.addf %594, %598 : vector<8x4xf32>
    %600 = vector.extract_strided_slice %3 {offsets = [0, 8], sizes = [8, 1], strides = [1, 1]} : vector<8x9xf32> to vector<8x1xf32>
    %601 = vector.extract_strided_slice %497 {offsets = [0, 8], sizes = [8, 4], strides = [1, 1]} : vector<8x12xf32> to vector<8x4xf32>
    %602 = vector.broadcast %600 : vector<8x1xf32> to vector<8x4xf32>
    %603 = arith.mulf %602, %601 : vector<8x4xf32>
    %604 = arith.addf %599, %603 : vector<8x4xf32>
    %605 = tpu.concatenate %570, %587, %604 in 1 : vector<8x4xf32>, vector<8x4xf32>, vector<8x4xf32> -> vector<8x12xf32>
    %606 = vector.broadcast %499 : f32 to vector<8x12xf32>
    %607 = arith.mulf %605, %606 : vector<8x12xf32>
    %608 = vector.extract_strided_slice %5 {offsets = [0, 0], sizes = [8, 1], strides = [1, 1]} : vector<8x3xf32> to vector<8x1xf32>
    %609 = vector.extract_strided_slice %3 {offsets = [0, 0], sizes = [8, 1], strides = [1, 1]} : vector<8x9xf32> to vector<8x1xf32>
    %610 = vector.extract_strided_slice %498 {offsets = [0, 0], sizes = [8, 4], strides = [1, 1]} : vector<8x12xf32> to vector<8x4xf32>
    %611 = vector.broadcast %609 : vector<8x1xf32> to vector<8x4xf32>
    %612 = arith.mulf %611, %610 : vector<8x4xf32>
    %613 = vector.broadcast %608 : vector<8x1xf32> to vector<8x4xf32>
    %614 = arith.addf %613, %612 : vector<8x4xf32>
    %615 = vector.extract_strided_slice %3 {offsets = [0, 1], sizes = [8, 1], strides = [1, 1]} : vector<8x9xf32> to vector<8x1xf32>
    %616 = vector.extract_strided_slice %498 {offsets = [0, 4], sizes = [8, 4], strides = [1, 1]} : vector<8x12xf32> to vector<8x4xf32>
    %617 = vector.broadcast %615 : vector<8x1xf32> to vector<8x4xf32>
    %618 = arith.mulf %617, %616 : vector<8x4xf32>
    %619 = arith.addf %614, %618 : vector<8x4xf32>
    %620 = vector.extract_strided_slice %3 {offsets = [0, 2], sizes = [8, 1], strides = [1, 1]} : vector<8x9xf32> to vector<8x1xf32>
    %621 = vector.extract_strided_slice %498 {offsets = [0, 8], sizes = [8, 4], strides = [1, 1]} : vector<8x12xf32> to vector<8x4xf32>
    %622 = vector.broadcast %620 : vector<8x1xf32> to vector<8x4xf32>
    %623 = arith.mulf %622, %621 : vector<8x4xf32>
    %624 = arith.addf %619, %623 : vector<8x4xf32>
    %625 = vector.extract_strided_slice %5 {offsets = [0, 1], sizes = [8, 1], strides = [1, 1]} : vector<8x3xf32> to vector<8x1xf32>
    %626 = vector.extract_strided_slice %3 {offsets = [0, 3], sizes = [8, 1], strides = [1, 1]} : vector<8x9xf32> to vector<8x1xf32>
    %627 = vector.extract_strided_slice %498 {offsets = [0, 0], sizes = [8, 4], strides = [1, 1]} : vector<8x12xf32> to vector<8x4xf32>
    %628 = vector.broadcast %626 : vector<8x1xf32> to vector<8x4xf32>
    %629 = arith.mulf %628, %627 : vector<8x4xf32>
    %630 = vector.broadcast %625 : vector<8x1xf32> to vector<8x4xf32>
    %631 = arith.addf %630, %629 : vector<8x4xf32>
    %632 = vector.extract_strided_slice %3 {offsets = [0, 4], sizes = [8, 1], strides = [1, 1]} : vector<8x9xf32> to vector<8x1xf32>
    %633 = vector.extract_strided_slice %498 {offsets = [0, 4], sizes = [8, 4], strides = [1, 1]} : vector<8x12xf32> to vector<8x4xf32>
    %634 = vector.broadcast %632 : vector<8x1xf32> to vector<8x4xf32>
    %635 = arith.mulf %634, %633 : vector<8x4xf32>
    %636 = arith.addf %631, %635 : vector<8x4xf32>
    %637 = vector.extract_strided_slice %3 {offsets = [0, 5], sizes = [8, 1], strides = [1, 1]} : vector<8x9xf32> to vector<8x1xf32>
    %638 = vector.extract_strided_slice %498 {offsets = [0, 8], sizes = [8, 4], strides = [1, 1]} : vector<8x12xf32> to vector<8x4xf32>
    %639 = vector.broadcast %637 : vector<8x1xf32> to vector<8x4xf32>
    %640 = arith.mulf %639, %638 : vector<8x4xf32>
    %641 = arith.addf %636, %640 : vector<8x4xf32>
    %642 = vector.extract_strided_slice %5 {offsets = [0, 2], sizes = [8, 1], strides = [1, 1]} : vector<8x3xf32> to vector<8x1xf32>
    %643 = vector.extract_strided_slice %3 {offsets = [0, 6], sizes = [8, 1], strides = [1, 1]} : vector<8x9xf32> to vector<8x1xf32>
    %644 = vector.extract_strided_slice %498 {offsets = [0, 0], sizes = [8, 4], strides = [1, 1]} : vector<8x12xf32> to vector<8x4xf32>
    %645 = vector.broadcast %643 : vector<8x1xf32> to vector<8x4xf32>
    %646 = arith.mulf %645, %644 : vector<8x4xf32>
    %647 = vector.broadcast %642 : vector<8x1xf32> to vector<8x4xf32>
    %648 = arith.addf %647, %646 : vector<8x4xf32>
    %649 = vector.extract_strided_slice %3 {offsets = [0, 7], sizes = [8, 1], strides = [1, 1]} : vector<8x9xf32> to vector<8x1xf32>
    %650 = vector.extract_strided_slice %498 {offsets = [0, 4], sizes = [8, 4], strides = [1, 1]} : vector<8x12xf32> to vector<8x4xf32>
    %651 = vector.broadcast %649 : vector<8x1xf32> to vector<8x4xf32>
    %652 = arith.mulf %651, %650 : vector<8x4xf32>
    %653 = arith.addf %648, %652 : vector<8x4xf32>
    %654 = vector.extract_strided_slice %3 {offsets = [0, 8], sizes = [8, 1], strides = [1, 1]} : vector<8x9xf32> to vector<8x1xf32>
    %655 = vector.extract_strided_slice %498 {offsets = [0, 8], sizes = [8, 4], strides = [1, 1]} : vector<8x12xf32> to vector<8x4xf32>
    %656 = vector.broadcast %654 : vector<8x1xf32> to vector<8x4xf32>
    %657 = arith.mulf %656, %655 : vector<8x4xf32>
    %658 = arith.addf %653, %657 : vector<8x4xf32>
    %659 = tpu.concatenate %624, %641, %658 in 1 : vector<8x4xf32>, vector<8x4xf32>, vector<8x4xf32> -> vector<8x12xf32>
    %660 = arith.mulf %607, %607 : vector<8x12xf32>
    %cst_28 = arith.constant dense<0.000000e+00> : vector<8xf32>
    %661 = vector.multi_reduction <add>, %660, %cst_28 [1] : vector<8x12xf32> to vector<8xf32>
    %662 = vector.shape_cast %661 : vector<8xf32> to vector<8x1xf32>
    %cst_29 = arith.constant 0.176776692 : f32
    %663 = vector.broadcast %cst_29 : f32 to vector<8x16xf32>
    %664 = arith.mulf %493, %663 : vector<8x16xf32>
    %665 = tpu.concatenate %664, %553, %8 in 1 : vector<8x16xf32>, vector<8x12xf32>, vector<8x1xf32> -> vector<8x29xf32>
    %666 = tpu.concatenate %494, %607, %662 in 1 : vector<8x16xf32>, vector<8x12xf32>, vector<8x1xf32> -> vector<8x29xf32>
    %cst_30 = arith.constant dense<0.000000e+00> : vector<8x8xf32>
    %667 = tpu.matmul %665, %666, %cst_30 {dimension_numbers = #tpu.dot_dimension_numbers<[1], [1], [0], [0], [0, 0, 1, 0], [], []>} : vector<8x29xf32>, vector<8x29xf32>, vector<8x8xf32> -> vector<8x8xf32>
    %cst_31 = arith.constant dense<0xFF800000> : vector<8xf32>
    %668 = vector.multi_reduction <maximumf>, %667, %cst_31 [1] : vector<8x8xf32> to vector<8xf32>
    %669 = vector.shape_cast %668 : vector<8xf32> to vector<8x1xf32>
    %670 = vector.broadcast %669 : vector<8x1xf32> to vector<8x8xf32>
    %671 = arith.subf %667, %670 : vector<8x8xf32>
    %672 = math.exp %671 : vector<8x8xf32>
    %cst_32 = arith.constant dense<0.000000e+00> : vector<8xf32>
    %673 = vector.multi_reduction <add>, %672, %cst_32 [1] : vector<8x8xf32> to vector<8xf32>
    %674 = vector.shape_cast %673 : vector<8xf32> to vector<8x1xf32>
    %cst_33 = arith.constant 1.000000e+00 : f32
    %675 = vector.broadcast %cst_33 : f32 to vector<8x1xf32>
    %676 = arith.divf %675, %674 : vector<8x1xf32>
    %677 = tpu.concatenate %495, %659 in 1 : vector<8x16xf32>, vector<8x12xf32> -> vector<8x28xf32>
    %cst_34 = arith.constant dense<0.000000e+00> : vector<8x28xf32>
    %678 = tpu.matmul %672, %677, %cst_34 {dimension_numbers = #tpu.dot_dimension_numbers<[1], [0], [0], [1], [0, 0, 1, 1], [], []>} : vector<8x8xf32>, vector<8x28xf32>, vector<8x28xf32> -> vector<8x28xf32>
    %679 = vector.broadcast %676 : vector<8x1xf32> to vector<8x28xf32>
    %680 = arith.mulf %678, %679 : vector<8x28xf32>
    %681 = vector.extract_strided_slice %680 {offsets = [0, 0], sizes = [8, 16], strides = [1, 1]} : vector<8x28xf32> to vector<8x16xf32>
    %682 = vector.extract_strided_slice %680 {offsets = [0, 16], sizes = [8, 4], strides = [1, 1]} : vector<8x28xf32> to vector<8x4xf32>
    %683 = vector.extract_strided_slice %5 {offsets = [0, 0], sizes = [8, 1], strides = [1, 1]} : vector<8x3xf32> to vector<8x1xf32>
    %684 = vector.broadcast %683 : vector<8x1xf32> to vector<8x4xf32>
    %685 = arith.subf %682, %684 : vector<8x4xf32>
    %686 = vector.extract_strided_slice %680 {offsets = [0, 20], sizes = [8, 4], strides = [1, 1]} : vector<8x28xf32> to vector<8x4xf32>
    %687 = vector.extract_strided_slice %5 {offsets = [0, 1], sizes = [8, 1], strides = [1, 1]} : vector<8x3xf32> to vector<8x1xf32>
    %688 = vector.broadcast %687 : vector<8x1xf32> to vector<8x4xf32>
    %689 = arith.subf %686, %688 : vector<8x4xf32>
    %690 = vector.extract_strided_slice %680 {offsets = [0, 24], sizes = [8, 4], strides = [1, 1]} : vector<8x28xf32> to vector<8x4xf32>
    %691 = vector.extract_strided_slice %5 {offsets = [0, 2], sizes = [8, 1], strides = [1, 1]} : vector<8x3xf32> to vector<8x1xf32>
    %692 = vector.broadcast %691 : vector<8x1xf32> to vector<8x4xf32>
    %693 = arith.subf %690, %692 : vector<8x4xf32>
    %694 = vector.extract_strided_slice %3 {offsets = [0, 0], sizes = [8, 1], strides = [1, 1]} : vector<8x9xf32> to vector<8x1xf32>
    %695 = vector.broadcast %694 : vector<8x1xf32> to vector<8x4xf32>
    %696 = arith.mulf %695, %685 : vector<8x4xf32>
    %697 = vector.extract_strided_slice %3 {offsets = [0, 3], sizes = [8, 1], strides = [1, 1]} : vector<8x9xf32> to vector<8x1xf32>
    %698 = vector.broadcast %697 : vector<8x1xf32> to vector<8x4xf32>
    %699 = arith.mulf %698, %689 : vector<8x4xf32>
    %700 = arith.addf %696, %699 : vector<8x4xf32>
    %701 = vector.extract_strided_slice %3 {offsets = [0, 6], sizes = [8, 1], strides = [1, 1]} : vector<8x9xf32> to vector<8x1xf32>
    %702 = vector.broadcast %701 : vector<8x1xf32> to vector<8x4xf32>
    %703 = arith.mulf %702, %693 : vector<8x4xf32>
    %704 = arith.addf %700, %703 : vector<8x4xf32>
    %705 = vector.extract_strided_slice %3 {offsets = [0, 1], sizes = [8, 1], strides = [1, 1]} : vector<8x9xf32> to vector<8x1xf32>
    %706 = vector.broadcast %705 : vector<8x1xf32> to vector<8x4xf32>
    %707 = arith.mulf %706, %685 : vector<8x4xf32>
    %708 = vector.extract_strided_slice %3 {offsets = [0, 4], sizes = [8, 1], strides = [1, 1]} : vector<8x9xf32> to vector<8x1xf32>
    %709 = vector.broadcast %708 : vector<8x1xf32> to vector<8x4xf32>
    %710 = arith.mulf %709, %689 : vector<8x4xf32>
    %711 = arith.addf %707, %710 : vector<8x4xf32>
    %712 = vector.extract_strided_slice %3 {offsets = [0, 7], sizes = [8, 1], strides = [1, 1]} : vector<8x9xf32> to vector<8x1xf32>
    %713 = vector.broadcast %712 : vector<8x1xf32> to vector<8x4xf32>
    %714 = arith.mulf %713, %693 : vector<8x4xf32>
    %715 = arith.addf %711, %714 : vector<8x4xf32>
    %716 = vector.extract_strided_slice %3 {offsets = [0, 2], sizes = [8, 1], strides = [1, 1]} : vector<8x9xf32> to vector<8x1xf32>
    %717 = vector.broadcast %716 : vector<8x1xf32> to vector<8x4xf32>
    %718 = arith.mulf %717, %685 : vector<8x4xf32>
    %719 = vector.extract_strided_slice %3 {offsets = [0, 5], sizes = [8, 1], strides = [1, 1]} : vector<8x9xf32> to vector<8x1xf32>
    %720 = vector.broadcast %719 : vector<8x1xf32> to vector<8x4xf32>
    %721 = arith.mulf %720, %689 : vector<8x4xf32>
    %722 = arith.addf %718, %721 : vector<8x4xf32>
    %723 = vector.extract_strided_slice %3 {offsets = [0, 8], sizes = [8, 1], strides = [1, 1]} : vector<8x9xf32> to vector<8x1xf32>
    %724 = vector.broadcast %723 : vector<8x1xf32> to vector<8x4xf32>
    %725 = arith.mulf %724, %693 : vector<8x4xf32>
    %726 = arith.addf %722, %725 : vector<8x4xf32>
    %727 = arith.mulf %704, %704 : vector<8x4xf32>
    %728 = arith.mulf %715, %715 : vector<8x4xf32>
    %729 = arith.addf %727, %728 : vector<8x4xf32>
    %730 = arith.mulf %726, %726 : vector<8x4xf32>
    %731 = arith.addf %729, %730 : vector<8x4xf32>
    %cst_35 = arith.constant 9.99999993E-9 : f32
    %732 = vector.broadcast %cst_35 : f32 to vector<8x4xf32>
    %733 = arith.addf %731, %732 : vector<8x4xf32>
    %734 = math.sqrt %733 : vector<8x4xf32>
    %735 = vector.extract_strided_slice %7 {offsets = [0, 252], sizes = [8, 16], strides = [1, 1]} : vector<8x336xf32> to vector<8x16xf32>
    %736 = vector.extract_strided_slice %7 {offsets = [0, 268], sizes = [8, 16], strides = [1, 1]} : vector<8x336xf32> to vector<8x16xf32>
    %737 = vector.extract_strided_slice %7 {offsets = [0, 284], sizes = [8, 16], strides = [1, 1]} : vector<8x336xf32> to vector<8x16xf32>
    %738 = vector.extract_strided_slice %7 {offsets = [0, 300], sizes = [8, 12], strides = [1, 1]} : vector<8x336xf32> to vector<8x12xf32>
    %739 = vector.extract_strided_slice %7 {offsets = [0, 312], sizes = [8, 12], strides = [1, 1]} : vector<8x336xf32> to vector<8x12xf32>
    %740 = vector.extract_strided_slice %7 {offsets = [0, 324], sizes = [8, 12], strides = [1, 1]} : vector<8x336xf32> to vector<8x12xf32>
    %c3 = arith.constant 3 : index
    %741 = memref.load %arg1[%c3] : memref<4xf32, #tpu.memory_space<smem>>
    %742 = vector.extract_strided_slice %5 {offsets = [0, 0], sizes = [8, 1], strides = [1, 1]} : vector<8x3xf32> to vector<8x1xf32>
    %743 = vector.extract_strided_slice %3 {offsets = [0, 0], sizes = [8, 1], strides = [1, 1]} : vector<8x9xf32> to vector<8x1xf32>
    %744 = vector.extract_strided_slice %738 {offsets = [0, 0], sizes = [8, 4], strides = [1, 1]} : vector<8x12xf32> to vector<8x4xf32>
    %745 = vector.broadcast %743 : vector<8x1xf32> to vector<8x4xf32>
    %746 = arith.mulf %745, %744 : vector<8x4xf32>
    %747 = vector.broadcast %742 : vector<8x1xf32> to vector<8x4xf32>
    %748 = arith.addf %747, %746 : vector<8x4xf32>
    %749 = vector.extract_strided_slice %3 {offsets = [0, 1], sizes = [8, 1], strides = [1, 1]} : vector<8x9xf32> to vector<8x1xf32>
    %750 = vector.extract_strided_slice %738 {offsets = [0, 4], sizes = [8, 4], strides = [1, 1]} : vector<8x12xf32> to vector<8x4xf32>
    %751 = vector.broadcast %749 : vector<8x1xf32> to vector<8x4xf32>
    %752 = arith.mulf %751, %750 : vector<8x4xf32>
    %753 = arith.addf %748, %752 : vector<8x4xf32>
    %754 = vector.extract_strided_slice %3 {offsets = [0, 2], sizes = [8, 1], strides = [1, 1]} : vector<8x9xf32> to vector<8x1xf32>
    %755 = vector.extract_strided_slice %738 {offsets = [0, 8], sizes = [8, 4], strides = [1, 1]} : vector<8x12xf32> to vector<8x4xf32>
    %756 = vector.broadcast %754 : vector<8x1xf32> to vector<8x4xf32>
    %757 = arith.mulf %756, %755 : vector<8x4xf32>
    %758 = arith.addf %753, %757 : vector<8x4xf32>
    %759 = vector.extract_strided_slice %5 {offsets = [0, 1], sizes = [8, 1], strides = [1, 1]} : vector<8x3xf32> to vector<8x1xf32>
    %760 = vector.extract_strided_slice %3 {offsets = [0, 3], sizes = [8, 1], strides = [1, 1]} : vector<8x9xf32> to vector<8x1xf32>
    %761 = vector.extract_strided_slice %738 {offsets = [0, 0], sizes = [8, 4], strides = [1, 1]} : vector<8x12xf32> to vector<8x4xf32>
    %762 = vector.broadcast %760 : vector<8x1xf32> to vector<8x4xf32>
    %763 = arith.mulf %762, %761 : vector<8x4xf32>
    %764 = vector.broadcast %759 : vector<8x1xf32> to vector<8x4xf32>
    %765 = arith.addf %764, %763 : vector<8x4xf32>
    %766 = vector.extract_strided_slice %3 {offsets = [0, 4], sizes = [8, 1], strides = [1, 1]} : vector<8x9xf32> to vector<8x1xf32>
    %767 = vector.extract_strided_slice %738 {offsets = [0, 4], sizes = [8, 4], strides = [1, 1]} : vector<8x12xf32> to vector<8x4xf32>
    %768 = vector.broadcast %766 : vector<8x1xf32> to vector<8x4xf32>
    %769 = arith.mulf %768, %767 : vector<8x4xf32>
    %770 = arith.addf %765, %769 : vector<8x4xf32>
    %771 = vector.extract_strided_slice %3 {offsets = [0, 5], sizes = [8, 1], strides = [1, 1]} : vector<8x9xf32> to vector<8x1xf32>
    %772 = vector.extract_strided_slice %738 {offsets = [0, 8], sizes = [8, 4], strides = [1, 1]} : vector<8x12xf32> to vector<8x4xf32>
    %773 = vector.broadcast %771 : vector<8x1xf32> to vector<8x4xf32>
    %774 = arith.mulf %773, %772 : vector<8x4xf32>
    %775 = arith.addf %770, %774 : vector<8x4xf32>
    %776 = vector.extract_strided_slice %5 {offsets = [0, 2], sizes = [8, 1], strides = [1, 1]} : vector<8x3xf32> to vector<8x1xf32>
    %777 = vector.extract_strided_slice %3 {offsets = [0, 6], sizes = [8, 1], strides = [1, 1]} : vector<8x9xf32> to vector<8x1xf32>
    %778 = vector.extract_strided_slice %738 {offsets = [0, 0], sizes = [8, 4], strides = [1, 1]} : vector<8x12xf32> to vector<8x4xf32>
    %779 = vector.broadcast %777 : vector<8x1xf32> to vector<8x4xf32>
    %780 = arith.mulf %779, %778 : vector<8x4xf32>
    %781 = vector.broadcast %776 : vector<8x1xf32> to vector<8x4xf32>
    %782 = arith.addf %781, %780 : vector<8x4xf32>
    %783 = vector.extract_strided_slice %3 {offsets = [0, 7], sizes = [8, 1], strides = [1, 1]} : vector<8x9xf32> to vector<8x1xf32>
    %784 = vector.extract_strided_slice %738 {offsets = [0, 4], sizes = [8, 4], strides = [1, 1]} : vector<8x12xf32> to vector<8x4xf32>
    %785 = vector.broadcast %783 : vector<8x1xf32> to vector<8x4xf32>
    %786 = arith.mulf %785, %784 : vector<8x4xf32>
    %787 = arith.addf %782, %786 : vector<8x4xf32>
    %788 = vector.extract_strided_slice %3 {offsets = [0, 8], sizes = [8, 1], strides = [1, 1]} : vector<8x9xf32> to vector<8x1xf32>
    %789 = vector.extract_strided_slice %738 {offsets = [0, 8], sizes = [8, 4], strides = [1, 1]} : vector<8x12xf32> to vector<8x4xf32>
    %790 = vector.broadcast %788 : vector<8x1xf32> to vector<8x4xf32>
    %791 = arith.mulf %790, %789 : vector<8x4xf32>
    %792 = arith.addf %787, %791 : vector<8x4xf32>
    %793 = tpu.concatenate %758, %775, %792 in 1 : vector<8x4xf32>, vector<8x4xf32>, vector<8x4xf32> -> vector<8x12xf32>
    %794 = vector.broadcast %741 : f32 to vector<8x12xf32>
    %795 = arith.mulf %793, %794 : vector<8x12xf32>
    %796 = vector.extract_strided_slice %5 {offsets = [0, 0], sizes = [8, 1], strides = [1, 1]} : vector<8x3xf32> to vector<8x1xf32>
    %797 = vector.extract_strided_slice %3 {offsets = [0, 0], sizes = [8, 1], strides = [1, 1]} : vector<8x9xf32> to vector<8x1xf32>
    %798 = vector.extract_strided_slice %739 {offsets = [0, 0], sizes = [8, 4], strides = [1, 1]} : vector<8x12xf32> to vector<8x4xf32>
    %799 = vector.broadcast %797 : vector<8x1xf32> to vector<8x4xf32>
    %800 = arith.mulf %799, %798 : vector<8x4xf32>
    %801 = vector.broadcast %796 : vector<8x1xf32> to vector<8x4xf32>
    %802 = arith.addf %801, %800 : vector<8x4xf32>
    %803 = vector.extract_strided_slice %3 {offsets = [0, 1], sizes = [8, 1], strides = [1, 1]} : vector<8x9xf32> to vector<8x1xf32>
    %804 = vector.extract_strided_slice %739 {offsets = [0, 4], sizes = [8, 4], strides = [1, 1]} : vector<8x12xf32> to vector<8x4xf32>
    %805 = vector.broadcast %803 : vector<8x1xf32> to vector<8x4xf32>
    %806 = arith.mulf %805, %804 : vector<8x4xf32>
    %807 = arith.addf %802, %806 : vector<8x4xf32>
    %808 = vector.extract_strided_slice %3 {offsets = [0, 2], sizes = [8, 1], strides = [1, 1]} : vector<8x9xf32> to vector<8x1xf32>
    %809 = vector.extract_strided_slice %739 {offsets = [0, 8], sizes = [8, 4], strides = [1, 1]} : vector<8x12xf32> to vector<8x4xf32>
    %810 = vector.broadcast %808 : vector<8x1xf32> to vector<8x4xf32>
    %811 = arith.mulf %810, %809 : vector<8x4xf32>
    %812 = arith.addf %807, %811 : vector<8x4xf32>
    %813 = vector.extract_strided_slice %5 {offsets = [0, 1], sizes = [8, 1], strides = [1, 1]} : vector<8x3xf32> to vector<8x1xf32>
    %814 = vector.extract_strided_slice %3 {offsets = [0, 3], sizes = [8, 1], strides = [1, 1]} : vector<8x9xf32> to vector<8x1xf32>
    %815 = vector.extract_strided_slice %739 {offsets = [0, 0], sizes = [8, 4], strides = [1, 1]} : vector<8x12xf32> to vector<8x4xf32>
    %816 = vector.broadcast %814 : vector<8x1xf32> to vector<8x4xf32>
    %817 = arith.mulf %816, %815 : vector<8x4xf32>
    %818 = vector.broadcast %813 : vector<8x1xf32> to vector<8x4xf32>
    %819 = arith.addf %818, %817 : vector<8x4xf32>
    %820 = vector.extract_strided_slice %3 {offsets = [0, 4], sizes = [8, 1], strides = [1, 1]} : vector<8x9xf32> to vector<8x1xf32>
    %821 = vector.extract_strided_slice %739 {offsets = [0, 4], sizes = [8, 4], strides = [1, 1]} : vector<8x12xf32> to vector<8x4xf32>
    %822 = vector.broadcast %820 : vector<8x1xf32> to vector<8x4xf32>
    %823 = arith.mulf %822, %821 : vector<8x4xf32>
    %824 = arith.addf %819, %823 : vector<8x4xf32>
    %825 = vector.extract_strided_slice %3 {offsets = [0, 5], sizes = [8, 1], strides = [1, 1]} : vector<8x9xf32> to vector<8x1xf32>
    %826 = vector.extract_strided_slice %739 {offsets = [0, 8], sizes = [8, 4], strides = [1, 1]} : vector<8x12xf32> to vector<8x4xf32>
    %827 = vector.broadcast %825 : vector<8x1xf32> to vector<8x4xf32>
    %828 = arith.mulf %827, %826 : vector<8x4xf32>
    %829 = arith.addf %824, %828 : vector<8x4xf32>
    %830 = vector.extract_strided_slice %5 {offsets = [0, 2], sizes = [8, 1], strides = [1, 1]} : vector<8x3xf32> to vector<8x1xf32>
    %831 = vector.extract_strided_slice %3 {offsets = [0, 6], sizes = [8, 1], strides = [1, 1]} : vector<8x9xf32> to vector<8x1xf32>
    %832 = vector.extract_strided_slice %739 {offsets = [0, 0], sizes = [8, 4], strides = [1, 1]} : vector<8x12xf32> to vector<8x4xf32>
    %833 = vector.broadcast %831 : vector<8x1xf32> to vector<8x4xf32>
    %834 = arith.mulf %833, %832 : vector<8x4xf32>
    %835 = vector.broadcast %830 : vector<8x1xf32> to vector<8x4xf32>
    %836 = arith.addf %835, %834 : vector<8x4xf32>
    %837 = vector.extract_strided_slice %3 {offsets = [0, 7], sizes = [8, 1], strides = [1, 1]} : vector<8x9xf32> to vector<8x1xf32>
    %838 = vector.extract_strided_slice %739 {offsets = [0, 4], sizes = [8, 4], strides = [1, 1]} : vector<8x12xf32> to vector<8x4xf32>
    %839 = vector.broadcast %837 : vector<8x1xf32> to vector<8x4xf32>
    %840 = arith.mulf %839, %838 : vector<8x4xf32>
    %841 = arith.addf %836, %840 : vector<8x4xf32>
    %842 = vector.extract_strided_slice %3 {offsets = [0, 8], sizes = [8, 1], strides = [1, 1]} : vector<8x9xf32> to vector<8x1xf32>
    %843 = vector.extract_strided_slice %739 {offsets = [0, 8], sizes = [8, 4], strides = [1, 1]} : vector<8x12xf32> to vector<8x4xf32>
    %844 = vector.broadcast %842 : vector<8x1xf32> to vector<8x4xf32>
    %845 = arith.mulf %844, %843 : vector<8x4xf32>
    %846 = arith.addf %841, %845 : vector<8x4xf32>
    %847 = tpu.concatenate %812, %829, %846 in 1 : vector<8x4xf32>, vector<8x4xf32>, vector<8x4xf32> -> vector<8x12xf32>
    %848 = vector.broadcast %741 : f32 to vector<8x12xf32>
    %849 = arith.mulf %847, %848 : vector<8x12xf32>
    %850 = vector.extract_strided_slice %5 {offsets = [0, 0], sizes = [8, 1], strides = [1, 1]} : vector<8x3xf32> to vector<8x1xf32>
    %851 = vector.extract_strided_slice %3 {offsets = [0, 0], sizes = [8, 1], strides = [1, 1]} : vector<8x9xf32> to vector<8x1xf32>
    %852 = vector.extract_strided_slice %740 {offsets = [0, 0], sizes = [8, 4], strides = [1, 1]} : vector<8x12xf32> to vector<8x4xf32>
    %853 = vector.broadcast %851 : vector<8x1xf32> to vector<8x4xf32>
    %854 = arith.mulf %853, %852 : vector<8x4xf32>
    %855 = vector.broadcast %850 : vector<8x1xf32> to vector<8x4xf32>
    %856 = arith.addf %855, %854 : vector<8x4xf32>
    %857 = vector.extract_strided_slice %3 {offsets = [0, 1], sizes = [8, 1], strides = [1, 1]} : vector<8x9xf32> to vector<8x1xf32>
    %858 = vector.extract_strided_slice %740 {offsets = [0, 4], sizes = [8, 4], strides = [1, 1]} : vector<8x12xf32> to vector<8x4xf32>
    %859 = vector.broadcast %857 : vector<8x1xf32> to vector<8x4xf32>
    %860 = arith.mulf %859, %858 : vector<8x4xf32>
    %861 = arith.addf %856, %860 : vector<8x4xf32>
    %862 = vector.extract_strided_slice %3 {offsets = [0, 2], sizes = [8, 1], strides = [1, 1]} : vector<8x9xf32> to vector<8x1xf32>
    %863 = vector.extract_strided_slice %740 {offsets = [0, 8], sizes = [8, 4], strides = [1, 1]} : vector<8x12xf32> to vector<8x4xf32>
    %864 = vector.broadcast %862 : vector<8x1xf32> to vector<8x4xf32>
    %865 = arith.mulf %864, %863 : vector<8x4xf32>
    %866 = arith.addf %861, %865 : vector<8x4xf32>
    %867 = vector.extract_strided_slice %5 {offsets = [0, 1], sizes = [8, 1], strides = [1, 1]} : vector<8x3xf32> to vector<8x1xf32>
    %868 = vector.extract_strided_slice %3 {offsets = [0, 3], sizes = [8, 1], strides = [1, 1]} : vector<8x9xf32> to vector<8x1xf32>
    %869 = vector.extract_strided_slice %740 {offsets = [0, 0], sizes = [8, 4], strides = [1, 1]} : vector<8x12xf32> to vector<8x4xf32>
    %870 = vector.broadcast %868 : vector<8x1xf32> to vector<8x4xf32>
    %871 = arith.mulf %870, %869 : vector<8x4xf32>
    %872 = vector.broadcast %867 : vector<8x1xf32> to vector<8x4xf32>
    %873 = arith.addf %872, %871 : vector<8x4xf32>
    %874 = vector.extract_strided_slice %3 {offsets = [0, 4], sizes = [8, 1], strides = [1, 1]} : vector<8x9xf32> to vector<8x1xf32>
    %875 = vector.extract_strided_slice %740 {offsets = [0, 4], sizes = [8, 4], strides = [1, 1]} : vector<8x12xf32> to vector<8x4xf32>
    %876 = vector.broadcast %874 : vector<8x1xf32> to vector<8x4xf32>
    %877 = arith.mulf %876, %875 : vector<8x4xf32>
    %878 = arith.addf %873, %877 : vector<8x4xf32>
    %879 = vector.extract_strided_slice %3 {offsets = [0, 5], sizes = [8, 1], strides = [1, 1]} : vector<8x9xf32> to vector<8x1xf32>
    %880 = vector.extract_strided_slice %740 {offsets = [0, 8], sizes = [8, 4], strides = [1, 1]} : vector<8x12xf32> to vector<8x4xf32>
    %881 = vector.broadcast %879 : vector<8x1xf32> to vector<8x4xf32>
    %882 = arith.mulf %881, %880 : vector<8x4xf32>
    %883 = arith.addf %878, %882 : vector<8x4xf32>
    %884 = vector.extract_strided_slice %5 {offsets = [0, 2], sizes = [8, 1], strides = [1, 1]} : vector<8x3xf32> to vector<8x1xf32>
    %885 = vector.extract_strided_slice %3 {offsets = [0, 6], sizes = [8, 1], strides = [1, 1]} : vector<8x9xf32> to vector<8x1xf32>
    %886 = vector.extract_strided_slice %740 {offsets = [0, 0], sizes = [8, 4], strides = [1, 1]} : vector<8x12xf32> to vector<8x4xf32>
    %887 = vector.broadcast %885 : vector<8x1xf32> to vector<8x4xf32>
    %888 = arith.mulf %887, %886 : vector<8x4xf32>
    %889 = vector.broadcast %884 : vector<8x1xf32> to vector<8x4xf32>
    %890 = arith.addf %889, %888 : vector<8x4xf32>
    %891 = vector.extract_strided_slice %3 {offsets = [0, 7], sizes = [8, 1], strides = [1, 1]} : vector<8x9xf32> to vector<8x1xf32>
    %892 = vector.extract_strided_slice %740 {offsets = [0, 4], sizes = [8, 4], strides = [1, 1]} : vector<8x12xf32> to vector<8x4xf32>
    %893 = vector.broadcast %891 : vector<8x1xf32> to vector<8x4xf32>
    %894 = arith.mulf %893, %892 : vector<8x4xf32>
    %895 = arith.addf %890, %894 : vector<8x4xf32>
    %896 = vector.extract_strided_slice %3 {offsets = [0, 8], sizes = [8, 1], strides = [1, 1]} : vector<8x9xf32> to vector<8x1xf32>
    %897 = vector.extract_strided_slice %740 {offsets = [0, 8], sizes = [8, 4], strides = [1, 1]} : vector<8x12xf32> to vector<8x4xf32>
    %898 = vector.broadcast %896 : vector<8x1xf32> to vector<8x4xf32>
    %899 = arith.mulf %898, %897 : vector<8x4xf32>
    %900 = arith.addf %895, %899 : vector<8x4xf32>
    %901 = tpu.concatenate %866, %883, %900 in 1 : vector<8x4xf32>, vector<8x4xf32>, vector<8x4xf32> -> vector<8x12xf32>
    %902 = arith.mulf %849, %849 : vector<8x12xf32>
    %cst_36 = arith.constant dense<0.000000e+00> : vector<8xf32>
    %903 = vector.multi_reduction <add>, %902, %cst_36 [1] : vector<8x12xf32> to vector<8xf32>
    %904 = vector.shape_cast %903 : vector<8xf32> to vector<8x1xf32>
    %cst_37 = arith.constant 0.176776692 : f32
    %905 = vector.broadcast %cst_37 : f32 to vector<8x16xf32>
    %906 = arith.mulf %735, %905 : vector<8x16xf32>
    %907 = tpu.concatenate %906, %795, %8 in 1 : vector<8x16xf32>, vector<8x12xf32>, vector<8x1xf32> -> vector<8x29xf32>
    %908 = tpu.concatenate %736, %849, %904 in 1 : vector<8x16xf32>, vector<8x12xf32>, vector<8x1xf32> -> vector<8x29xf32>
    %cst_38 = arith.constant dense<0.000000e+00> : vector<8x8xf32>
    %909 = tpu.matmul %907, %908, %cst_38 {dimension_numbers = #tpu.dot_dimension_numbers<[1], [1], [0], [0], [0, 0, 1, 0], [], []>} : vector<8x29xf32>, vector<8x29xf32>, vector<8x8xf32> -> vector<8x8xf32>
    %cst_39 = arith.constant dense<0xFF800000> : vector<8xf32>
    %910 = vector.multi_reduction <maximumf>, %909, %cst_39 [1] : vector<8x8xf32> to vector<8xf32>
    %911 = vector.shape_cast %910 : vector<8xf32> to vector<8x1xf32>
    %912 = vector.broadcast %911 : vector<8x1xf32> to vector<8x8xf32>
    %913 = arith.subf %909, %912 : vector<8x8xf32>
    %914 = math.exp %913 : vector<8x8xf32>
    %cst_40 = arith.constant dense<0.000000e+00> : vector<8xf32>
    %915 = vector.multi_reduction <add>, %914, %cst_40 [1] : vector<8x8xf32> to vector<8xf32>
    %916 = vector.shape_cast %915 : vector<8xf32> to vector<8x1xf32>
    %cst_41 = arith.constant 1.000000e+00 : f32
    %917 = vector.broadcast %cst_41 : f32 to vector<8x1xf32>
    %918 = arith.divf %917, %916 : vector<8x1xf32>
    %919 = tpu.concatenate %737, %901 in 1 : vector<8x16xf32>, vector<8x12xf32> -> vector<8x28xf32>
    %cst_42 = arith.constant dense<0.000000e+00> : vector<8x28xf32>
    %920 = tpu.matmul %914, %919, %cst_42 {dimension_numbers = #tpu.dot_dimension_numbers<[1], [0], [0], [1], [0, 0, 1, 1], [], []>} : vector<8x8xf32>, vector<8x28xf32>, vector<8x28xf32> -> vector<8x28xf32>
    %921 = vector.broadcast %918 : vector<8x1xf32> to vector<8x28xf32>
    %922 = arith.mulf %920, %921 : vector<8x28xf32>
    %923 = vector.extract_strided_slice %922 {offsets = [0, 0], sizes = [8, 16], strides = [1, 1]} : vector<8x28xf32> to vector<8x16xf32>
    %924 = vector.extract_strided_slice %922 {offsets = [0, 16], sizes = [8, 4], strides = [1, 1]} : vector<8x28xf32> to vector<8x4xf32>
    %925 = vector.extract_strided_slice %5 {offsets = [0, 0], sizes = [8, 1], strides = [1, 1]} : vector<8x3xf32> to vector<8x1xf32>
    %926 = vector.broadcast %925 : vector<8x1xf32> to vector<8x4xf32>
    %927 = arith.subf %924, %926 : vector<8x4xf32>
    %928 = vector.extract_strided_slice %922 {offsets = [0, 20], sizes = [8, 4], strides = [1, 1]} : vector<8x28xf32> to vector<8x4xf32>
    %929 = vector.extract_strided_slice %5 {offsets = [0, 1], sizes = [8, 1], strides = [1, 1]} : vector<8x3xf32> to vector<8x1xf32>
    %930 = vector.broadcast %929 : vector<8x1xf32> to vector<8x4xf32>
    %931 = arith.subf %928, %930 : vector<8x4xf32>
    %932 = vector.extract_strided_slice %922 {offsets = [0, 24], sizes = [8, 4], strides = [1, 1]} : vector<8x28xf32> to vector<8x4xf32>
    %933 = vector.extract_strided_slice %5 {offsets = [0, 2], sizes = [8, 1], strides = [1, 1]} : vector<8x3xf32> to vector<8x1xf32>
    %934 = vector.broadcast %933 : vector<8x1xf32> to vector<8x4xf32>
    %935 = arith.subf %932, %934 : vector<8x4xf32>
    %936 = vector.extract_strided_slice %3 {offsets = [0, 0], sizes = [8, 1], strides = [1, 1]} : vector<8x9xf32> to vector<8x1xf32>
    %937 = vector.broadcast %936 : vector<8x1xf32> to vector<8x4xf32>
    %938 = arith.mulf %937, %927 : vector<8x4xf32>
    %939 = vector.extract_strided_slice %3 {offsets = [0, 3], sizes = [8, 1], strides = [1, 1]} : vector<8x9xf32> to vector<8x1xf32>
    %940 = vector.broadcast %939 : vector<8x1xf32> to vector<8x4xf32>
    %941 = arith.mulf %940, %931 : vector<8x4xf32>
    %942 = arith.addf %938, %941 : vector<8x4xf32>
    %943 = vector.extract_strided_slice %3 {offsets = [0, 6], sizes = [8, 1], strides = [1, 1]} : vector<8x9xf32> to vector<8x1xf32>
    %944 = vector.broadcast %943 : vector<8x1xf32> to vector<8x4xf32>
    %945 = arith.mulf %944, %935 : vector<8x4xf32>
    %946 = arith.addf %942, %945 : vector<8x4xf32>
    %947 = vector.extract_strided_slice %3 {offsets = [0, 1], sizes = [8, 1], strides = [1, 1]} : vector<8x9xf32> to vector<8x1xf32>
    %948 = vector.broadcast %947 : vector<8x1xf32> to vector<8x4xf32>
    %949 = arith.mulf %948, %927 : vector<8x4xf32>
    %950 = vector.extract_strided_slice %3 {offsets = [0, 4], sizes = [8, 1], strides = [1, 1]} : vector<8x9xf32> to vector<8x1xf32>
    %951 = vector.broadcast %950 : vector<8x1xf32> to vector<8x4xf32>
    %952 = arith.mulf %951, %931 : vector<8x4xf32>
    %953 = arith.addf %949, %952 : vector<8x4xf32>
    %954 = vector.extract_strided_slice %3 {offsets = [0, 7], sizes = [8, 1], strides = [1, 1]} : vector<8x9xf32> to vector<8x1xf32>
    %955 = vector.broadcast %954 : vector<8x1xf32> to vector<8x4xf32>
    %956 = arith.mulf %955, %935 : vector<8x4xf32>
    %957 = arith.addf %953, %956 : vector<8x4xf32>
    %958 = vector.extract_strided_slice %3 {offsets = [0, 2], sizes = [8, 1], strides = [1, 1]} : vector<8x9xf32> to vector<8x1xf32>
    %959 = vector.broadcast %958 : vector<8x1xf32> to vector<8x4xf32>
    %960 = arith.mulf %959, %927 : vector<8x4xf32>
    %961 = vector.extract_strided_slice %3 {offsets = [0, 5], sizes = [8, 1], strides = [1, 1]} : vector<8x9xf32> to vector<8x1xf32>
    %962 = vector.broadcast %961 : vector<8x1xf32> to vector<8x4xf32>
    %963 = arith.mulf %962, %931 : vector<8x4xf32>
    %964 = arith.addf %960, %963 : vector<8x4xf32>
    %965 = vector.extract_strided_slice %3 {offsets = [0, 8], sizes = [8, 1], strides = [1, 1]} : vector<8x9xf32> to vector<8x1xf32>
    %966 = vector.broadcast %965 : vector<8x1xf32> to vector<8x4xf32>
    %967 = arith.mulf %966, %935 : vector<8x4xf32>
    %968 = arith.addf %964, %967 : vector<8x4xf32>
    %969 = arith.mulf %946, %946 : vector<8x4xf32>
    %970 = arith.mulf %957, %957 : vector<8x4xf32>
    %971 = arith.addf %969, %970 : vector<8x4xf32>
    %972 = arith.mulf %968, %968 : vector<8x4xf32>
    %973 = arith.addf %971, %972 : vector<8x4xf32>
    %cst_43 = arith.constant 9.99999993E-9 : f32
    %974 = vector.broadcast %cst_43 : f32 to vector<8x4xf32>
    %975 = arith.addf %973, %974 : vector<8x4xf32>
    %976 = math.sqrt %975 : vector<8x4xf32>
    %977 = tpu.concatenate %197, %220, %231, %242, %250, %439, %462, %473, %484, %492, %681, %704, %715, %726, %734, %923 in 1 : vector<8x16xf32>, vector<8x4xf32>, vector<8x4xf32>, vector<8x4xf32>, vector<8x4xf32>, vector<8x16xf32>, vector<8x4xf32>, vector<8x4xf32>, vector<8x4xf32>, vector<8x4xf32>, vector<8x16xf32>, vector<8x4xf32>, vector<8x4xf32>, vector<8x4xf32>, vector<8x4xf32>, vector<8x16xf32> -> vector<8x112xf32>
    %978 = tpu.concatenate %946, %957, %968, %976 in 1 : vector<8x4xf32>, vector<8x4xf32>, vector<8x4xf32>, vector<8x4xf32> -> vector<8x16xf32>
    %979 = tpu.concatenate %977, %978 in 1 : vector<8x112xf32>, vector<8x16xf32> -> vector<8x128xf32>
    %c0_44 = arith.constant 0 : index
    %c0_45 = arith.constant 0 : index
    %980 = vector.load %arg6[%c0_44, %c0_45] : memref<128x32xf32, #tpu.memory_space<vmem>>, vector<128x32xf32>
    %cst_46 = arith.constant dense<0.000000e+00> : vector<8x32xf32>
    %981 = tpu.matmul %979, %980, %cst_46 {dimension_numbers = #tpu.dot_dimension_numbers<[1], [0], [0], [1], [0, 0, 1, 1], [], []>} : vector<8x128xf32>, vector<128x32xf32>, vector<8x32xf32> -> vector<8x32xf32>
    %c0_47 = arith.constant 0 : index
    %c0_48 = arith.constant 0 : index
    %982 = vector.load %arg7[%c0_47, %c0_48] : memref<1x32xf32, #tpu.memory_space<vmem>>, vector<1x32xf32>
    %983 = vector.broadcast %982 : vector<1x32xf32> to vector<8x32xf32>
    %984 = arith.addf %981, %983 : vector<8x32xf32>
    %c0_49 = arith.constant 0 : index
    %c0_50 = arith.constant 0 : index
    %c0_51 = arith.constant 0 : index
    %985 = vector.load %arg8[%c0_49, %c0_50, %c0_51] : memref<1x8x32xf32, #tpu.memory_space<vmem>>, vector<1x8x32xf32>
    %986 = vector.shape_cast %985 : vector<1x8x32xf32> to vector<8x32xf32>
    %987 = vector.shape_cast %984 : vector<8x32xf32> to vector<1x8x32xf32>
    tpu.vector_store %arg8[%c0_49, %c0_50, %c0_51], %987 {strides = array<i32>} : memref<1x8x32xf32, #tpu.memory_space<vmem>>, vector<1x8x32xf32>,
    return
  }
  func.func @transform_0(%arg0: i32) -> i32 {
    %c0_i32 = arith.constant 0 : i32
    %c0_i32_0 = arith.constant 0 : i32
    return %c0_i32 : i32
  }
  func.func @transform_1(%arg0: i32) -> (i32, i32, i32) {
    %c0_i32 = arith.constant 0 : i32
    %c0_i32_0 = arith.constant 0 : i32
    %c0_i32_1 = arith.constant 0 : i32
    return %arg0, %c0_i32, %c0_i32_0 : i32, i32, i32
  }
  func.func @transform_2(%arg0: i32) -> (i32, i32, i32) {
    %c0_i32 = arith.constant 0 : i32
    %c0_i32_0 = arith.constant 0 : i32
    %c0_i32_1 = arith.constant 0 : i32
    return %arg0, %c0_i32, %c0_i32_0 : i32, i32, i32
  }
  func.func @transform_3(%arg0: i32) -> (i32, i32, i32) {
    %c0_i32 = arith.constant 0 : i32
    %c0_i32_0 = arith.constant 0 : i32
    %c0_i32_1 = arith.constant 0 : i32
    return %arg0, %c0_i32, %c0_i32_0 : i32, i32, i32
  }
  func.func @transform_4(%arg0: i32) -> (i32, i32) {
    %c0_i32 = arith.constant 0 : i32
    %c0_i32_0 = arith.constant 0 : i32
    %c0_i32_1 = arith.constant 0 : i32
    return %c0_i32, %c0_i32_0 : i32, i32
  }
  func.func @transform_5(%arg0: i32) -> (i32, i32) {
    %c0_i32 = arith.constant 0 : i32
    %c0_i32_0 = arith.constant 0 : i32
    %c0_i32_1 = arith.constant 0 : i32
    return %c0_i32, %c0_i32_0 : i32, i32
  }
  func.func @transform_6(%arg0: i32) -> (i32, i32) {
    %c0_i32 = arith.constant 0 : i32
    %c0_i32_0 = arith.constant 0 : i32
    %c0_i32_1 = arith.constant 0 : i32
    return %c0_i32, %c0_i32_0 : i32, i32
  }
  func.func @transform_7(%arg0: i32) -> (i32, i32, i32) {
    %c0_i32 = arith.constant 0 : i32
    %c0_i32_0 = arith.constant 0 : i32
    %c0_i32_1 = arith.constant 0 : i32
    return %arg0, %c0_i32, %c0_i32_0 : i32, i32, i32
  }
}

</mosaic_0001>

<llo_original>
// kernel: tpu_custom_call.1
$region0: #{tpu_custom_call.1}
  #allocation0 [shape = 'u32[]', space=smem, size = 0x4, offset = 0x4, fixed_abs, tag = 'smem constant byte address 0x4 - core index']
  #allocation1 [shape = 'u32[144,128]{1,0:T(1,128)}', space=vmem, size = 0x12000, scoped, tag = 'internal scratch']
  %s0 = inlined_call_operand.vmem [shape: f32[4], index: 0, kind: input, shape index: {}]
  %s1 = inlined_call_operand.vmem [shape: f32[2,8,32], index: 1, kind: input, shape index: {}]
  %s2 = inlined_call_operand.vmem [shape: f32[2,8,9], index: 2, kind: input, shape index: {}]
  %s3 = inlined_call_operand.vmem [shape: f32[2,8,3], index: 3, kind: input, shape index: {}]
  %s4 = inlined_call_operand.vmem [shape: f32[32,336], index: 4, kind: input, shape index: {}]
  %s5 = inlined_call_operand.vmem [shape: f32[128,32], index: 5, kind: input, shape index: {}]
  %s6 = inlined_call_operand.vmem [shape: f32[1,32], index: 6, kind: input, shape index: {}]
  %s7 = inlined_call_operand.hbm [shape: f32[2,8,32], index: 7, kind: output, shape index: {}]
  %s8 = sld [smem:[#allocation0]]
  $region65: #{tpu_custom_call.1} parent=0
    _
  %s10 = ssub.s32 1, %s8
  %s11 = scalar_select 0, %s10, %s8
  $region1: #{tpu_custom_call.1} parent=0
    #allocation2 [shape = 'u8[512]{0}', space=smem, size = 0x200, scoped, tag = 'input window, operand 0, single buffered']
    #allocation3 [shape = 's32[2]{0}', space=sflag, size = 0x8, scoped, tag = 'scoped memory for tpu_custom_call.1']
    #allocation4 [shape = 's32[2]{0}', space=sflag, size = 0x8, scoped, tag = 'scoped memory for tpu_custom_call.1']
    #allocation5 [shape = 'u8[8192]{0}', space=vmem, size = 0x2000, scoped, tag = 'output window, operand 0']
    %12 = vsyncpa [#allocation4], 0
    %13 = vsyncpa [#allocation3], 0
    %s14 = scalar_lea.sflag [#allocation3], 1
    %15 = vsyncpa %s14, 0
    loop: start=0, step=1, limit=4
    $region2: #{tpu_custom_call.1} parent=1 // loop_pre_header
      _
    $region3: #{tpu_custom_call.1} parent=1 // loop_header
      %s17 = sphi 0, %s21
      %p18 = scmp.ge.s32.totalorder %s17, 4
      %s25 = sphi 0, %s25
      %s27 = sphi 0, %s25
      %s28 = sphi 0, %s27
      %s42 = sphi 0, %s28
      %s48 = sphi 0, %s50
      %s51 = sphi 0, %s48
      %s52 = sphi 0, %s51
      %s68 = sphi 0, %s52
      %s74 = sphi 0, %s76
      %s77 = sphi 0, %s74
      %s78 = sphi 0, %s77
      %s94 = sphi 0, %s78
      %s100 = sphi 0, %s102
      %s103 = sphi 0, %s100
      %s104 = sphi 0, %s103
      %s120 = sphi 0, %s104
      %s124 = sphi 0, %s124
      %s126 = sphi 0, %s124
      %s127 = sphi 0, %s126
      %s141 = sphi 0, %s127
      %s145 = sphi 0, %s145
      %s147 = sphi 0, %s145
      %s148 = sphi 0, %s147
      %s162 = sphi 0, %s148
      %s166 = sphi 0, %s166
      %s168 = sphi 0, %s166
      %s169 = sphi 0, %s168
      %s183 = sphi 0, %s169
      %s189 = sphi 0, %s191
      %s192 = sphi 0, %s189
      %s193 = sphi 0, %s192
      %s209 = sphi 0, %s193
    $region4: #{tpu_custom_call.1} parent=1 // loop_header_branch
      %20 = sbr.rel (%p18) target = $region8
    $region5: #{tpu_custom_call.1} parent=1 // loop_body
      %s22 = ssub.s32 %s17, 1
      %s23 = ssub.s32 %s17, 2
      %s24 = sadd.s32 %s17, 1
      %s26 = sadd.s32 %s25, 1
      %p29 = scmp.eq.s32.totalorder %s17, 1
      %p30 = scmp.ne.s32.totalorder %s25, %s27
      %p31 = scmp.eq.s32.totalorder %s17, 0
      %p32 = por %p30, %p31
      %p33 = scmp.ne.s32.totalorder %s25, %s27
      %p34 = scmp.eq.s32.totalorder %s22, 1
      %p35 = por %p33, %p34
      %p36 = scmp.ne.s32.totalorder %s27, %s28
      %p37 = scmp.eq.s32.totalorder %s22, 0
      %p38 = por %p36, %p37
      %p39 = scmp.ne.s32.totalorder %s27, %s28
      %p40 = scmp.eq.s32.totalorder %s23, 1
      %p41 = por %p39, %p40
      %p43 = scmp.ne.s32.totalorder %s28, %s42
      %p44 = scmp.eq.s32.totalorder %s23, 0
      %p45 = por %p43, %p44
      %s46 = ssub.s32 %s17, %s24
      %p47 = scmp.eq.s32.totalorder %s46, 0
      %s49 = sadd.s32 %s48, 1
      %s50 = scalar_select %p47, %s48, %s49
      %p53 = pneg %p47
      %p54 = scmp.eq.s32.totalorder %s17, 1
      %p55 = por %p53, %p54
      %p56 = scmp.ne.s32.totalorder %s48, %s51
      %p57 = scmp.eq.s32.totalorder %s17, 0
      %p58 = por %p56, %p57
      %p59 = scmp.ne.s32.totalorder %s48, %s51
      %p60 = scmp.eq.s32.totalorder %s22, 1
      %p61 = por %p59, %p60
      %p62 = scmp.ne.s32.totalorder %s51, %s52
      %p63 = scmp.eq.s32.totalorder %s22, 0
      %p64 = por %p62, %p63
      %p65 = scmp.ne.s32.totalorder %s51, %s52
      %p66 = scmp.eq.s32.totalorder %s23, 1
      %p67 = por %p65, %p66
      %p69 = scmp.ne.s32.totalorder %s52, %s68
      %p70 = scmp.eq.s32.totalorder %s23, 0
      %p71 = por %p69, %p70
      %s72 = ssub.s32 %s17, %s24
      %p73 = scmp.eq.s32.totalorder %s72, 0
      %s75 = sadd.s32 %s74, 1
      %s76 = scalar_select %p73, %s74, %s75
      %p79 = pneg %p73
      %p80 = scmp.eq.s32.totalorder %s17, 1
      %p81 = por %p79, %p80
      %p82 = scmp.ne.s32.totalorder %s74, %s77
      %p83 = scmp.eq.s32.totalorder %s17, 0
      %p84 = por %p82, %p83
      %p85 = scmp.ne.s32.totalorder %s74, %s77
      %p86 = scmp.eq.s32.totalorder %s22, 1
      %p87 = por %p85, %p86
      %p88 = scmp.ne.s32.totalorder %s77, %s78
      %p89 = scmp.eq.s32.totalorder %s22, 0
      %p90 = por %p88, %p89
      %p91 = scmp.ne.s32.totalorder %s77, %s78
      %p92 = scmp.eq.s32.totalorder %s23, 1
      %p93 = por %p91, %p92
      %p95 = scmp.ne.s32.totalorder %s78, %s94
      %p96 = scmp.eq.s32.totalorder %s23, 0
      %p97 = por %p95, %p96
      %s98 = ssub.s32 %s17, %s24
      %p99 = scmp.eq.s32.totalorder %s98, 0
      %s101 = sadd.s32 %s100, 1
      %s102 = scalar_select %p99, %s100, %s101
      %p105 = pneg %p99
      %p106 = scmp.eq.s32.totalorder %s17, 1
      %p107 = por %p105, %p106
      %p108 = scmp.ne.s32.totalorder %s100, %s103
      %p109 = scmp.eq.s32.totalorder %s17, 0
      %p110 = por %p108, %p109
      %p111 = scmp.ne.s32.totalorder %s100, %s103
      %p112 = scmp.eq.s32.totalorder %s22, 1
      %p113 = por %p111, %p112
      %p114 = scmp.ne.s32.totalorder %s103, %s104
      %p115 = scmp.eq.s32.totalorder %s22, 0
      %p116 = por %p114, %p115
      %p117 = scmp.ne.s32.totalorder %s103, %s104
      %p118 = scmp.eq.s32.totalorder %s23, 1
      %p119 = por %p117, %p118
      %p121 = scmp.ne.s32.totalorder %s104, %s120
      %p122 = scmp.eq.s32.totalorder %s23, 0
      %p123 = por %p121, %p122
      %s125 = sadd.s32 %s124, 1
      %p128 = scmp.eq.s32.totalorder %s17, 1
      %p129 = scmp.ne.s32.totalorder %s124, %s126
      %p130 = scmp.eq.s32.totalorder %s17, 0
      %p131 = por %p129, %p130
      %p132 = scmp.ne.s32.totalorder %s124, %s126
      %p133 = scmp.eq.s32.totalorder %s22, 1
      %p134 = por %p132, %p133
      %p135 = scmp.ne.s32.totalorder %s126, %s127
      %p136 = scmp.eq.s32.totalorder %s22, 0
      %p137 = por %p135, %p136
      %p138 = scmp.ne.s32.totalorder %s126, %s127
      %p139 = scmp.eq.s32.totalorder %s23, 1
      %p140 = por %p138, %p139
      %p142 = scmp.ne.s32.totalorder %s127, %s141
      %p143 = scmp.eq.s32.totalorder %s23, 0
      %p144 = por %p142, %p143
      %s146 = sadd.s32 %s145, 1
      %p149 = scmp.eq.s32.totalorder %s17, 1
      %p150 = scmp.ne.s32.totalorder %s145, %s147
      %p151 = scmp.eq.s32.totalorder %s17, 0
      %p152 = por %p150, %p151
      %p153 = scmp.ne.s32.totalorder %s145, %s147
      %p154 = scmp.eq.s32.totalorder %s22, 1
      %p155 = por %p153, %p154
      %p156 = scmp.ne.s32.totalorder %s147, %s148
      %p157 = scmp.eq.s32.totalorder %s22, 0
      %p158 = por %p156, %p157
      %p159 = scmp.ne.s32.totalorder %s147, %s148
      %p160 = scmp.eq.s32.totalorder %s23, 1
      %p161 = por %p159, %p160
      %p163 = scmp.ne.s32.totalorder %s148, %s162
      %p164 = scmp.eq.s32.totalorder %s23, 0
      %p165 = por %p163, %p164
      %s167 = sadd.s32 %s166, 1
      %p170 = scmp.eq.s32.totalorder %s17, 1
      %p171 = scmp.ne.s32.totalorder %s166, %s168
      %p172 = scmp.eq.s32.totalorder %s17, 0
      %p173 = por %p171, %p172
      %p174 = scmp.ne.s32.totalorder %s166, %s168
      %p175 = scmp.eq.s32.totalorder %s22, 1
      %p176 = por %p174, %p175
      %p177 = scmp.ne.s32.totalorder %s168, %s169
      %p178 = scmp.eq.s32.totalorder %s22, 0
      %p179 = por %p177, %p178
      %p180 = scmp.ne.s32.totalorder %s168, %s169
      %p181 = scmp.eq.s32.totalorder %s23, 1
      %p182 = por %p180, %p181
      %p184 = scmp.ne.s32.totalorder %s169, %s183
      %p185 = scmp.eq.s32.totalorder %s23, 0
      %p186 = por %p184, %p185
      %s187 = ssub.s32 %s17, %s24
      %p188 = scmp.eq.s32.totalorder %s187, 0
      %s190 = sadd.s32 %s189, 1
      %s191 = scalar_select %p188, %s189, %s190
      %p194 = pneg %p188
      %p195 = scmp.eq.s32.totalorder %s17, 1
      %p196 = por %p194, %p195
      %p197 = scmp.ne.s32.totalorder %s189, %s192
      %p198 = scmp.eq.s32.totalorder %s17, 0
      %p199 = por %p197, %p198
      %p200 = scmp.ne.s32.totalorder %s189, %s192
      %p201 = scmp.eq.s32.totalorder %s22, 1
      %p202 = por %p200, %p201
      %p203 = scmp.ne.s32.totalorder %s192, %s193
      %p204 = scmp.eq.s32.totalorder %s22, 0
      %p205 = por %p203, %p204
      %p206 = scmp.ne.s32.totalorder %s192, %s193
      %p207 = scmp.eq.s32.totalorder %s23, 1
      %p208 = por %p206, %p207
      %p210 = scmp.ne.s32.totalorder %s193, %s209
      %p211 = scmp.eq.s32.totalorder %s23, 0
      %p212 = por %p210, %p211
      %p213 = scmp.le.s32.totalorder 1, %s17
      %p214 = scmp.lt.s32.totalorder %s17, 3
      %p215 = pnand %p213, %p214
      %p216 = pneg %p215
      // Predicated region
      $region9: #{tpu_custom_call.1} parent=5 // pred_check
        _
      $region10: #{tpu_custom_call.1} parent=5 // pred_check_branch
        %218 = sbr.rel (%p215) target = $region12
      $region11: #{tpu_custom_call.1} parent=5 // pred_region
        %s219 = ssub.s32 %s17, 1
        // Predicated region
        $region13: #{tpu_custom_call.1} parent=11 // pred_check
          %p220 = pneg %p38
        $region14: #{tpu_custom_call.1} parent=11 // pred_check_branch
          %222 = sbr.rel (%p220) target = $region16
        $region15: #{tpu_custom_call.1} parent=11 // pred_region
          %s224 = ssub.s32 16, 16
          %225 = vsyncadd [#allocation4], %s224
          %s227 = sshll.u32 %s0, 4
          %s228 = int_to_ptr.vmem [resolvable:$true] %s227
          %230 = dma.vmem_to_smem %s228, 16, [#allocation2], [#allocation4]
        $region16: #{tpu_custom_call.1} parent=11 // pred_fallthru
          _
        // Predicated region
        $region17: #{tpu_custom_call.1} parent=11 // pred_check
          %p231 = pneg %p137
        $region18: #{tpu_custom_call.1} parent=11 // pred_check_branch
          %233 = sbr.rel (%p231) target = $region20
        $region19: #{tpu_custom_call.1} parent=11 // pred_region
          _
        $region20: #{tpu_custom_call.1} parent=11 // pred_fallthru
          _
        // Predicated region
        $region21: #{tpu_custom_call.1} parent=11 // pred_check
          %p234 = pneg %p158
        $region22: #{tpu_custom_call.1} parent=11 // pred_check_branch
          %236 = sbr.rel (%p234) target = $region24
        $region23: #{tpu_custom_call.1} parent=11 // pred_region
          _
        $region24: #{tpu_custom_call.1} parent=11 // pred_fallthru
          _
        // Predicated region
        $region25: #{tpu_custom_call.1} parent=11 // pred_check
          %p237 = pneg %p179
        $region26: #{tpu_custom_call.1} parent=11 // pred_check_branch
          %239 = sbr.rel (%p237) target = $region28
        $region27: #{tpu_custom_call.1} parent=11 // pred_region
          _
        $region28: #{tpu_custom_call.1} parent=11 // pred_fallthru
          _
      $region12: #{tpu_custom_call.1} parent=5 // pred_fallthru
        _
      %p240 = scmp.lt.s32.totalorder %s17, 2
      // Predicated region
      $region29: #{tpu_custom_call.1} parent=5 // pred_check
        %p241 = pneg %p240
      $region30: #{tpu_custom_call.1} parent=5 // pred_check_branch
        %243 = sbr.rel (%p241) target = $region32
      $region31: #{tpu_custom_call.1} parent=5 // pred_region
        // Predicated region
        $region33: #{tpu_custom_call.1} parent=31 // pred_check
          %p244 = pneg %p58
        $region34: #{tpu_custom_call.1} parent=31 // pred_check_branch
          %246 = sbr.rel (%p244) target = $region36
        $region35: #{tpu_custom_call.1} parent=31 // pred_region
          %p247 = scmp.lt.s32.totalorder %s17, 1
          %s248 = scalar_select %p247, %s17, 1
          %s249 = smul.addr %s248, 8
          %s250 = scalar_lea.vmem %s1, %s249
        $region36: #{tpu_custom_call.1} parent=31 // pred_fallthru
          _
        // Predicated region
        $region37: #{tpu_custom_call.1} parent=31 // pred_check
          %p251 = pneg %p84
        $region38: #{tpu_custom_call.1} parent=31 // pred_check_branch
          %253 = sbr.rel (%p251) target = $region40
        $region39: #{tpu_custom_call.1} parent=31 // pred_region
          %p254 = scmp.lt.s32.totalorder %s17, 1
          %s255 = scalar_select %p254, %s17, 1
          %s256 = smul.addr %s255, 8
          %s257 = scalar_lea.vmem %s2, %s256
        $region40: #{tpu_custom_call.1} parent=31 // pred_fallthru
          _
        // Predicated region
        $region41: #{tpu_custom_call.1} parent=31 // pred_check
          %p258 = pneg %p110
        $region42: #{tpu_custom_call.1} parent=31 // pred_check_branch
          %260 = sbr.rel (%p258) target = $region44
        $region43: #{tpu_custom_call.1} parent=31 // pred_region
          %p261 = scmp.lt.s32.totalorder %s17, 1
          %s262 = scalar_select %p261, %s17, 1
          %s263 = smul.addr %s262, 8
          %s264 = scalar_lea.vmem %s3, %s263
        $region44: #{tpu_custom_call.1} parent=31 // pred_fallthru
          _
      $region32: #{tpu_custom_call.1} parent=5 // pred_fallthru
        _
      %p265 = scmp.le.s32.totalorder 1, %s17
      %p266 = scmp.lt.s32.totalorder %s17, 3
      %p267 = pnand %p265, %p266
      %p268 = pneg %p267
      // Predicated region
      $region45: #{tpu_custom_call.1} parent=5 // pred_check
        _
      $region46: #{tpu_custom_call.1} parent=5 // pred_check_branch
        %270 = sbr.rel (%p267) target = $region48
      $region47: #{tpu_custom_call.1} parent=5 // pred_region
        %s271 = ssub.s32 %s17, 1
        // Predicated region
        $region49: #{tpu_custom_call.1} parent=47 // pred_check
          %p272 = pneg %p38
        $region50: #{tpu_custom_call.1} parent=47 // pred_check_branch
          %274 = sbr.rel (%p272) target = $region52
        $region51: #{tpu_custom_call.1} parent=47 // pred_region
          %275 = dma.done [#allocation4], 16
        $region52: #{tpu_custom_call.1} parent=47 // pred_fallthru
          _
        %276 = sfence
        %p277 = pneg %p38
        %p278 = pneg %p35
        %p279 = scmp.lt.s32.totalorder %s22, 1
        %s280 = scalar_select %p279, %s22, 1
        %s281 = smul.addr %s280, 8
        %s282 = scalar_lea.vmem %s1, %s281
        %p283 = pneg %p64
        %p284 = pneg %p61
        %p285 = scmp.lt.s32.totalorder %s22, 1
        %s286 = scalar_select %p285, %s22, 1
        %s287 = smul.addr %s286, 8
        %s288 = scalar_lea.vmem %s2, %s287
        %p289 = pneg %p90
        %p290 = pneg %p87
        %p291 = scmp.lt.s32.totalorder %s22, 1
        %s292 = scalar_select %p291, %s22, 1
        %s293 = smul.addr %s292, 8
        %s294 = scalar_lea.vmem %s3, %s293
        %p295 = pneg %p116
        %p296 = pneg %p113
        %p297 = pneg %p137
        %p298 = pneg %p134
        %p299 = pneg %p158
        %p300 = pneg %p155
        %p301 = pneg %p179
        %p302 = pneg %p176
        %p303 = pneg %p205
        %p304 = pneg %p202
        %s305 = sand.u32 %s192, 1
        %s306 = scalar_lea.sflag [#allocation3], %s305
        %s307 = sand.u32 %s192, 1
        %s308 = smul.addr %s307, 8
        %s309 = scalar_lea.vmem [#allocation5], %s308
        %p310 = scmp.lt.s32.totalorder %s22, 1
        %s311 = scalar_select %p310, %s22, 1
        %s312 = smul.addr %s311, 8
        %s313 = scalar_lea.vmem %s1, %s312
        %p314 = scmp.lt.s32.totalorder %s22, 1
        %s315 = scalar_select %p314, %s22, 1
        %s316 = smul.addr %s315, 8
        %s317 = scalar_lea.vmem %s2, %s316
        %p318 = scmp.lt.s32.totalorder %s22, 1
        %s319 = scalar_select %p318, %s22, 1
        %s320 = smul.addr %s319, 8
        %s321 = scalar_lea.vmem %s3, %s320
        %v322 = vld [vmem:[%s313] sm:$0xff]
        %v323 = vld [vmem:[%s317] sm:$0xff]
        %v324 = vld [vmem:[%s321] sm:$0xff]
        %v325 = vld [vmem:[%s4] sm:$0xff]
        %v326 = vld [vmem:[%s4 + $0x8] sm:$0xff]
        %v327 = vld [vmem:[%s4 + $0x10] sm:$0xff]
        %v328 = vld [vmem:[%s4 + $0x18] sm:$0xff]
        %v329 = vld [vmem:[%s4 + $0x20] sm:$0xff]
        %v330 = vld [vmem:[%s4 + $0x28] sm:$0xff]
        %v331 = vld [vmem:[%s4 + $0x30] sm:$0xff]
        %v332 = vld [vmem:[%s4 + $0x38] sm:$0xff]
        %v333 = vld [vmem:[%s4 + $0x40] sm:$0xff]
        %v334 = vld [vmem:[%s4 + $0x48] sm:$0xff]
        %v335 = vld [vmem:[%s4 + $0x50] sm:$0xff]
        %v336 = vld [vmem:[%s4 + $0x58] sm:$0xff]
        %vm337 = vcmask 261120
        %v339 = vsel %vm337, %v322, 0
        %341 = vmatprep.subr.mxu0 0.0
        %342 = vmatpush1.msra.mxu0 0.0
        %343 = vmatprep.subr.mxu0 0.0
        %344 = vmatpush1.msra.mxu0 0.0
        %345 = vmatprep.subr.mxu0 0.0
        %346 = vmatpush1.msra.mxu0 0.0
        %347 = vmatprep.subr.mxu0 0.0
        %348 = vmatpush1.msra.mxu0 0.0
        %349 = vmatprep.subr.mxu0 0.0
        %350 = vmatpush1.msra.mxu0 0.0
        %351 = vmatprep.subr.mxu0 0.0
        %352 = vmatpush1.msra.mxu0 0.0
        %353 = vmatprep.subr.mxu0 0.0
        %354 = vmatpush1.msra.mxu0 0.0
        %355 = vmatprep.subr.mxu0 0.0
        %356 = vmatpush1.msra.mxu0 0.0
        %357 = vmatprep.subr.mxu0 0.0
        %358 = vmatpush1.msra.mxu0 0.0
        %359 = vmatprep.subr.mxu0 0.0
        %360 = vmatpush1.msra.mxu0 0.0
        %361 = vmatprep.subr.mxu0 0.0
        %362 = vmatpush1.msra.mxu0 0.0
        %363 = vmatprep.subr.mxu0 0.0
        %364 = vmatpush1.msra.mxu0 0.0
        %365 = vmatprep.subr.mxu0 %v335
        %366 = vmatpush1.msra.mxu0 %v334
        %367 = vmatprep.subr.mxu0 %v332
        %368 = vmatpush1.msra.mxu0 %v331
        %369 = vmatprep.subr.mxu0 %v329
        %370 = vmatpush1.msra.mxu0 %v328
        %371 = vmatprep.subr.mxu0 %v326
        %372 = vmatpush1.msra.mxu0 %v325
        %373 = vmatprep.subr.mxu0 0.0
        %374 = vmatpush2.msra.mxu0 0.0
        %375 = vmatprep.subr.mxu0 0.0
        %376 = vmatpush2.msra.mxu0 0.0
        %377 = vmatprep.subr.mxu0 0.0
        %378 = vmatpush2.msra.mxu0 0.0
        %379 = vmatprep.subr.mxu0 0.0
        %380 = vmatpush2.msra.mxu0 0.0
        %381 = vmatprep.subr.mxu0 0.0
        %382 = vmatpush2.msra.mxu0 0.0
        %383 = vmatprep.subr.mxu0 0.0
        %384 = vmatpush2.msra.mxu0 0.0
        %385 = vmatprep.subr.mxu0 0.0
        %386 = vmatpush2.msra.mxu0 0.0
        %387 = vmatprep.subr.mxu0 0.0
        %388 = vmatpush2.msra.mxu0 0.0
        %389 = vmatprep.subr.mxu0 0.0
        %390 = vmatpush2.msra.mxu0 0.0
        %391 = vmatprep.subr.mxu0 0.0
        %392 = vmatpush2.msra.mxu0 0.0
        %393 = vmatprep.subr.mxu0 0.0
        %394 = vmatpush2.msra.mxu0 0.0
        %395 = vmatprep.subr.mxu0 0.0
        %396 = vmatpush2.msra.mxu0 0.0
        %397 = vmatprep.subr.mxu0 0.0
        %398 = vmatpush2.msra.mxu0 0.0
        %399 = vmatprep.subr.mxu0 0.0
        %400 = vmatpush2.msra.mxu0 0.0
        %401 = vmatprep.subr.mxu0 0.0
        %402 = vmatpush2.msra.mxu0 0.0
        %403 = vmatprep.subr.mxu0 0.0
        %404 = vmatpush2.msra.mxu0 0.0
        %405 = vmatprep.mubr.f32.mxu0 0.0
        %406 = vmatmul.mubr.f32.gmra.mxu0 %v339
        %v407 = vpop.f32.mrf.mxu0
        %v408 = vadd.f32 0.0, %v407
        %v409 = vpop.f32.mrf.mxu0
        %v410 = vadd.f32 0.0, %v409
        %411 = vdwg.mxu0
        %412 = vmatprep.subr.mxu0 0.0
        %413 = vmatpush1.msra.mxu0 0.0
        %414 = vmatprep.subr.mxu0 0.0
        %415 = vmatpush1.msra.mxu0 0.0
        %416 = vmatprep.subr.mxu0 0.0
        %417 = vmatpush1.msra.mxu0 0.0
        %418 = vmatprep.subr.mxu0 0.0
        %419 = vmatpush1.msra.mxu0 0.0
        %420 = vmatprep.subr.mxu0 0.0
        %421 = vmatpush1.msra.mxu0 0.0
        %422 = vmatprep.subr.mxu0 0.0
        %423 = vmatpush1.msra.mxu0 0.0
        %424 = vmatprep.subr.mxu0 0.0
        %425 = vmatpush1.msra.mxu0 0.0
        %426 = vmatprep.subr.mxu0 0.0
        %427 = vmatpush1.msra.mxu0 0.0
        %428 = vmatprep.subr.mxu0 0.0
        %429 = vmatpush1.msra.mxu0 0.0
        %430 = vmatprep.subr.mxu0 0.0
        %431 = vmatpush1.msra.mxu0 0.0
        %432 = vmatprep.subr.mxu0 0.0
        %433 = vmatpush1.msra.mxu0 0.0
        %434 = vmatprep.subr.mxu0 0.0
        %435 = vmatpush1.msra.mxu0 0.0
        %436 = vmatprep.subr.mxu0 0.0
        %437 = vmatpush1.msra.mxu0 %v336
        %438 = vmatprep.subr.mxu0 0.0
        %439 = vmatpush1.msra.mxu0 %v333
        %440 = vmatprep.subr.mxu0 0.0
        %441 = vmatpush1.msra.mxu0 %v330
        %442 = vmatprep.subr.mxu0 0.0
        %443 = vmatpush1.msra.mxu0 %v327
        %444 = vmatprep.subr.mxu0 0.0
        %445 = vmatpush2.msra.mxu0 0.0
        %446 = vmatprep.subr.mxu0 0.0
        %447 = vmatpush2.msra.mxu0 0.0
        %448 = vmatprep.subr.mxu0 0.0
        %449 = vmatpush2.msra.mxu0 0.0
        %450 = vmatprep.subr.mxu0 0.0
        %451 = vmatpush2.msra.mxu0 0.0
        %452 = vmatprep.subr.mxu0 0.0
        %453 = vmatpush2.msra.mxu0 0.0
        %454 = vmatprep.subr.mxu0 0.0
        %455 = vmatpush2.msra.mxu0 0.0
        %456 = vmatprep.subr.mxu0 0.0
        %457 = vmatpush2.msra.mxu0 0.0
        %458 = vmatprep.subr.mxu0 0.0
        %459 = vmatpush2.msra.mxu0 0.0
        %460 = vmatprep.subr.mxu0 0.0
        %461 = vmatpush2.msra.mxu0 0.0
        %462 = vmatprep.subr.mxu0 0.0
        %463 = vmatpush2.msra.mxu0 0.0
        %464 = vmatprep.subr.mxu0 0.0
        %465 = vmatpush2.msra.mxu0 0.0
        %466 = vmatprep.subr.mxu0 0.0
        %467 = vmatpush2.msra.mxu0 0.0
        %468 = vmatprep.subr.mxu0 0.0
        %469 = vmatpush2.msra.mxu0 0.0
        %470 = vmatprep.subr.mxu0 0.0
        %471 = vmatpush2.msra.mxu0 0.0
        %472 = vmatprep.subr.mxu0 0.0
        %473 = vmatpush2.msra.mxu0 0.0
        %474 = vmatprep.subr.mxu0 0.0
        %475 = vmatpush2.msra.mxu0 0.0
        %476 = vmatprep.mubr.f32.mxu0 0.0
        %477 = vmatmul.mubr.f32.gmra.mxu0 %v339
        %v478 = vpop.f32.mrf.mxu0
        %v479 = vadd.f32 0.0, %v478
        %v480 = vpop.f32.mrf.mxu0
        %481 = vdwg.mxu0
        %s482 = sld [smem:[#allocation2]]
        %484 = vset.pattern.permute.xlu0 0
        %485 = vperm.xlu0 %484, %v323
        %v486 = vpop.permute.xlu0 %485
        %v488 = vmul.f32 %v486, %v408
        %490 = vset.pattern.permute.xlu0 0
        %491 = vperm.xlu0 %490, %v324
        %v492 = vpop.permute.xlu0 %491
        %v494 = vadd.f32 %v492, %v488
        %495 = vset.pattern.permute.xlu0 1
        %496 = vperm.xlu0 %495, %v323
        %v497 = vpop.permute.xlu0 %496
        %v499 = vmul.f32 %v497, %v408
        %501 = vrot.lane.b32.xlu0 %v499, 124
        %v502 = vpop.permute.xlu0 %501
        %v504 = vadd.f32 %v494, %v502
        %505 = vset.pattern.permute.xlu0 2
        %506 = vperm.xlu0 %505, %v323
        %v507 = vpop.permute.xlu0 %506
        %v509 = vmul.f32 %v507, %v408
        %511 = vrot.lane.b32.xlu0 %v509, 120
        %v512 = vpop.permute.xlu0 %511
        %v514 = vadd.f32 %v504, %v512
        %515 = vset.pattern.permute.xlu0 3
        %516 = vperm.xlu0 %515, %v323
        %v517 = vpop.permute.xlu0 %516
        %v519 = vmul.f32 %v517, %v408
        %520 = vset.pattern.permute.xlu0 1
        %521 = vperm.xlu0 %520, %v324
        %v522 = vpop.permute.xlu0 %521
        %v524 = vadd.f32 %v522, %v519
        %525 = vset.pattern.permute.xlu0 4
        %526 = vperm.xlu0 %525, %v323
        %v527 = vpop.permute.xlu0 %526
        %v529 = vmul.f32 %v527, %v408
        %531 = vrot.lane.b32.xlu0 %v529, 124
        %v532 = vpop.permute.xlu0 %531
        %v534 = vadd.f32 %v524, %v532
        %535 = vset.pattern.permute.xlu0 5
        %536 = vperm.xlu0 %535, %v323
        %v537 = vpop.permute.xlu0 %536
        %v539 = vmul.f32 %v537, %v408
        %541 = vrot.lane.b32.xlu0 %v539, 120
        %v542 = vpop.permute.xlu0 %541
        %v544 = vadd.f32 %v534, %v542
        %545 = vset.pattern.permute.xlu0 6
        %546 = vperm.xlu0 %545, %v323
        %v547 = vpop.permute.xlu0 %546
        %v549 = vmul.f32 %v547, %v408
        %550 = vset.pattern.permute.xlu0 2
        %551 = vperm.xlu0 %550, %v324
        %v552 = vpop.permute.xlu0 %551
        %v554 = vadd.f32 %v552, %v549
        %555 = vset.pattern.permute.xlu0 7
        %556 = vperm.xlu0 %555, %v323
        %v557 = vpop.permute.xlu0 %556
        %v559 = vmul.f32 %v557, %v408
        %561 = vrot.lane.b32.xlu0 %v559, 124
        %v562 = vpop.permute.xlu0 %561
        %v564 = vadd.f32 %v554, %v562
        %565 = vset.pattern.permute.xlu0 8
        %566 = vperm.xlu0 %565, %v323
        %v567 = vpop.permute.xlu0 %566
        %v569 = vmul.f32 %v567, %v408
        %571 = vrot.lane.b32.xlu0 %v569, 120
        %v572 = vpop.permute.xlu0 %571
        %v574 = vadd.f32 %v564, %v572
        %576 = vrot.lane.b32.xlu0 %v514, 80
        %v577 = vpop.permute.xlu0 %576
        %580 = vrot.lane.b32.xlu0 %v544, 84
        %v581 = vpop.permute.xlu0 %580
        %584 = vrot.lane.b32.xlu0 %v574, 88
        %v585 = vpop.permute.xlu0 %584
        %vm587 = vcmask 31744
        %v588 = vsel %vm587, %v577, %v581
        %vm589 = vcmask 64512
        %v590 = vsel %vm589, %v588, %v585
        %v591 = vstv %s482
        %v592 = vmul.f32 %v590, %v591
        %593 = vrot.lane.b32.xlu0 %v514, 68
        %v594 = vpop.permute.xlu0 %593
        %596 = vrot.lane.b32.xlu0 %v544, 72
        %v597 = vpop.permute.xlu0 %596
        %599 = vrot.lane.b32.xlu0 %v574, 76
        %v600 = vpop.permute.xlu0 %599
        %v602 = vsel %vm587, %v594, %v597
        %v603 = vsel %vm589, %v602, %v600
        %v604 = vmul.f32 %v603, %v591
        %605 = vrot.lane.b32.xlu0 %v514, 56
        %v606 = vpop.permute.xlu0 %605
        %608 = vrot.lane.b32.xlu0 %v544, 60
        %v609 = vpop.permute.xlu0 %608
        %611 = vrot.lane.b32.xlu0 %v574, 64
        %v612 = vpop.permute.xlu0 %611
        %v614 = vsel %vm587, %v606, %v609
        %v615 = vsel %vm589, %v614, %v612
        %v616 = vmul.f32 %v604, %v604
        %vm617 = vcmask 97280
        %v618 = vsel %vm617, %v616, 0.0
        %619 = vadd.xlane.f32.xlu0 %v618
        %v620 = vpop.xlane.xlu0 %619
        %v621 = vmul.f32 %v408, 0.17677669
        %623 = vrot.lane.b32.xlu0 %v592, 16
        %v624 = vpop.permute.xlu0 %623
        %vm626 = vcmask 130048
        %v627 = vsel %vm626, %v621, %v624
        %vm628 = vcmask 228352
        %v629 = vsel %vm628, %v627, -0.5
        %631 = vrot.lane.b32.xlu0 %v408, 112
        %v632 = vpop.permute.xlu0 %631
        %635 = vrot.lane.b32.xlu0 %v604, 16
        %v636 = vpop.permute.xlu0 %635
        %v638 = vsel %vm626, %v632, %v636
        %v639 = vsel %vm628, %v638, %v620
        %vm640 = vcmask 236544
        %v642 = vsel %vm640, %v629, 0
        %v645 = vsel %vm640, %v639, 0
        %647 = vmatprep.subr.mxu0 0.0
        %648 = vmatpush1.xpose.msra.mxu0 0.0
        %649 = vmatprep.subr.mxu0 0.0
        %650 = vmatpush1.xpose.msra.mxu0 0.0
        %651 = vmatprep.subr.mxu0 0.0
        %652 = vmatpush1.xpose.msra.mxu0 0.0
        %653 = vmatprep.subr.mxu0 0.0
        %654 = vmatpush1.xpose.msra.mxu0 0.0
        %655 = vmatprep.subr.mxu0 0.0
        %656 = vmatpush1.xpose.msra.mxu0 0.0
        %657 = vmatprep.subr.mxu0 0.0
        %658 = vmatpush1.xpose.msra.mxu0 0.0
        %659 = vmatprep.subr.mxu0 0.0
        %660 = vmatpush1.xpose.msra.mxu0 0.0
        %661 = vmatprep.subr.mxu0 0.0
        %662 = vmatpush1.xpose.msra.mxu0 0.0
        %663 = vmatprep.subr.mxu0 0.0
        %664 = vmatpush1.xpose.msra.mxu0 0.0
        %665 = vmatprep.subr.mxu0 0.0
        %666 = vmatpush1.xpose.msra.mxu0 0.0
        %667 = vmatprep.subr.mxu0 0.0
        %668 = vmatpush1.xpose.msra.mxu0 0.0
        %669 = vmatprep.subr.mxu0 0.0
        %670 = vmatpush1.xpose.msra.mxu0 0.0
        %671 = vmatprep.subr.mxu0 0.0
        %672 = vmatpush1.xpose.msra.mxu0 0.0
        %673 = vmatprep.subr.mxu0 0.0
        %674 = vmatpush1.xpose.msra.mxu0 0.0
        %675 = vmatprep.subr.mxu0 0.0
        %676 = vmatpush1.xpose.msra.mxu0 0.0
        %677 = vmatprep.subr.mxu0 0.0
        %678 = vmatpush1.xpose.msra.mxu0 %v645
        %679 = vmatprep.subr.mxu0 0.0
        %680 = vmatpush2.xpose.msra.mxu0 0.0
        %681 = vmatprep.subr.mxu0 0.0
        %682 = vmatpush2.xpose.msra.mxu0 0.0
        %683 = vmatprep.subr.mxu0 0.0
        %684 = vmatpush2.xpose.msra.mxu0 0.0
        %685 = vmatprep.subr.mxu0 0.0
        %686 = vmatpush2.xpose.msra.mxu0 0.0
        %687 = vmatprep.subr.mxu0 0.0
        %688 = vmatpush2.xpose.msra.mxu0 0.0
        %689 = vmatprep.subr.mxu0 0.0
        %690 = vmatpush2.xpose.msra.mxu0 0.0
        %691 = vmatprep.subr.mxu0 0.0
        %692 = vmatpush2.xpose.msra.mxu0 0.0
        %693 = vmatprep.subr.mxu0 0.0
        %694 = vmatpush2.xpose.msra.mxu0 0.0
        %695 = vmatprep.subr.mxu0 0.0
        %696 = vmatpush2.xpose.msra.mxu0 0.0
        %697 = vmatprep.subr.mxu0 0.0
        %698 = vmatpush2.xpose.msra.mxu0 0.0
        %699 = vmatprep.subr.mxu0 0.0
        %700 = vmatpush2.xpose.msra.mxu0 0.0
        %701 = vmatprep.subr.mxu0 0.0
        %702 = vmatpush2.xpose.msra.mxu0 0.0
        %703 = vmatprep.subr.mxu0 0.0
        %704 = vmatpush2.xpose.msra.mxu0 0.0
        %705 = vmatprep.subr.mxu0 0.0
        %706 = vmatpush2.xpose.msra.mxu0 0.0
        %707 = vmatprep.subr.mxu0 0.0
        %708 = vmatpush2.xpose.msra.mxu0 0.0
        %709 = vmatprep.subr.mxu0 0.0
        %710 = vmatpush2.xpose.msra.mxu0 0.0
        %711 = vmatprep.mubr.f32.mxu0 0.0
        %712 = vmatmul.mubr.f32.gmra.mxu0 %v642
        %v713 = vpop.f32.mrf.mxu0
        %v714 = vadd.f32 0.0, %v713
        %v715 = vpop.f32.mrf.mxu0
        %716 = vdwg.mxu0
        %v717 = vsel %vm589, %v714, -inf
        %718 = vmax.xlane.f32.xlu0 %v717
        %v719 = vpop.xlane.xlu0 %718
        %v720 = vsub.f32 %v714, %v719
        %v721 = vmul.f32 %v720, 1.442695
        %v722 = vpow.pop %v721
        %v723 = vsel %vm589, %v722, 0.0
        %724 = vadd.xlane.f32.xlu0 %v723
        %v725 = vpop.xlane.xlu0 %724
        %v726 = vrcp.pop %v725
        %v727 = vmul.f32 1.0, %v726
        %728 = vrot.lane.b32.xlu0 %v408, 96
        %v729 = vpop.permute.xlu0 %728
        %732 = vrot.lane.b32.xlu0 %v615, 16
        %v733 = vpop.permute.xlu0 %732
        %v735 = vsel %vm626, %v729, %v733
        %v737 = vsel %vm589, %v722, 0
        %739 = vmatprep.subr.mxu0 0.0
        %740 = vmatpush1.msra.mxu0 0.0
        %741 = vmatprep.subr.mxu0 0.0
        %742 = vmatpush1.msra.mxu0 0.0
        %743 = vmatprep.subr.mxu0 0.0
        %744 = vmatpush1.msra.mxu0 0.0
        %745 = vmatprep.subr.mxu0 0.0
        %746 = vmatpush1.msra.mxu0 0.0
        %747 = vmatprep.subr.mxu0 0.0
        %748 = vmatpush1.msra.mxu0 0.0
        %749 = vmatprep.subr.mxu0 0.0
        %750 = vmatpush1.msra.mxu0 0.0
        %751 = vmatprep.subr.mxu0 0.0
        %752 = vmatpush1.msra.mxu0 0.0
        %753 = vmatprep.subr.mxu0 0.0
        %754 = vmatpush1.msra.mxu0 0.0
        %755 = vmatprep.subr.mxu0 0.0
        %756 = vmatpush1.msra.mxu0 0.0
        %757 = vmatprep.subr.mxu0 0.0
        %758 = vmatpush1.msra.mxu0 0.0
        %759 = vmatprep.subr.mxu0 0.0
        %760 = vmatpush1.msra.mxu0 0.0
        %761 = vmatprep.subr.mxu0 0.0
        %762 = vmatpush1.msra.mxu0 0.0
        %763 = vmatprep.subr.mxu0 0.0
        %764 = vmatpush1.msra.mxu0 0.0
        %765 = vmatprep.subr.mxu0 0.0
        %766 = vmatpush1.msra.mxu0 0.0
        %767 = vmatprep.subr.mxu0 0.0
        %768 = vmatpush1.msra.mxu0 0.0
        %769 = vmatprep.subr.mxu0 0.0
        %770 = vmatpush1.msra.mxu0 %v735
        %771 = vmatprep.subr.mxu0 0.0
        %772 = vmatpush2.msra.mxu0 0.0
        %773 = vmatprep.subr.mxu0 0.0
        %774 = vmatpush2.msra.mxu0 0.0
        %775 = vmatprep.subr.mxu0 0.0
        %776 = vmatpush2.msra.mxu0 0.0
        %777 = vmatprep.subr.mxu0 0.0
        %778 = vmatpush2.msra.mxu0 0.0
        %779 = vmatprep.subr.mxu0 0.0
        %780 = vmatpush2.msra.mxu0 0.0
        %781 = vmatprep.subr.mxu0 0.0
        %782 = vmatpush2.msra.mxu0 0.0
        %783 = vmatprep.subr.mxu0 0.0
        %784 = vmatpush2.msra.mxu0 0.0
        %785 = vmatprep.subr.mxu0 0.0
        %786 = vmatpush2.msra.mxu0 0.0
        %787 = vmatprep.subr.mxu0 0.0
        %788 = vmatpush2.msra.mxu0 0.0
        %789 = vmatprep.subr.mxu0 0.0
        %790 = vmatpush2.msra.mxu0 0.0
        %791 = vmatprep.subr.mxu0 0.0
        %792 = vmatpush2.msra.mxu0 0.0
        %793 = vmatprep.subr.mxu0 0.0
        %794 = vmatpush2.msra.mxu0 0.0
        %795 = vmatprep.subr.mxu0 0.0
        %796 = vmatpush2.msra.mxu0 0.0
        %797 = vmatprep.subr.mxu0 0.0
        %798 = vmatpush2.msra.mxu0 0.0
        %799 = vmatprep.subr.mxu0 0.0
        %800 = vmatpush2.msra.mxu0 0.0
        %801 = vmatprep.subr.mxu0 0.0
        %802 = vmatpush2.msra.mxu0 0.0
        %803 = vmatprep.mubr.f32.mxu0 0.0
        %804 = vmatmul.mubr.f32.gmra.mxu0 %v737
        %v805 = vpop.f32.mrf.mxu0
        %v806 = vadd.f32 0.0, %v805
        %v807 = vpop.f32.mrf.mxu0
        %808 = vdwg.mxu0
        %v809 = vmul.f32 %v806, %v727
        %v810 = vsub.f32 %v809, %v492
        %v811 = vsub.f32 %v809, %v522
        %v812 = vsub.f32 %v809, %v552
        %v813 = vmul.f32 %v486, %v810
        %v814 = vmul.f32 %v517, %v811
        %816 = vrot.lane.b32.xlu0 %v814, 124
        %v817 = vpop.permute.xlu0 %816
        %v819 = vadd.f32 %v813, %v817
        %v820 = vmul.f32 %v547, %v812
        %822 = vrot.lane.b32.xlu0 %v820, 120
        %v823 = vpop.permute.xlu0 %822
        %v825 = vadd.f32 %v819, %v823
        %v826 = vmul.f32 %v497, %v810
        %v827 = vmul.f32 %v527, %v811
        %829 = vrot.lane.b32.xlu0 %v827, 124
        %v830 = vpop.permute.xlu0 %829
        %v832 = vadd.f32 %v826, %v830
        %v833 = vmul.f32 %v557, %v812
        %835 = vrot.lane.b32.xlu0 %v833, 120
        %v836 = vpop.permute.xlu0 %835
        %v838 = vadd.f32 %v832, %v836
        %v839 = vmul.f32 %v507, %v810
        %v840 = vmul.f32 %v537, %v811
        %842 = vrot.lane.b32.xlu0 %v840, 124
        %v843 = vpop.permute.xlu0 %842
        %v845 = vadd.f32 %v839, %v843
        %v846 = vmul.f32 %v567, %v812
        %848 = vrot.lane.b32.xlu0 %v846, 120
        %v849 = vpop.permute.xlu0 %848
        %v851 = vadd.f32 %v845, %v849
        %v852 = vmul.f32 %v825, %v825
        %v853 = vmul.f32 %v838, %v838
        %v854 = vadd.f32 %v852, %v853
        %v855 = vmul.f32 %v851, %v851
        %v856 = vadd.f32 %v854, %v855
        %v857 = vadd.f32 %v856, 1e-08
        %v858 = vrsqrt.pop %v857
        %v859 = vmul.f32 %v857, %v858
        %vm860 = vcmp.eq.f32.partialorder %v857, inf
        %v861 = vsel %vm860, %v857, %v859
        %vm862 = vcmp.eq.f32.partialorder %v857, 0.0
        %v863 = vand.u32 %v857, 2147483648
        %v864 = vsel %vm862, %v863, %v861
        %s865 = sld [smem:[#allocation2 + $0x1]]
        %v866 = vmul.f32 %v486, %v410
        %v867 = vadd.f32 %v492, %v866
        %v868 = vmul.f32 %v497, %v410
        %870 = vrot.lane.b32.xlu0 %v868, 124
        %v871 = vpop.permute.xlu0 %870
        %v873 = vadd.f32 %v867, %v871
        %v874 = vmul.f32 %v507, %v410
        %876 = vrot.lane.b32.xlu0 %v874, 120
        %v877 = vpop.permute.xlu0 %876
        %v879 = vadd.f32 %v873, %v877
        %v880 = vmul.f32 %v517, %v410
        %v881 = vadd.f32 %v522, %v880
        %v882 = vmul.f32 %v527, %v410
        %884 = vrot.lane.b32.xlu0 %v882, 124
        %v885 = vpop.permute.xlu0 %884
        %v887 = vadd.f32 %v881, %v885
        %v888 = vmul.f32 %v537, %v410
        %890 = vrot.lane.b32.xlu0 %v888, 120
        %v891 = vpop.permute.xlu0 %890
        %v893 = vadd.f32 %v887, %v891
        %v894 = vmul.f32 %v547, %v410
        %v895 = vadd.f32 %v552, %v894
        %v896 = vmul.f32 %v557, %v410
        %898 = vrot.lane.b32.xlu0 %v896, 124
        %v899 = vpop.permute.xlu0 %898
        %v901 = vadd.f32 %v895, %v899
        %v902 = vmul.f32 %v567, %v410
        %904 = vrot.lane.b32.xlu0 %v902, 120
        %v905 = vpop.permute.xlu0 %904
        %v907 = vadd.f32 %v901, %v905
        %909 = vrot.lane.b32.xlu0 %v879, 124
        %v910 = vpop.permute.xlu0 %909
        %913 = vrot.lane.b32.xlu0 %v907, 4
        %v914 = vpop.permute.xlu0 %913
        %v916 = vsel %vm587, %v910, %v893
        %v917 = vsel %vm589, %v916, %v914
        %v918 = vstv %s865
        %v919 = vmul.f32 %v917, %v918
        %920 = vrot.lane.b32.xlu0 %v879, 112
        %v921 = vpop.permute.xlu0 %920
        %924 = vrot.lane.b32.xlu0 %v893, 116
        %v925 = vpop.permute.xlu0 %924
        %927 = vrot.lane.b32.xlu0 %v907, 120
        %v928 = vpop.permute.xlu0 %927
        %v930 = vsel %vm587, %v921, %v925
        %v931 = vsel %vm589, %v930, %v928
        %v932 = vmul.f32 %v931, %v918
        %933 = vrot.lane.b32.xlu0 %v879, 100
        %v934 = vpop.permute.xlu0 %933
        %936 = vrot.lane.b32.xlu0 %v893, 104
        %v937 = vpop.permute.xlu0 %936
        %939 = vrot.lane.b32.xlu0 %v907, 108
        %v940 = vpop.permute.xlu0 %939
        %v942 = vsel %vm587, %v934, %v937
        %v943 = vsel %vm589, %v942, %v940
        %v944 = vmul.f32 %v932, %v932
        %v945 = vsel %vm617, %v944, 0.0
        %946 = vadd.xlane.f32.xlu0 %v945
        %v947 = vpop.xlane.xlu0 %946
        %949 = vrot.lane.b32.xlu0 %v621, 44
        %v950 = vpop.permute.xlu0 %949
        %953 = vrot.lane.b32.xlu0 %v919, 16
        %v954 = vpop.permute.xlu0 %953
        %v956 = vsel %vm626, %v950, %v954
        %v957 = vsel %vm628, %v956, -0.5
        %958 = vrot.lane.b32.xlu0 %v408, 28
        %v959 = vpop.permute.xlu0 %958
        %962 = vrot.lane.b32.xlu0 %v932, 16
        %v963 = vpop.permute.xlu0 %962
        %v965 = vsel %vm626, %v959, %v963
        %v966 = vsel %vm628, %v965, %v947
        %v968 = vsel %vm640, %v957, 0
        %v971 = vsel %vm640, %v966, 0
        %973 = vmatprep.subr.mxu0 0.0
        %974 = vmatpush1.xpose.msra.mxu0 0.0
        %975 = vmatprep.subr.mxu0 0.0
        %976 = vmatpush1.xpose.msra.mxu0 0.0
        %977 = vmatprep.subr.mxu0 0.0
        %978 = vmatpush1.xpose.msra.mxu0 0.0
        %979 = vmatprep.subr.mxu0 0.0
        %980 = vmatpush1.xpose.msra.mxu0 0.0
        %981 = vmatprep.subr.mxu0 0.0
        %982 = vmatpush1.xpose.msra.mxu0 0.0
        %983 = vmatprep.subr.mxu0 0.0
        %984 = vmatpush1.xpose.msra.mxu0 0.0
        %985 = vmatprep.subr.mxu0 0.0
        %986 = vmatpush1.xpose.msra.mxu0 0.0
        %987 = vmatprep.subr.mxu0 0.0
        %988 = vmatpush1.xpose.msra.mxu0 0.0
        %989 = vmatprep.subr.mxu0 0.0
        %990 = vmatpush1.xpose.msra.mxu0 0.0
        %991 = vmatprep.subr.mxu0 0.0
        %992 = vmatpush1.xpose.msra.mxu0 0.0
        %993 = vmatprep.subr.mxu0 0.0
        %994 = vmatpush1.xpose.msra.mxu0 0.0
        %995 = vmatprep.subr.mxu0 0.0
        %996 = vmatpush1.xpose.msra.mxu0 0.0
        %997 = vmatprep.subr.mxu0 0.0
        %998 = vmatpush1.xpose.msra.mxu0 0.0
        %999 = vmatprep.subr.mxu0 0.0
        %1000 = vmatpush1.xpose.msra.mxu0 0.0
        %1001 = vmatprep.subr.mxu0 0.0
        %1002 = vmatpush1.xpose.msra.mxu0 0.0
        %1003 = vmatprep.subr.mxu0 0.0
        %1004 = vmatpush1.xpose.msra.mxu0 %v971
        %1005 = vmatprep.subr.mxu0 0.0
        %1006 = vmatpush2.xpose.msra.mxu0 0.0
        %1007 = vmatprep.subr.mxu0 0.0
        %1008 = vmatpush2.xpose.msra.mxu0 0.0
        %1009 = vmatprep.subr.mxu0 0.0
        %1010 = vmatpush2.xpose.msra.mxu0 0.0
        %1011 = vmatprep.subr.mxu0 0.0
        %1012 = vmatpush2.xpose.msra.mxu0 0.0
        %1013 = vmatprep.subr.mxu0 0.0
        %1014 = vmatpush2.xpose.msra.mxu0 0.0
        %1015 = vmatprep.subr.mxu0 0.0
        %1016 = vmatpush2.xpose.msra.mxu0 0.0
        %1017 = vmatprep.subr.mxu0 0.0
        %1018 = vmatpush2.xpose.msra.mxu0 0.0
        %1019 = vmatprep.subr.mxu0 0.0
        %1020 = vmatpush2.xpose.msra.mxu0 0.0
        %1021 = vmatprep.subr.mxu0 0.0
        %1022 = vmatpush2.xpose.msra.mxu0 0.0
        %1023 = vmatprep.subr.mxu0 0.0
        %1024 = vmatpush2.xpose.msra.mxu0 0.0
        %1025 = vmatprep.subr.mxu0 0.0
        %1026 = vmatpush2.xpose.msra.mxu0 0.0
        %1027 = vmatprep.subr.mxu0 0.0
        %1028 = vmatpush2.xpose.msra.mxu0 0.0
        %1029 = vmatprep.subr.mxu0 0.0
        %1030 = vmatpush2.xpose.msra.mxu0 0.0
        %1031 = vmatprep.subr.mxu0 0.0
        %1032 = vmatpush2.xpose.msra.mxu0 0.0
        %1033 = vmatprep.subr.mxu0 0.0
        %1034 = vmatpush2.xpose.msra.mxu0 0.0
        %1035 = vmatprep.subr.mxu0 0.0
        %1036 = vmatpush2.xpose.msra.mxu0 0.0
        %1037 = vmatprep.mubr.f32.mxu0 0.0
        %1038 = vmatmul.mubr.f32.gmra.mxu0 %v968
        %v1039 = vpop.f32.mrf.mxu0
        %v1040 = vadd.f32 0.0, %v1039
        %v1041 = vpop.f32.mrf.mxu0
        %1042 = vdwg.mxu0
        %v1043 = vsel %vm589, %v1040, -inf
        %1044 = vmax.xlane.f32.xlu0 %v1043
        %v1045 = vpop.xlane.xlu0 %1044
        %v1046 = vsub.f32 %v1040, %v1045
        %v1047 = vmul.f32 %v1046, 1.442695
        %v1048 = vpow.pop %v1047
        %v1049 = vsel %vm589, %v1048, 0.0
        %1050 = vadd.xlane.f32.xlu0 %v1049
        %v1051 = vpop.xlane.xlu0 %1050
        %v1052 = vrcp.pop %v1051
        %v1053 = vmul.f32 1.0, %v1052
        %1055 = vrot.lane.b32.xlu0 %v408, 12
        %v1056 = vpop.permute.xlu0 %1055
        %1057 = vrot.lane.b32.xlu0 %v410, 12
        %v1058 = vpop.permute.xlu0 %1057
        %v1059 = vsel %vm617, %v1056, %v1058
        %1062 = vrot.lane.b32.xlu0 %v943, 16
        %v1063 = vpop.permute.xlu0 %1062
        %v1065 = vsel %vm626, %v1059, %v1063
        %v1067 = vsel %vm589, %v1048, 0
        %1069 = vmatprep.subr.mxu0 0.0
        %1070 = vmatpush1.msra.mxu0 0.0
        %1071 = vmatprep.subr.mxu0 0.0
        %1072 = vmatpush1.msra.mxu0 0.0
        %1073 = vmatprep.subr.mxu0 0.0
        %1074 = vmatpush1.msra.mxu0 0.0
        %1075 = vmatprep.subr.mxu0 0.0
        %1076 = vmatpush1.msra.mxu0 0.0
        %1077 = vmatprep.subr.mxu0 0.0
        %1078 = vmatpush1.msra.mxu0 0.0
        %1079 = vmatprep.subr.mxu0 0.0
        %1080 = vmatpush1.msra.mxu0 0.0
        %1081 = vmatprep.subr.mxu0 0.0
        %1082 = vmatpush1.msra.mxu0 0.0
        %1083 = vmatprep.subr.mxu0 0.0
        %1084 = vmatpush1.msra.mxu0 0.0
        %1085 = vmatprep.subr.mxu0 0.0
        %1086 = vmatpush1.msra.mxu0 0.0
        %1087 = vmatprep.subr.mxu0 0.0
        %1088 = vmatpush1.msra.mxu0 0.0
        %1089 = vmatprep.subr.mxu0 0.0
        %1090 = vmatpush1.msra.mxu0 0.0
        %1091 = vmatprep.subr.mxu0 0.0
        %1092 = vmatpush1.msra.mxu0 0.0
        %1093 = vmatprep.subr.mxu0 0.0
        %1094 = vmatpush1.msra.mxu0 0.0
        %1095 = vmatprep.subr.mxu0 0.0
        %1096 = vmatpush1.msra.mxu0 0.0
        %1097 = vmatprep.subr.mxu0 0.0
        %1098 = vmatpush1.msra.mxu0 0.0
        %1099 = vmatprep.subr.mxu0 0.0
        %1100 = vmatpush1.msra.mxu0 %v1065
        %1101 = vmatprep.subr.mxu0 0.0
        %1102 = vmatpush2.msra.mxu0 0.0
        %1103 = vmatprep.subr.mxu0 0.0
        %1104 = vmatpush2.msra.mxu0 0.0
        %1105 = vmatprep.subr.mxu0 0.0
        %1106 = vmatpush2.msra.mxu0 0.0
        %1107 = vmatprep.subr.mxu0 0.0
        %1108 = vmatpush2.msra.mxu0 0.0
        %1109 = vmatprep.subr.mxu0 0.0
        %1110 = vmatpush2.msra.mxu0 0.0
        %1111 = vmatprep.subr.mxu0 0.0
        %1112 = vmatpush2.msra.mxu0 0.0
        %1113 = vmatprep.subr.mxu0 0.0
        %1114 = vmatpush2.msra.mxu0 0.0
        %1115 = vmatprep.subr.mxu0 0.0
        %1116 = vmatpush2.msra.mxu0 0.0
        %1117 = vmatprep.subr.mxu0 0.0
        %1118 = vmatpush2.msra.mxu0 0.0
        %1119 = vmatprep.subr.mxu0 0.0
        %1120 = vmatpush2.msra.mxu0 0.0
        %1121 = vmatprep.subr.mxu0 0.0
        %1122 = vmatpush2.msra.mxu0 0.0
        %1123 = vmatprep.subr.mxu0 0.0
        %1124 = vmatpush2.msra.mxu0 0.0
        %1125 = vmatprep.subr.mxu0 0.0
        %1126 = vmatpush2.msra.mxu0 0.0
        %1127 = vmatprep.subr.mxu0 0.0
        %1128 = vmatpush2.msra.mxu0 0.0
        %1129 = vmatprep.subr.mxu0 0.0
        %1130 = vmatpush2.msra.mxu0 0.0
        %1131 = vmatprep.subr.mxu0 0.0
        %1132 = vmatpush2.msra.mxu0 0.0
        %1133 = vmatprep.mubr.f32.mxu0 0.0
        %1134 = vmatmul.mubr.f32.gmra.mxu0 %v1067
        %v1135 = vpop.f32.mrf.mxu0
        %v1136 = vadd.f32 0.0, %v1135
        %v1137 = vpop.f32.mrf.mxu0
        %1138 = vdwg.mxu0
        %v1139 = vmul.f32 %v1136, %v1053
        %v1140 = vsub.f32 %v1139, %v492
        %v1141 = vsub.f32 %v1139, %v522
        %v1142 = vsub.f32 %v1139, %v552
        %v1143 = vmul.f32 %v486, %v1140
        %v1144 = vmul.f32 %v517, %v1141
        %1146 = vrot.lane.b32.xlu0 %v1144, 124
        %v1147 = vpop.permute.xlu0 %1146
        %v1149 = vadd.f32 %v1143, %v1147
        %v1150 = vmul.f32 %v547, %v1142
        %1152 = vrot.lane.b32.xlu0 %v1150, 120
        %v1153 = vpop.permute.xlu0 %1152
        %v1155 = vadd.f32 %v1149, %v1153
        %v1156 = vmul.f32 %v497, %v1140
        %v1157 = vmul.f32 %v527, %v1141
        %1159 = vrot.lane.b32.xlu0 %v1157, 124
        %v1160 = vpop.permute.xlu0 %1159
        %v1162 = vadd.f32 %v1156, %v1160
        %v1163 = vmul.f32 %v557, %v1142
        %1165 = vrot.lane.b32.xlu0 %v1163, 120
        %v1166 = vpop.permute.xlu0 %1165
        %v1168 = vadd.f32 %v1162, %v1166
        %v1169 = vmul.f32 %v507, %v1140
        %v1170 = vmul.f32 %v537, %v1141
        %1172 = vrot.lane.b32.xlu0 %v1170, 124
        %v1173 = vpop.permute.xlu0 %1172
        %v1175 = vadd.f32 %v1169, %v1173
        %v1176 = vmul.f32 %v567, %v1142
        %1178 = vrot.lane.b32.xlu0 %v1176, 120
        %v1179 = vpop.permute.xlu0 %1178
        %v1181 = vadd.f32 %v1175, %v1179
        %v1182 = vmul.f32 %v1155, %v1155
        %v1183 = vmul.f32 %v1168, %v1168
        %v1184 = vadd.f32 %v1182, %v1183
        %v1185 = vmul.f32 %v1181, %v1181
        %v1186 = vadd.f32 %v1184, %v1185
        %v1187 = vadd.f32 %v1186, 1e-08
        %v1188 = vrsqrt.pop %v1187
        %v1189 = vmul.f32 %v1187, %v1188
        %vm1190 = vcmp.eq.f32.partialorder %v1187, inf
        %v1191 = vsel %vm1190, %v1187, %v1189
        %vm1192 = vcmp.eq.f32.partialorder %v1187, 0.0
        %v1193 = vand.u32 %v1187, 2147483648
        %v1194 = vsel %vm1192, %v1193, %v1191
        %s1195 = sld [smem:[#allocation2 + $0x2]]
        %1196 = vrot.lane.b32.xlu0 %v879, 40
        %v1197 = vpop.permute.xlu0 %1196
        %1199 = vrot.lane.b32.xlu0 %v893, 44
        %v1200 = vpop.permute.xlu0 %1199
        %1202 = vrot.lane.b32.xlu0 %v907, 48
        %v1203 = vpop.permute.xlu0 %1202
        %v1205 = vsel %vm587, %v1197, %v1200
        %v1206 = vsel %vm589, %v1205, %v1203
        %v1207 = vstv %s1195
        %v1208 = vmul.f32 %v1206, %v1207
        %1209 = vrot.lane.b32.xlu0 %v879, 28
        %v1210 = vpop.permute.xlu0 %1209
        %1212 = vrot.lane.b32.xlu0 %v893, 32
        %v1213 = vpop.permute.xlu0 %1212
        %1215 = vrot.lane.b32.xlu0 %v907, 36
        %v1216 = vpop.permute.xlu0 %1215
        %v1218 = vsel %vm587, %v1210, %v1213
        %v1219 = vsel %vm589, %v1218, %v1216
        %v1220 = vmul.f32 %v1219, %v1207
        %1221 = vrot.lane.b32.xlu0 %v879, 16
        %v1222 = vpop.permute.xlu0 %1221
        %1224 = vrot.lane.b32.xlu0 %v893, 20
        %v1225 = vpop.permute.xlu0 %1224
        %1227 = vrot.lane.b32.xlu0 %v907, 24
        %v1228 = vpop.permute.xlu0 %1227
        %v1230 = vsel %vm587, %v1222, %v1225
        %v1231 = vsel %vm589, %v1230, %v1228
        %v1232 = vmul.f32 %v1220, %v1220
        %v1233 = vsel %vm617, %v1232, 0.0
        %1234 = vadd.xlane.f32.xlu0 %v1233
        %v1235 = vpop.xlane.xlu0 %1234
        %v1236 = vmul.f32 %v410, 0.17677669
        %1238 = vrot.lane.b32.xlu0 %v1236, 88
        %v1239 = vpop.permute.xlu0 %1238
        %1242 = vrot.lane.b32.xlu0 %v1208, 16
        %v1243 = vpop.permute.xlu0 %1242
        %v1245 = vsel %vm626, %v1239, %v1243
        %v1246 = vsel %vm628, %v1245, -0.5
        %1247 = vrot.lane.b32.xlu0 %v410, 72
        %v1248 = vpop.permute.xlu0 %1247
        %1251 = vrot.lane.b32.xlu0 %v1220, 16
        %v1252 = vpop.permute.xlu0 %1251
        %v1254 = vsel %vm626, %v1248, %v1252
        %v1255 = vsel %vm628, %v1254, %v1235
        %v1257 = vsel %vm640, %v1246, 0
        %v1260 = vsel %vm640, %v1255, 0
        %1262 = vmatprep.subr.mxu0 0.0
        %1263 = vmatpush1.xpose.msra.mxu0 0.0
        %1264 = vmatprep.subr.mxu0 0.0
        %1265 = vmatpush1.xpose.msra.mxu0 0.0
        %1266 = vmatprep.subr.mxu0 0.0
        %1267 = vmatpush1.xpose.msra.mxu0 0.0
        %1268 = vmatprep.subr.mxu0 0.0
        %1269 = vmatpush1.xpose.msra.mxu0 0.0
        %1270 = vmatprep.subr.mxu0 0.0
        %1271 = vmatpush1.xpose.msra.mxu0 0.0
        %1272 = vmatprep.subr.mxu0 0.0
        %1273 = vmatpush1.xpose.msra.mxu0 0.0
        %1274 = vmatprep.subr.mxu0 0.0
        %1275 = vmatpush1.xpose.msra.mxu0 0.0
        %1276 = vmatprep.subr.mxu0 0.0
        %1277 = vmatpush1.xpose.msra.mxu0 0.0
        %1278 = vmatprep.subr.mxu0 0.0
        %1279 = vmatpush1.xpose.msra.mxu0 0.0
        %1280 = vmatprep.subr.mxu0 0.0
        %1281 = vmatpush1.xpose.msra.mxu0 0.0
        %1282 = vmatprep.subr.mxu0 0.0
        %1283 = vmatpush1.xpose.msra.mxu0 0.0
        %1284 = vmatprep.subr.mxu0 0.0
        %1285 = vmatpush1.xpose.msra.mxu0 0.0
        %1286 = vmatprep.subr.mxu0 0.0
        %1287 = vmatpush1.xpose.msra.mxu0 0.0
        %1288 = vmatprep.subr.mxu0 0.0
        %1289 = vmatpush1.xpose.msra.mxu0 0.0
        %1290 = vmatprep.subr.mxu0 0.0
        %1291 = vmatpush1.xpose.msra.mxu0 0.0
        %1292 = vmatprep.subr.mxu0 0.0
        %1293 = vmatpush1.xpose.msra.mxu0 %v1260
        %1294 = vmatprep.subr.mxu0 0.0
        %1295 = vmatpush2.xpose.msra.mxu0 0.0
        %1296 = vmatprep.subr.mxu0 0.0
        %1297 = vmatpush2.xpose.msra.mxu0 0.0
        %1298 = vmatprep.subr.mxu0 0.0
        %1299 = vmatpush2.xpose.msra.mxu0 0.0
        %1300 = vmatprep.subr.mxu0 0.0
        %1301 = vmatpush2.xpose.msra.mxu0 0.0
        %1302 = vmatprep.subr.mxu0 0.0
        %1303 = vmatpush2.xpose.msra.mxu0 0.0
        %1304 = vmatprep.subr.mxu0 0.0
        %1305 = vmatpush2.xpose.msra.mxu0 0.0
        %1306 = vmatprep.subr.mxu0 0.0
        %1307 = vmatpush2.xpose.msra.mxu0 0.0
        %1308 = vmatprep.subr.mxu0 0.0
        %1309 = vmatpush2.xpose.msra.mxu0 0.0
        %1310 = vmatprep.subr.mxu0 0.0
        %1311 = vmatpush2.xpose.msra.mxu0 0.0
        %1312 = vmatprep.subr.mxu0 0.0
        %1313 = vmatpush2.xpose.msra.mxu0 0.0
        %1314 = vmatprep.subr.mxu0 0.0
        %1315 = vmatpush2.xpose.msra.mxu0 0.0
        %1316 = vmatprep.subr.mxu0 0.0
        %1317 = vmatpush2.xpose.msra.mxu0 0.0
        %1318 = vmatprep.subr.mxu0 0.0
        %1319 = vmatpush2.xpose.msra.mxu0 0.0
        %1320 = vmatprep.subr.mxu0 0.0
        %1321 = vmatpush2.xpose.msra.mxu0 0.0
        %1322 = vmatprep.subr.mxu0 0.0
        %1323 = vmatpush2.xpose.msra.mxu0 0.0
        %1324 = vmatprep.subr.mxu0 0.0
        %1325 = vmatpush2.xpose.msra.mxu0 0.0
        %1326 = vmatprep.mubr.f32.mxu0 0.0
        %1327 = vmatmul.mubr.f32.gmra.mxu0 %v1257
        %v1328 = vpop.f32.mrf.mxu0
        %v1329 = vadd.f32 0.0, %v1328
        %v1330 = vpop.f32.mrf.mxu0
        %1331 = vdwg.mxu0
        %v1332 = vsel %vm589, %v1329, -inf
        %1333 = vmax.xlane.f32.xlu0 %v1332
        %v1334 = vpop.xlane.xlu0 %1333
        %v1335 = vsub.f32 %v1329, %v1334
        %v1336 = vmul.f32 %v1335, 1.442695
        %v1337 = vpow.pop %v1336
        %v1338 = vsel %vm589, %v1337, 0.0
        %1339 = vadd.xlane.f32.xlu0 %v1338
        %v1340 = vpop.xlane.xlu0 %1339
        %v1341 = vrcp.pop %v1340
        %v1342 = vmul.f32 1.0, %v1341
        %1343 = vrot.lane.b32.xlu0 %v410, 56
        %v1344 = vpop.permute.xlu0 %1343
        %1347 = vrot.lane.b32.xlu0 %v1231, 16
        %v1348 = vpop.permute.xlu0 %1347
        %v1350 = vsel %vm626, %v1344, %v1348
        %v1352 = vsel %vm589, %v1337, 0
        %1354 = vmatprep.subr.mxu0 0.0
        %1355 = vmatpush1.msra.mxu0 0.0
        %1356 = vmatprep.subr.mxu0 0.0
        %1357 = vmatpush1.msra.mxu0 0.0
        %1358 = vmatprep.subr.mxu0 0.0
        %1359 = vmatpush1.msra.mxu0 0.0
        %1360 = vmatprep.subr.mxu0 0.0
        %1361 = vmatpush1.msra.mxu0 0.0
        %1362 = vmatprep.subr.mxu0 0.0
        %1363 = vmatpush1.msra.mxu0 0.0
        %1364 = vmatprep.subr.mxu0 0.0
        %1365 = vmatpush1.msra.mxu0 0.0
        %1366 = vmatprep.subr.mxu0 0.0
        %1367 = vmatpush1.msra.mxu0 0.0
        %1368 = vmatprep.subr.mxu0 0.0
        %1369 = vmatpush1.msra.mxu0 0.0
        %1370 = vmatprep.subr.mxu0 0.0
        %1371 = vmatpush1.msra.mxu0 0.0
        %1372 = vmatprep.subr.mxu0 0.0
        %1373 = vmatpush1.msra.mxu0 0.0
        %1374 = vmatprep.subr.mxu0 0.0
        %1375 = vmatpush1.msra.mxu0 0.0
        %1376 = vmatprep.subr.mxu0 0.0
        %1377 = vmatpush1.msra.mxu0 0.0
        %1378 = vmatprep.subr.mxu0 0.0
        %1379 = vmatpush1.msra.mxu0 0.0
        %1380 = vmatprep.subr.mxu0 0.0
        %1381 = vmatpush1.msra.mxu0 0.0
        %1382 = vmatprep.subr.mxu0 0.0
        %1383 = vmatpush1.msra.mxu0 0.0
        %1384 = vmatprep.subr.mxu0 0.0
        %1385 = vmatpush1.msra.mxu0 %v1350
        %1386 = vmatprep.subr.mxu0 0.0
        %1387 = vmatpush2.msra.mxu0 0.0
        %1388 = vmatprep.subr.mxu0 0.0
        %1389 = vmatpush2.msra.mxu0 0.0
        %1390 = vmatprep.subr.mxu0 0.0
        %1391 = vmatpush2.msra.mxu0 0.0
        %1392 = vmatprep.subr.mxu0 0.0
        %1393 = vmatpush2.msra.mxu0 0.0
        %1394 = vmatprep.subr.mxu0 0.0
        %1395 = vmatpush2.msra.mxu0 0.0
        %1396 = vmatprep.subr.mxu0 0.0
        %1397 = vmatpush2.msra.mxu0 0.0
        %1398 = vmatprep.subr.mxu0 0.0
        %1399 = vmatpush2.msra.mxu0 0.0
        %1400 = vmatprep.subr.mxu0 0.0
        %1401 = vmatpush2.msra.mxu0 0.0
        %1402 = vmatprep.subr.mxu0 0.0
        %1403 = vmatpush2.msra.mxu0 0.0
        %1404 = vmatprep.subr.mxu0 0.0
        %1405 = vmatpush2.msra.mxu0 0.0
        %1406 = vmatprep.subr.mxu0 0.0
        %1407 = vmatpush2.msra.mxu0 0.0
        %1408 = vmatprep.subr.mxu0 0.0
        %1409 = vmatpush2.msra.mxu0 0.0
        %1410 = vmatprep.subr.mxu0 0.0
        %1411 = vmatpush2.msra.mxu0 0.0
        %1412 = vmatprep.subr.mxu0 0.0
        %1413 = vmatpush2.msra.mxu0 0.0
        %1414 = vmatprep.subr.mxu0 0.0
        %1415 = vmatpush2.msra.mxu0 0.0
        %1416 = vmatprep.subr.mxu0 0.0
        %1417 = vmatpush2.msra.mxu0 0.0
        %1418 = vmatprep.mubr.f32.mxu0 0.0
        %1419 = vmatmul.mubr.f32.gmra.mxu0 %v1352
        %v1420 = vpop.f32.mrf.mxu0
        %v1421 = vadd.f32 0.0, %v1420
        %v1422 = vpop.f32.mrf.mxu0
        %1423 = vdwg.mxu0
        %v1424 = vmul.f32 %v1421, %v1342
        %v1425 = vsub.f32 %v1424, %v492
        %v1426 = vsub.f32 %v1424, %v522
        %v1427 = vsub.f32 %v1424, %v552
        %v1428 = vmul.f32 %v486, %v1425
        %v1429 = vmul.f32 %v517, %v1426
        %1431 = vrot.lane.b32.xlu0 %v1429, 124
        %v1432 = vpop.permute.xlu0 %1431
        %v1434 = vadd.f32 %v1428, %v1432
        %v1435 = vmul.f32 %v547, %v1427
        %1437 = vrot.lane.b32.xlu0 %v1435, 120
        %v1438 = vpop.permute.xlu0 %1437
        %v1440 = vadd.f32 %v1434, %v1438
        %v1441 = vmul.f32 %v497, %v1425
        %v1442 = vmul.f32 %v527, %v1426
        %1444 = vrot.lane.b32.xlu0 %v1442, 124
        %v1445 = vpop.permute.xlu0 %1444
        %v1447 = vadd.f32 %v1441, %v1445
        %v1448 = vmul.f32 %v557, %v1427
        %1450 = vrot.lane.b32.xlu0 %v1448, 120
        %v1451 = vpop.permute.xlu0 %1450
        %v1453 = vadd.f32 %v1447, %v1451
        %v1454 = vmul.f32 %v507, %v1425
        %v1455 = vmul.f32 %v537, %v1426
        %1457 = vrot.lane.b32.xlu0 %v1455, 124
        %v1458 = vpop.permute.xlu0 %1457
        %v1460 = vadd.f32 %v1454, %v1458
        %v1461 = vmul.f32 %v567, %v1427
        %1463 = vrot.lane.b32.xlu0 %v1461, 120
        %v1464 = vpop.permute.xlu0 %1463
        %v1466 = vadd.f32 %v1460, %v1464
        %v1467 = vmul.f32 %v1440, %v1440
        %v1468 = vmul.f32 %v1453, %v1453
        %v1469 = vadd.f32 %v1467, %v1468
        %v1470 = vmul.f32 %v1466, %v1466
        %v1471 = vadd.f32 %v1469, %v1470
        %v1472 = vadd.f32 %v1471, 1e-08
        %v1473 = vrsqrt.pop %v1472
        %v1474 = vmul.f32 %v1472, %v1473
        %vm1475 = vcmp.eq.f32.partialorder %v1472, inf
        %v1476 = vsel %vm1475, %v1472, %v1474
        %vm1477 = vcmp.eq.f32.partialorder %v1472, 0.0
        %v1478 = vand.u32 %v1472, 2147483648
        %v1479 = vsel %vm1477, %v1478, %v1476
        %s1480 = sld [smem:[#allocation2 + $0x3]]
        %v1481 = vmul.f32 %v486, %v479
        %v1482 = vadd.f32 %v492, %v1481
        %v1483 = vmul.f32 %v497, %v479
        %1485 = vrot.lane.b32.xlu0 %v1483, 124
        %v1486 = vpop.permute.xlu0 %1485
        %v1488 = vadd.f32 %v1482, %v1486
        %v1489 = vmul.f32 %v507, %v479
        %1491 = vrot.lane.b32.xlu0 %v1489, 120
        %v1492 = vpop.permute.xlu0 %1491
        %v1494 = vadd.f32 %v1488, %v1492
        %v1495 = vmul.f32 %v517, %v479
        %v1496 = vadd.f32 %v522, %v1495
        %v1497 = vmul.f32 %v527, %v479
        %1499 = vrot.lane.b32.xlu0 %v1497, 124
        %v1500 = vpop.permute.xlu0 %1499
        %v1502 = vadd.f32 %v1496, %v1500
        %v1503 = vmul.f32 %v537, %v479
        %1505 = vrot.lane.b32.xlu0 %v1503, 120
        %v1506 = vpop.permute.xlu0 %1505
        %v1508 = vadd.f32 %v1502, %v1506
        %v1509 = vmul.f32 %v547, %v479
        %v1510 = vadd.f32 %v552, %v1509
        %v1511 = vmul.f32 %v557, %v479
        %1513 = vrot.lane.b32.xlu0 %v1511, 124
        %v1514 = vpop.permute.xlu0 %1513
        %v1516 = vadd.f32 %v1510, %v1514
        %v1517 = vmul.f32 %v567, %v479
        %1519 = vrot.lane.b32.xlu0 %v1517, 120
        %v1520 = vpop.permute.xlu0 %1519
        %v1522 = vadd.f32 %v1516, %v1520
        %1524 = vrot.lane.b32.xlu0 %v1494, 84
        %v1525 = vpop.permute.xlu0 %1524
        %1528 = vrot.lane.b32.xlu0 %v1508, 88
        %v1529 = vpop.permute.xlu0 %1528
        %1532 = vrot.lane.b32.xlu0 %v1522, 92
        %v1533 = vpop.permute.xlu0 %1532
        %v1535 = vsel %vm587, %v1525, %v1529
        %v1536 = vsel %vm589, %v1535, %v1533
        %v1537 = vstv %s1480
        %v1538 = vmul.f32 %v1536, %v1537
        %1539 = vrot.lane.b32.xlu0 %v1494, 72
        %v1540 = vpop.permute.xlu0 %1539
        %1542 = vrot.lane.b32.xlu0 %v1508, 76
        %v1543 = vpop.permute.xlu0 %1542
        %1545 = vrot.lane.b32.xlu0 %v1522, 80
        %v1546 = vpop.permute.xlu0 %1545
        %v1548 = vsel %vm587, %v1540, %v1543
        %v1549 = vsel %vm589, %v1548, %v1546
        %v1550 = vmul.f32 %v1549, %v1537
        %1551 = vrot.lane.b32.xlu0 %v1494, 60
        %v1552 = vpop.permute.xlu0 %1551
        %1554 = vrot.lane.b32.xlu0 %v1508, 64
        %v1555 = vpop.permute.xlu0 %1554
        %1557 = vrot.lane.b32.xlu0 %v1522, 68
        %v1558 = vpop.permute.xlu0 %1557
        %v1560 = vsel %vm587, %v1552, %v1555
        %v1561 = vsel %vm589, %v1560, %v1558
        %v1562 = vmul.f32 %v1550, %v1550
        %v1563 = vsel %vm617, %v1562, 0.0
        %1564 = vadd.xlane.f32.xlu0 %v1563
        %v1565 = vpop.xlane.xlu0 %1564
        %v1566 = vmul.f32 %v479, 0.17677669
        %1568 = vrot.lane.b32.xlu0 %v1236, 4
        %v1569 = vpop.permute.xlu0 %1568
        %1570 = vrot.lane.b32.xlu0 %v1566, 4
        %v1571 = vpop.permute.xlu0 %1570
        %v1572 = vsel %vm587, %v1569, %v1571
        %1575 = vrot.lane.b32.xlu0 %v1538, 16
        %v1576 = vpop.permute.xlu0 %1575
        %v1578 = vsel %vm626, %v1572, %v1576
        %v1579 = vsel %vm628, %v1578, -0.5
        %1581 = vrot.lane.b32.xlu0 %v479, 116
        %v1582 = vpop.permute.xlu0 %1581
        %1585 = vrot.lane.b32.xlu0 %v1550, 16
        %v1586 = vpop.permute.xlu0 %1585
        %v1588 = vsel %vm626, %v1582, %v1586
        %v1589 = vsel %vm628, %v1588, %v1565
        %v1591 = vsel %vm640, %v1579, 0
        %v1594 = vsel %vm640, %v1589, 0
        %1596 = vmatprep.subr.mxu0 0.0
        %1597 = vmatpush1.xpose.msra.mxu0 0.0
        %1598 = vmatprep.subr.mxu0 0.0
        %1599 = vmatpush1.xpose.msra.mxu0 0.0
        %1600 = vmatprep.subr.mxu0 0.0
        %1601 = vmatpush1.xpose.msra.mxu0 0.0
        %1602 = vmatprep.subr.mxu0 0.0
        %1603 = vmatpush1.xpose.msra.mxu0 0.0
        %1604 = vmatprep.subr.mxu0 0.0
        %1605 = vmatpush1.xpose.msra.mxu0 0.0
        %1606 = vmatprep.subr.mxu0 0.0
        %1607 = vmatpush1.xpose.msra.mxu0 0.0
        %1608 = vmatprep.subr.mxu0 0.0
        %1609 = vmatpush1.xpose.msra.mxu0 0.0
        %1610 = vmatprep.subr.mxu0 0.0
        %1611 = vmatpush1.xpose.msra.mxu0 0.0
        %1612 = vmatprep.subr.mxu0 0.0
        %1613 = vmatpush1.xpose.msra.mxu0 0.0
        %1614 = vmatprep.subr.mxu0 0.0
        %1615 = vmatpush1.xpose.msra.mxu0 0.0
        %1616 = vmatprep.subr.mxu0 0.0
        %1617 = vmatpush1.xpose.msra.mxu0 0.0
        %1618 = vmatprep.subr.mxu0 0.0
        %1619 = vmatpush1.xpose.msra.mxu0 0.0
        %1620 = vmatprep.subr.mxu0 0.0
        %1621 = vmatpush1.xpose.msra.mxu0 0.0
        %1622 = vmatprep.subr.mxu0 0.0
        %1623 = vmatpush1.xpose.msra.mxu0 0.0
        %1624 = vmatprep.subr.mxu0 0.0
        %1625 = vmatpush1.xpose.msra.mxu0 0.0
        %1626 = vmatprep.subr.mxu0 0.0
        %1627 = vmatpush1.xpose.msra.mxu0 %v1594
        %1628 = vmatprep.subr.mxu0 0.0
        %1629 = vmatpush2.xpose.msra.mxu0 0.0
        %1630 = vmatprep.subr.mxu0 0.0
        %1631 = vmatpush2.xpose.msra.mxu0 0.0
        %1632 = vmatprep.subr.mxu0 0.0
        %1633 = vmatpush2.xpose.msra.mxu0 0.0
        %1634 = vmatprep.subr.mxu0 0.0
        %1635 = vmatpush2.xpose.msra.mxu0 0.0
        %1636 = vmatprep.subr.mxu0 0.0
        %1637 = vmatpush2.xpose.msra.mxu0 0.0
        %1638 = vmatprep.subr.mxu0 0.0
        %1639 = vmatpush2.xpose.msra.mxu0 0.0
        %1640 = vmatprep.subr.mxu0 0.0
        %1641 = vmatpush2.xpose.msra.mxu0 0.0
        %1642 = vmatprep.subr.mxu0 0.0
        %1643 = vmatpush2.xpose.msra.mxu0 0.0
        %1644 = vmatprep.subr.mxu0 0.0
        %1645 = vmatpush2.xpose.msra.mxu0 0.0
        %1646 = vmatprep.subr.mxu0 0.0
        %1647 = vmatpush2.xpose.msra.mxu0 0.0
        %1648 = vmatprep.subr.mxu0 0.0
        %1649 = vmatpush2.xpose.msra.mxu0 0.0
        %1650 = vmatprep.subr.mxu0 0.0
        %1651 = vmatpush2.xpose.msra.mxu0 0.0
        %1652 = vmatprep.subr.mxu0 0.0
        %1653 = vmatpush2.xpose.msra.mxu0 0.0
        %1654 = vmatprep.subr.mxu0 0.0
        %1655 = vmatpush2.xpose.msra.mxu0 0.0
        %1656 = vmatprep.subr.mxu0 0.0
        %1657 = vmatpush2.xpose.msra.mxu0 0.0
        %1658 = vmatprep.subr.mxu0 0.0
        %1659 = vmatpush2.xpose.msra.mxu0 0.0
        %1660 = vmatprep.mubr.f32.mxu0 0.0
        %1661 = vmatmul.mubr.f32.gmra.mxu0 %v1591
        %v1662 = vpop.f32.mrf.mxu0
        %v1663 = vadd.f32 0.0, %v1662
        %v1664 = vpop.f32.mrf.mxu0
        %1665 = vdwg.mxu0
        %v1666 = vsel %vm589, %v1663, -inf
        %1667 = vmax.xlane.f32.xlu0 %v1666
        %v1668 = vpop.xlane.xlu0 %1667
        %v1669 = vsub.f32 %v1663, %v1668
        %v1670 = vmul.f32 %v1669, 1.442695
        %v1671 = vpow.pop %v1670
        %v1672 = vsel %vm589, %v1671, 0.0
        %1673 = vadd.xlane.f32.xlu0 %v1672
        %v1674 = vpop.xlane.xlu0 %1673
        %v1675 = vrcp.pop %v1674
        %v1676 = vmul.f32 1.0, %v1675
        %1677 = vrot.lane.b32.xlu0 %v479, 100
        %v1678 = vpop.permute.xlu0 %1677
        %1681 = vrot.lane.b32.xlu0 %v1561, 16
        %v1682 = vpop.permute.xlu0 %1681
        %v1684 = vsel %vm626, %v1678, %v1682
        %v1686 = vsel %vm589, %v1671, 0
        %1688 = vmatprep.subr.mxu0 0.0
        %1689 = vmatpush1.msra.mxu0 0.0
        %1690 = vmatprep.subr.mxu0 0.0
        %1691 = vmatpush1.msra.mxu0 0.0
        %1692 = vmatprep.subr.mxu0 0.0
        %1693 = vmatpush1.msra.mxu0 0.0
        %1694 = vmatprep.subr.mxu0 0.0
        %1695 = vmatpush1.msra.mxu0 0.0
        %1696 = vmatprep.subr.mxu0 0.0
        %1697 = vmatpush1.msra.mxu0 0.0
        %1698 = vmatprep.subr.mxu0 0.0
        %1699 = vmatpush1.msra.mxu0 0.0
        %1700 = vmatprep.subr.mxu0 0.0
        %1701 = vmatpush1.msra.mxu0 0.0
        %1702 = vmatprep.subr.mxu0 0.0
        %1703 = vmatpush1.msra.mxu0 0.0
        %1704 = vmatprep.subr.mxu0 0.0
        %1705 = vmatpush1.msra.mxu0 0.0
        %1706 = vmatprep.subr.mxu0 0.0
        %1707 = vmatpush1.msra.mxu0 0.0
        %1708 = vmatprep.subr.mxu0 0.0
        %1709 = vmatpush1.msra.mxu0 0.0
        %1710 = vmatprep.subr.mxu0 0.0
        %1711 = vmatpush1.msra.mxu0 0.0
        %1712 = vmatprep.subr.mxu0 0.0
        %1713 = vmatpush1.msra.mxu0 0.0
        %1714 = vmatprep.subr.mxu0 0.0
        %1715 = vmatpush1.msra.mxu0 0.0
        %1716 = vmatprep.subr.mxu0 0.0
        %1717 = vmatpush1.msra.mxu0 0.0
        %1718 = vmatprep.subr.mxu0 0.0
        %1719 = vmatpush1.msra.mxu0 %v1684
        %1720 = vmatprep.subr.mxu0 0.0
        %1721 = vmatpush2.msra.mxu0 0.0
        %1722 = vmatprep.subr.mxu0 0.0
        %1723 = vmatpush2.msra.mxu0 0.0
        %1724 = vmatprep.subr.mxu0 0.0
        %1725 = vmatpush2.msra.mxu0 0.0
        %1726 = vmatprep.subr.mxu0 0.0
        %1727 = vmatpush2.msra.mxu0 0.0
        %1728 = vmatprep.subr.mxu0 0.0
        %1729 = vmatpush2.msra.mxu0 0.0
        %1730 = vmatprep.subr.mxu0 0.0
        %1731 = vmatpush2.msra.mxu0 0.0
        %1732 = vmatprep.subr.mxu0 0.0
        %1733 = vmatpush2.msra.mxu0 0.0
        %1734 = vmatprep.subr.mxu0 0.0
        %1735 = vmatpush2.msra.mxu0 0.0
        %1736 = vmatprep.subr.mxu0 0.0
        %1737 = vmatpush2.msra.mxu0 0.0
        %1738 = vmatprep.subr.mxu0 0.0
        %1739 = vmatpush2.msra.mxu0 0.0
        %1740 = vmatprep.subr.mxu0 0.0
        %1741 = vmatpush2.msra.mxu0 0.0
        %1742 = vmatprep.subr.mxu0 0.0
        %1743 = vmatpush2.msra.mxu0 0.0
        %1744 = vmatprep.subr.mxu0 0.0
        %1745 = vmatpush2.msra.mxu0 0.0
        %1746 = vmatprep.subr.mxu0 0.0
        %1747 = vmatpush2.msra.mxu0 0.0
        %1748 = vmatprep.subr.mxu0 0.0
        %1749 = vmatpush2.msra.mxu0 0.0
        %1750 = vmatprep.subr.mxu0 0.0
        %1751 = vmatpush2.msra.mxu0 0.0
        %1752 = vmatprep.mubr.f32.mxu0 0.0
        %1753 = vmatmul.mubr.f32.gmra.mxu0 %v1686
        %v1754 = vpop.f32.mrf.mxu0
        %v1755 = vadd.f32 0.0, %v1754
        %v1756 = vpop.f32.mrf.mxu0
        %1757 = vdwg.mxu0
        %v1758 = vmul.f32 %v1755, %v1676
        %v1759 = vsub.f32 %v1758, %v492
        %v1760 = vsub.f32 %v1758, %v522
        %v1761 = vsub.f32 %v1758, %v552
        %v1762 = vmul.f32 %v486, %v1759
        %v1763 = vmul.f32 %v517, %v1760
        %1765 = vrot.lane.b32.xlu0 %v1763, 124
        %v1766 = vpop.permute.xlu0 %1765
        %v1768 = vadd.f32 %v1762, %v1766
        %v1769 = vmul.f32 %v547, %v1761
        %1771 = vrot.lane.b32.xlu0 %v1769, 120
        %v1772 = vpop.permute.xlu0 %1771
        %v1774 = vadd.f32 %v1768, %v1772
        %v1775 = vmul.f32 %v497, %v1759
        %v1776 = vmul.f32 %v527, %v1760
        %1778 = vrot.lane.b32.xlu0 %v1776, 124
        %v1779 = vpop.permute.xlu0 %1778
        %v1781 = vadd.f32 %v1775, %v1779
        %v1782 = vmul.f32 %v557, %v1761
        %1784 = vrot.lane.b32.xlu0 %v1782, 120
        %v1785 = vpop.permute.xlu0 %1784
        %v1787 = vadd.f32 %v1781, %v1785
        %v1788 = vmul.f32 %v507, %v1759
        %v1789 = vmul.f32 %v537, %v1760
        %1791 = vrot.lane.b32.xlu0 %v1789, 124
        %v1792 = vpop.permute.xlu0 %1791
        %v1794 = vadd.f32 %v1788, %v1792
        %v1795 = vmul.f32 %v567, %v1761
        %1797 = vrot.lane.b32.xlu0 %v1795, 120
        %v1798 = vpop.permute.xlu0 %1797
        %v1800 = vadd.f32 %v1794, %v1798
        %v1801 = vmul.f32 %v1774, %v1774
        %v1802 = vmul.f32 %v1787, %v1787
        %v1803 = vadd.f32 %v1801, %v1802
        %v1804 = vmul.f32 %v1800, %v1800
        %v1805 = vadd.f32 %v1803, %v1804
        %v1806 = vadd.f32 %v1805, 1e-08
        %v1807 = vrsqrt.pop %v1806
        %v1808 = vmul.f32 %v1806, %v1807
        %vm1809 = vcmp.eq.f32.partialorder %v1806, inf
        %v1810 = vsel %vm1809, %v1806, %v1808
        %vm1811 = vcmp.eq.f32.partialorder %v1806, 0.0
        %v1812 = vand.u32 %v1806, 2147483648
        %v1813 = vsel %vm1811, %v1812, %v1810
        %1815 = vrot.lane.b32.xlu0 %v838, 4
        %v1816 = vpop.permute.xlu0 %1815
        %1819 = vrot.lane.b32.xlu0 %v851, 8
        %v1820 = vpop.permute.xlu0 %1819
        %1823 = vrot.lane.b32.xlu0 %v864, 12
        %v1824 = vpop.permute.xlu0 %1823
        %1827 = vrot.lane.b32.xlu0 %v1139, 32
        %v1828 = vpop.permute.xlu0 %1827
        %1831 = vrot.lane.b32.xlu0 %v1155, 32
        %v1832 = vpop.permute.xlu0 %1831
        %1835 = vrot.lane.b32.xlu0 %v1168, 36
        %v1836 = vpop.permute.xlu0 %1835
        %1839 = vrot.lane.b32.xlu0 %v1181, 40
        %v1840 = vpop.permute.xlu0 %1839
        %1843 = vrot.lane.b32.xlu0 %v1194, 44
        %v1844 = vpop.permute.xlu0 %1843
        %1847 = vrot.lane.b32.xlu0 %v1424, 64
        %v1848 = vpop.permute.xlu0 %1847
        %1851 = vrot.lane.b32.xlu0 %v1440, 64
        %v1852 = vpop.permute.xlu0 %1851
        %1855 = vrot.lane.b32.xlu0 %v1453, 68
        %v1856 = vpop.permute.xlu0 %1855
        %1859 = vrot.lane.b32.xlu0 %v1466, 72
        %v1860 = vpop.permute.xlu0 %1859
        %1863 = vrot.lane.b32.xlu0 %v1479, 76
        %v1864 = vpop.permute.xlu0 %1863
        %1867 = vrot.lane.b32.xlu0 %v1758, 96
        %v1868 = vpop.permute.xlu0 %1867
        %v1870 = vsel %vm626, %v809, %v825
        %vm1871 = vcmask 162816
        %v1872 = vsel %vm1871, %v1870, %v1816
        %vm1873 = vcmask 195584
        %v1874 = vsel %vm1873, %v1872, %v1820
        %v1875 = vsel %vm628, %v1874, %v1824
        %v1876 = vsel %vm337, %v1875, %v1828
        %vm1877 = vcmask 392192
        %v1878 = vsel %vm1877, %v1876, %v1832
        %vm1879 = vcmask 424960
        %v1880 = vsel %vm1879, %v1878, %v1836
        %vm1881 = vcmask 457728
        %v1882 = vsel %vm1881, %v1880, %v1840
        %vm1883 = vcmask 490496
        %v1884 = vsel %vm1883, %v1882, %v1844
        %vm1885 = vcmask 523264
        %v1886 = vsel %vm1885, %v1884, %v1848
        %vm1887 = vcmask 654336
        %v1888 = vsel %vm1887, %v1886, %v1852
        %vm1889 = vcmask 687104
        %v1890 = vsel %vm1889, %v1888, %v1856
        %vm1891 = vcmask 719872
        %v1892 = vsel %vm1891, %v1890, %v1860
        %vm1893 = vcmask 752640
        %v1894 = vsel %vm1893, %v1892, %v1864
        %vm1895 = vcmask 785408
        %v1896 = vsel %vm1895, %v1894, %v1868
        %1898 = vrot.lane.b32.xlu0 %v1774, 112
        %v1899 = vpop.permute.xlu0 %1898
        %1902 = vrot.lane.b32.xlu0 %v1787, 116
        %v1903 = vpop.permute.xlu0 %1902
        %1906 = vrot.lane.b32.xlu0 %v1800, 120
        %v1907 = vpop.permute.xlu0 %1906
        %1910 = vrot.lane.b32.xlu0 %v1813, 124
        %v1911 = vpop.permute.xlu0 %1910
        %v1913 = vsel %vm587, %v1899, %v1903
        %v1914 = vsel %vm589, %v1913, %v1907
        %v1915 = vsel %vm617, %v1914, %v1911
        %1917 = vrot.lane.b32.xlu0 %v1915, 112
        %v1918 = vpop.permute.xlu0 %1917
        %vm1920 = vcmask 916480
        %v1921 = vsel %vm1920, %v1896, %v1918
        %v1922 = vld [vmem:[%s5] sm:$0xff]
        %v1923 = vld [vmem:[%s5 + $0x8] sm:$0xff]
        %v1924 = vld [vmem:[%s5 + $0x10] sm:$0xff]
        %v1925 = vld [vmem:[%s5 + $0x18] sm:$0xff]
        %v1926 = vld [vmem:[%s5 + $0x20] sm:$0xff]
        %v1927 = vld [vmem:[%s5 + $0x28] sm:$0xff]
        %v1928 = vld [vmem:[%s5 + $0x30] sm:$0xff]
        %v1929 = vld [vmem:[%s5 + $0x38] sm:$0xff]
        %v1930 = vld [vmem:[%s5 + $0x40] sm:$0xff]
        %v1931 = vld [vmem:[%s5 + $0x48] sm:$0xff]
        %v1932 = vld [vmem:[%s5 + $0x50] sm:$0xff]
        %v1933 = vld [vmem:[%s5 + $0x58] sm:$0xff]
        %v1934 = vld [vmem:[%s5 + $0x60] sm:$0xff]
        %v1935 = vld [vmem:[%s5 + $0x68] sm:$0xff]
        %v1936 = vld [vmem:[%s5 + $0x70] sm:$0xff]
        %v1937 = vld [vmem:[%s5 + $0x78] sm:$0xff]
        %v1938 = vld [vmem:[%s6] sm:$0x1]
        %v1940 = vlaneseq
        %v1941 = vshrl.u32 %v1940, 7
        %v1942 = vsub.s32 0, %v1941
        %v1943 = vrot.slane %v1938, %v1942
        %1945 = vmatprep.subr.mxu0 0.0
        %1946 = vmatpush1.msra.mxu0 %v1937
        %1947 = vmatprep.subr.mxu0 0.0
        %1948 = vmatpush1.msra.mxu0 %v1936
        %1949 = vmatprep.subr.mxu0 0.0
        %1950 = vmatpush1.msra.mxu0 %v1935
        %1951 = vmatprep.subr.mxu0 0.0
        %1952 = vmatpush1.msra.mxu0 %v1934
        %1953 = vmatprep.subr.mxu0 0.0
        %1954 = vmatpush1.msra.mxu0 %v1933
        %1955 = vmatprep.subr.mxu0 0.0
        %1956 = vmatpush1.msra.mxu0 %v1932
        %1957 = vmatprep.subr.mxu0 0.0
        %1958 = vmatpush1.msra.mxu0 %v1931
        %1959 = vmatprep.subr.mxu0 0.0
        %1960 = vmatpush1.msra.mxu0 %v1930
        %1961 = vmatprep.subr.mxu0 0.0
        %1962 = vmatpush1.msra.mxu0 %v1929
        %1963 = vmatprep.subr.mxu0 0.0
        %1964 = vmatpush1.msra.mxu0 %v1928
        %1965 = vmatprep.subr.mxu0 0.0
        %1966 = vmatpush1.msra.mxu0 %v1927
        %1967 = vmatprep.subr.mxu0 0.0
        %1968 = vmatpush1.msra.mxu0 %v1926
        %1969 = vmatprep.subr.mxu0 0.0
        %1970 = vmatpush1.msra.mxu0 %v1925
        %1971 = vmatprep.subr.mxu0 0.0
        %1972 = vmatpush1.msra.mxu0 %v1924
        %1973 = vmatprep.subr.mxu0 0.0
        %1974 = vmatpush1.msra.mxu0 %v1923
        %1975 = vmatprep.subr.mxu0 0.0
        %1976 = vmatpush1.msra.mxu0 %v1922
        %1977 = vmatprep.subr.mxu0 0.0
        %1978 = vmatpush2.msra.mxu0 0.0
        %1979 = vmatprep.subr.mxu0 0.0
        %1980 = vmatpush2.msra.mxu0 0.0
        %1981 = vmatprep.subr.mxu0 0.0
        %1982 = vmatpush2.msra.mxu0 0.0
        %1983 = vmatprep.subr.mxu0 0.0
        %1984 = vmatpush2.msra.mxu0 0.0
        %1985 = vmatprep.subr.mxu0 0.0
        %1986 = vmatpush2.msra.mxu0 0.0
        %1987 = vmatprep.subr.mxu0 0.0
        %1988 = vmatpush2.msra.mxu0 0.0
        %1989 = vmatprep.subr.mxu0 0.0
        %1990 = vmatpush2.msra.mxu0 0.0
        %1991 = vmatprep.subr.mxu0 0.0
        %1992 = vmatpush2.msra.mxu0 0.0
        %1993 = vmatprep.subr.mxu0 0.0
        %1994 = vmatpush2.msra.mxu0 0.0
        %1995 = vmatprep.subr.mxu0 0.0
        %1996 = vmatpush2.msra.mxu0 0.0
        %1997 = vmatprep.subr.mxu0 0.0
        %1998 = vmatpush2.msra.mxu0 0.0
        %1999 = vmatprep.subr.mxu0 0.0
        %2000 = vmatpush2.msra.mxu0 0.0
        %2001 = vmatprep.subr.mxu0 0.0
        %2002 = vmatpush2.msra.mxu0 0.0
        %2003 = vmatprep.subr.mxu0 0.0
        %2004 = vmatpush2.msra.mxu0 0.0
        %2005 = vmatprep.subr.mxu0 0.0
        %2006 = vmatpush2.msra.mxu0 0.0
        %2007 = vmatprep.subr.mxu0 0.0
        %2008 = vmatpush2.msra.mxu0 0.0
        %2009 = vmatprep.mubr.f32.mxu0 0.0
        %2010 = vmatmul.mubr.f32.gmra.mxu0 %v1921
        %v2011 = vpop.f32.mrf.mxu0
        %v2012 = vadd.f32 %v1943, %v2011
        %v2013 = vpop.f32.mrf.mxu0
        %2014 = vdwg.mxu0
        %2015 = vst.msk [vmem:[%s309] sm:$0xff] %vm337, %v2012
        %s2016 = sand.u32 %s192, 1
        %s2017 = scalar_lea.sflag [#allocation3], %s2016
        %s2018 = sand.u32 %s192, 1
        %s2019 = smul.addr %s2018, 8
        %s2020 = scalar_lea.vmem [#allocation5], %s2019
        // Predicated region
        $region53: #{tpu_custom_call.1} parent=47 // pred_check
          %p2021 = pneg %p202
        $region54: #{tpu_custom_call.1} parent=47 // pred_check_branch
          %2023 = sbr.rel (%p2021) target = $region56
        $region55: #{tpu_custom_call.1} parent=47 // pred_region
          %s2025 = ssub.s32 128, 128
          %2026 = vsyncadd %s2017, %s2025
          %s2027 = smul.addr %s22, 128
          %s2028 = scalar_lea.hbm %s7, %s2027
          %s2030 = sshll.u32 %s2020, 4
          %s2031 = int_to_ptr.vmem [resolvable:$true] %s2030
          %2033 = dma.vmem_to_hbm [thread:$0]  %s2031, 128, %s2028, %s2017
        $region56: #{tpu_custom_call.1} parent=47 // pred_fallthru
          _
      $region48: #{tpu_custom_call.1} parent=5 // pred_fallthru
        _
      %p2034 = scmp.le.s32.totalorder 2, %s17
      // Predicated region
      $region57: #{tpu_custom_call.1} parent=5 // pred_check
        %p2035 = pneg %p2034
      $region58: #{tpu_custom_call.1} parent=5 // pred_check_branch
        %2037 = sbr.rel (%p2035) target = $region60
      $region59: #{tpu_custom_call.1} parent=5 // pred_region
        %s2038 = ssub.s32 %s17, 2
        // Predicated region
        $region61: #{tpu_custom_call.1} parent=59 // pred_check
          %p2039 = pneg %p208
        $region62: #{tpu_custom_call.1} parent=59 // pred_check_branch
          %2041 = sbr.rel (%p2039) target = $region64
        $region63: #{tpu_custom_call.1} parent=59 // pred_region
          %s2042 = sand.u32 %s193, 1
          %s2043 = scalar_lea.sflag [#allocation3], %s2042
          %s2044 = sand.u32 %s193, 1
          %s2045 = smul.addr %s2044, 8
          %s2046 = scalar_lea.vmem [#allocation5], %s2045
          %2047 = dma.done %s2043, 128
        $region64: #{tpu_custom_call.1} parent=59 // pred_fallthru
          _
      $region60: #{tpu_custom_call.1} parent=5 // pred_fallthru
        _
    $region6: #{tpu_custom_call.1} parent=1 // loop_footer
      %s21 = sadd.s32 1, %s17
    $region7: #{tpu_custom_call.1} parent=1 // loop_footer_branch
      %16 = sbr.rel target = $region3
    $region8: #{tpu_custom_call.1} parent=1 // loop_exit
      _
    %2048 = vsyncpa [#allocation3], 1
    %s2049 = scalar_lea.sflag [#allocation3], 1
    %2050 = vsyncpa %s2049, 1
    %2051 = vsyncpa [#allocation4], 1
    %s2052 = scalar_lea.sflag [#allocation4], 1
    %2053 = vsyncpa %s2052, 1

</llo_original>
